<compile_context>
chip_gen: v7x
topology: tpu7x:2x2x1
jax: 0.10.0
libtpu: 0.0.40
codegen_flags: <defaults>
</compile_context>

<pallas_src>
import jax
import jax.numpy as jnp
from jax import lax
from jax.experimental import pallas as pl
from jax.experimental.pallas import tpu as pltpu

D_MODEL = 40           # input_dim; must be divisible by nhead=10
NHEAD = 10
HEAD_DIM = D_MODEL // NHEAD
DIM_FF = 2048
EPS = 1e-5             # PyTorch layer_norm_eps default

# dot_general dimension numbers for the batched attention matmuls.
_DIMS_NN = (((2,), (1,)), ((0,), (0,)))   # (b,m,k) x (b,k,n) -> (b,m,n)
_DIMS_NT = (((2,), (2,)), ((0,), (0,)))   # (b,m,k) x (b,n,k) -> (b,m,n)


def _layer_norm(x, w, b):
    # LayerNorm over the last axis, biased variance (PyTorch semantics), f32.
    mean = jnp.mean(x, axis=-1, keepdims=True)
    var = jnp.mean((x - mean) ** 2, axis=-1, keepdims=True)
    return (x - mean) * lax.rsqrt(var + EPS) * w + b


def encoder_kernel(x_ref,
                   w_qkv_ref, b_qkv_ref, w_o_ref, b_o_ref,
                   ln1_w_ref, ln1_b_ref, ln2_w_ref, ln2_b_ref,
                   w1_ref, b1_ref, w2_ref, b2_ref,
                   o_ref):
    x = x_ref[...]                                     # (bt, S, D) f32
    bt, s, d = x.shape
    m = bt * s
    xf = x.reshape(m, d)                               # (M, D) flattened rows

    # ---- fused QKV projection: single (M,40)x(40,120) bf16 matmul ----------
    qkv = jnp.dot(xf.astype(jnp.bfloat16), w_qkv_ref[...],
                  preferred_element_type=jnp.float32) + b_qkv_ref[...]   # (M,120)
    q = qkv[:, :D_MODEL]
    k = qkv[:, D_MODEL:2 * D_MODEL]
    v = qkv[:, 2 * D_MODEL:]

    def split_heads(t):  # (M, D) -> (NHEAD*bt, S, HEAD_DIM), head-major batch
        th = jnp.stack(
            [t[:, h * HEAD_DIM:(h + 1) * HEAD_DIM] for h in range(NHEAD)],
            axis=0)                                    # (H, M, HD)
        return th.reshape(NHEAD * bt, s, HEAD_DIM)

    qh = split_heads(q)
    kh = split_heads(k)
    vh = split_heads(v)

    # ---- scaled dot-product attention, all (head, sequence) pairs batched --
    scale = 1.0 / (HEAD_DIM ** 0.5)
    scores = lax.dot_general(qh, kh, _DIMS_NT,
                             preferred_element_type=jnp.float32) * scale  # (H*bt,S,S)
    scores = scores - jnp.max(scores, axis=-1, keepdims=True)
    p = jnp.exp(scores)
    p = p * pl.reciprocal(jnp.sum(p, axis=-1, keepdims=True), approx=True)
    ctx = lax.dot_general(p, vh, _DIMS_NN,
                          preferred_element_type=jnp.float32)             # (H*bt,S,HD)

    # ---- merge heads back onto lanes, single (M,40)x(40,40) out-projection -
    ctx3 = ctx.reshape(NHEAD, m, HEAD_DIM)
    ctx_full = jnp.concatenate([ctx3[h] for h in range(NHEAD)], axis=-1)  # (M, D)
    attn = jnp.dot(ctx_full.astype(jnp.bfloat16), w_o_ref[...],
                   preferred_element_type=jnp.float32) + b_o_ref[...]

    # dropout(p=0.2) is identity in eval mode.
    x1 = _layer_norm(xf + attn, ln1_w_ref[...], ln1_b_ref[...])           # (M, D) f32

    # ---- feed-forward: FLOP-dominant matmuls, bf16 operands / f32 accum ----
    h1 = jnp.dot(x1.astype(jnp.bfloat16), w1_ref[...],
                 preferred_element_type=jnp.float32) + b1_ref[...]
    h1 = jnp.maximum(h1, 0.0)                                             # ReLU
    ff = jnp.dot(h1.astype(jnp.bfloat16), w2_ref[...],
                 preferred_element_type=jnp.float32) + b2_ref[...]
    x2 = _layer_norm(x1 + ff, ln2_w_ref[...], ln2_b_ref[...])

    o_ref[...] = x2.reshape(bt, s, d).astype(o_ref.dtype)


def _prepare_params(params):
    """Cast MXU-operand weights to bf16 once (host-side); biases/LN stay f32."""
    (w_qkv, b_qkv, w_o, b_o, ln1_w, ln1_b, ln2_w, ln2_b, w1, b1, w2, b2) = params
    bf = jnp.bfloat16
    return (w_qkv.astype(bf), b_qkv, w_o.astype(bf), b_o,
            ln1_w, ln1_b, ln2_w, ln2_b,
            w1.astype(bf), b1, w2.astype(bf), b2)


def encoder_block_forward(x, params, *, rows_per_step=256):
    """rows_per_step: ~256-512 for v6e/v7x, 128-256 for v5e."""
    B, S, D = x.shape
    assert D == D_MODEL

    # Batch tile so each grid step feeds ~rows_per_step rows to the MXU.
    bt = min(B, max(1, rows_per_step // S))
    pad = (-B) % bt
    if pad:
        # Pad with zero sequences (sliced off after) instead of shrinking bt.
        x = jnp.concatenate([x, jnp.zeros((pad, S, D), x.dtype)], axis=0)
    Bp = B + pad

    kparams = _prepare_params(params)

    def full_spec(a):
        nd = a.ndim
        return pl.BlockSpec(a.shape, lambda i, _nd=nd: (0,) * _nd)

    in_specs = ([pl.BlockSpec((bt, S, D), lambda i: (i, 0, 0))]
                + [full_spec(p) for p in kparams])

    out = pl.pallas_call(
        encoder_kernel,
        out_shape=jax.ShapeDtypeStruct((Bp, S, D), x.dtype),
        grid=(Bp // bt,),
        in_specs=in_specs,
        out_specs=pl.BlockSpec((bt, S, D), lambda i: (i, 0, 0)),
        compiler_params=pltpu.CompilerParams(
            dimension_semantics=("parallel",)),
    )(x, *kparams)
    return out[:B]


def init_params(key):
    ks = jax.random.split(key, 10)
    w_qkv = 0.05 * jax.random.normal(ks[0], (D_MODEL, 3 * D_MODEL), jnp.float32)
    b_qkv = 0.01 * jax.random.normal(ks[1], (1, 3 * D_MODEL), jnp.float32)
    w_o = 0.05 * jax.random.normal(ks[2], (D_MODEL, D_MODEL), jnp.float32)
    b_o = 0.01 * jax.random.normal(ks[3], (1, D_MODEL), jnp.float32)
    ln1_w = 1.0 + 0.1 * jax.random.normal(ks[4], (1, D_MODEL), jnp.float32)
    ln1_b = 0.05 * jax.random.normal(ks[5], (1, D_MODEL), jnp.float32)
    ln2_w = 1.0 + 0.1 * jax.random.normal(ks[6], (1, D_MODEL), jnp.float32)
    ln2_b = 0.05 * jax.random.normal(ks[7], (1, D_MODEL), jnp.float32)
    w1 = 0.05 * jax.random.normal(ks[8], (D_MODEL, DIM_FF), jnp.float32)
    b1 = 0.01 * jax.random.normal(ks[9], (1, DIM_FF), jnp.float32)
    w2 = 0.05 * jax.random.normal(ks[0], (DIM_FF, D_MODEL), jnp.float32)
    b2 = 0.01 * jax.random.normal(ks[1], (1, D_MODEL), jnp.float32)
    return (w_qkv, b_qkv, w_o, b_o, ln1_w, ln1_b, ln2_w, ln2_b, w1, b1, w2, b2)


def _attention_f32(x, w_qkv, b_qkv, w_o, b_o, proj):
    B, S, D = x.shape
    qkv = proj(x, w_qkv) + b_qkv[0]
    q, k, v = qkv[..., :D], qkv[..., D:2 * D], qkv[..., 2 * D:]
    q = q.reshape(B, S, NHEAD, HEAD_DIM)
    k = k.reshape(B, S, NHEAD, HEAD_DIM)
    v = v.reshape(B, S, NHEAD, HEAD_DIM)
    scores = jnp.einsum('bqhd,bkhd->bhqk', q, k) / (HEAD_DIM ** 0.5)
    p = jax.nn.softmax(scores, axis=-1)
    ctx = jnp.einsum('bhqk,bkhd->bqhd', p, v).reshape(B, S, D)
    return proj(ctx, w_o) + b_o[0]


def _ln_ref(y, w, b):
    mu = jnp.mean(y, axis=-1, keepdims=True)
    var = jnp.mean((y - mu) ** 2, axis=-1, keepdims=True)
    return (y - mu) * lax.rsqrt(var + EPS) * w[0] + b[0]


def reference_forward(x, params, *, bf16_matmuls=False):
    # Pure-JAX reference. bf16_matmuls=True mirrors the kernel's MXU precision
    # (bf16 operands, f32 accumulation) for a tight apples-to-apples check.
    (w_qkv, b_qkv, w_o, b_o, ln1_w, ln1_b, ln2_w, ln2_b, w1, b1, w2, b2) = params

    if bf16_matmuls:
        proj = lambda a, w: jnp.dot(a.astype(jnp.bfloat16), w.astype(jnp.bfloat16),
                                    preferred_element_type=jnp.float32)
    else:
        proj = lambda a, w: jnp.dot(a, w)

    attn_out = _attention_f32(x, w_qkv, b_qkv, w_o, b_o, proj)
    x1 = _ln_ref(x + attn_out, ln1_w, ln1_b)
    h1 = jnp.maximum(proj(x1, w1) + b1[0], 0.0)
    ff = proj(h1, w2) + b2[0]
    return _ln_ref(x1 + ff, ln2_w, ln2_b)


if __name__ == "__main__":
    key = jax.random.PRNGKey(0)
    kx, kp = jax.random.split(key)
    B, S = 2, 8
    x = jax.random.normal(kx, (B, S, D_MODEL), jnp.float32)
    params = init_params(kp)

    out = jax.block_until_ready(encoder_block_forward(x, params))
    assert out.shape == (B, S, D_MODEL)

    # Tight check vs a reference with identical matmul precision (bf16 operands,
    # f32 accumulation); slack covers the approx-reciprocal softmax (~2^-12).
    ref_mixed = reference_forward(x, params, bf16_matmuls=True)
    assert jnp.allclose(out, ref_mixed, atol=3e-3, rtol=3e-3), (
        "mismatch vs mixed-precision reference, max abs err = "
        f"{float(jnp.max(jnp.abs(out - ref_mixed)))}")

    # Sanity check vs the pure-f32 reference (bf16 matmul operands dominate).
    ref_f32 = reference_forward(x, params, bf16_matmuls=False)
    assert jnp.allclose(out, ref_f32, atol=5e-2, rtol=5e-2), (
        "mismatch vs f32 reference, max abs err = "
        f"{float(jnp.max(jnp.abs(out - ref_f32)))}")

    print("KERNEL_OK")
</pallas_src>

<mosaic_0001>
module attributes {stable_mosaic.version = 11 : i64} {
  func.func @encoder_kernel(%arg0: i32, %arg1: memref<2x8x40xf32, #tpu.memory_space<vmem>>, %arg2: memref<40x120xbf16, #tpu.memory_space<vmem>>, %arg3: memref<1x120xf32, #tpu.memory_space<vmem>>, %arg4: memref<40x40xbf16, #tpu.memory_space<vmem>>, %arg5: memref<1x40xf32, #tpu.memory_space<vmem>>, %arg6: memref<1x40xf32, #tpu.memory_space<vmem>>, %arg7: memref<1x40xf32, #tpu.memory_space<vmem>>, %arg8: memref<1x40xf32, #tpu.memory_space<vmem>>, %arg9: memref<1x40xf32, #tpu.memory_space<vmem>>, %arg10: memref<40x2048xbf16, #tpu.memory_space<vmem>>, %arg11: memref<1x2048xf32, #tpu.memory_space<vmem>>, %arg12: memref<2048x40xbf16, #tpu.memory_space<vmem>>, %arg13: memref<1x40xf32, #tpu.memory_space<vmem>>, %arg14: memref<2x8x40xf32, #tpu.memory_space<vmem>>) attributes {dimension_semantics = [#tpu.dimension_semantics<parallel>], iteration_bounds = array<i64: 1>, scalar_prefetch = 0 : i64, scratch_operands = 0 : i64, tpu.core_type = #tpu.core_type<tc>, window_params = [{transform_indices = @transform_0, window_bounds = array<i64: 2, 8, 40>}, {pipeline_mode = #tpu.pipeline_mode<synchronous>, transform_indices = @transform_1, window_bounds = array<i64: 40, 120>}, {pipeline_mode = #tpu.pipeline_mode<synchronous>, transform_indices = @transform_2, window_bounds = array<i64: 1, 120>}, {pipeline_mode = #tpu.pipeline_mode<synchronous>, transform_indices = @transform_3, window_bounds = array<i64: 40, 40>}, {pipeline_mode = #tpu.pipeline_mode<synchronous>, transform_indices = @transform_4, window_bounds = array<i64: 1, 40>}, {pipeline_mode = #tpu.pipeline_mode<synchronous>, transform_indices = @transform_5, window_bounds = array<i64: 1, 40>}, {pipeline_mode = #tpu.pipeline_mode<synchronous>, transform_indices = @transform_6, window_bounds = array<i64: 1, 40>}, {pipeline_mode = #tpu.pipeline_mode<synchronous>, transform_indices = @transform_7, window_bounds = array<i64: 1, 40>}, {pipeline_mode = #tpu.pipeline_mode<synchronous>, transform_indices = @transform_8, window_bounds = array<i64: 1, 40>}, {pipeline_mode = #tpu.pipeline_mode<synchronous>, transform_indices = @transform_9, window_bounds = array<i64: 40, 2048>}, {pipeline_mode = #tpu.pipeline_mode<synchronous>, transform_indices = @transform_10, window_bounds = array<i64: 1, 2048>}, {pipeline_mode = #tpu.pipeline_mode<synchronous>, transform_indices = @transform_11, window_bounds = array<i64: 2048, 40>}, {pipeline_mode = #tpu.pipeline_mode<synchronous>, transform_indices = @transform_12, window_bounds = array<i64: 1, 40>}, {transform_indices = @transform_13, window_bounds = array<i64: 2, 8, 40>}]} {
    %c0 = arith.constant 0 : index
    %c0_0 = arith.constant 0 : index
    %c0_1 = arith.constant 0 : index
    %0 = vector.load %arg1[%c0, %c0_0, %c0_1] : memref<2x8x40xf32, #tpu.memory_space<vmem>>, vector<2x8x40xf32>
    %1 = vector.shape_cast %0 : vector<2x8x40xf32> to vector<16x40xf32>
    %2 = arith.truncf %1 : vector<16x40xf32> to vector<16x40xbf16>
    %c0_2 = arith.constant 0 : index
    %c0_3 = arith.constant 0 : index
    %3 = vector.load %arg2[%c0_2, %c0_3] : memref<40x120xbf16, #tpu.memory_space<vmem>>, vector<40x120xbf16>
    %cst = arith.constant dense<0.000000e+00> : vector<16x120xf32>
    %4 = tpu.matmul %2, %3, %cst {dimension_numbers = #tpu.dot_dimension_numbers<[1], [0], [0], [1], [0, 0, 1, 1], [], []>} : vector<16x40xbf16>, vector<40x120xbf16>, vector<16x120xf32> -> vector<16x120xf32>
    %c0_4 = arith.constant 0 : index
    %c0_5 = arith.constant 0 : index
    %5 = vector.load %arg3[%c0_4, %c0_5] : memref<1x120xf32, #tpu.memory_space<vmem>>, vector<1x120xf32>
    %6 = vector.broadcast %5 : vector<1x120xf32> to vector<16x120xf32>
    %7 = arith.addf %4, %6 : vector<16x120xf32>
    %8 = vector.extract_strided_slice %7 {offsets = [0, 0], sizes = [16, 40], strides = [1, 1]} : vector<16x120xf32> to vector<16x40xf32>
    %9 = vector.extract_strided_slice %7 {offsets = [0, 40], sizes = [16, 40], strides = [1, 1]} : vector<16x120xf32> to vector<16x40xf32>
    %10 = vector.extract_strided_slice %7 {offsets = [0, 80], sizes = [16, 40], strides = [1, 1]} : vector<16x120xf32> to vector<16x40xf32>
    %11 = vector.extract_strided_slice %8 {offsets = [0, 0], sizes = [16, 4], strides = [1, 1]} : vector<16x40xf32> to vector<16x4xf32>
    %12 = vector.extract_strided_slice %8 {offsets = [0, 4], sizes = [16, 4], strides = [1, 1]} : vector<16x40xf32> to vector<16x4xf32>
    %13 = vector.extract_strided_slice %8 {offsets = [0, 8], sizes = [16, 4], strides = [1, 1]} : vector<16x40xf32> to vector<16x4xf32>
    %14 = vector.extract_strided_slice %8 {offsets = [0, 12], sizes = [16, 4], strides = [1, 1]} : vector<16x40xf32> to vector<16x4xf32>
    %15 = vector.extract_strided_slice %8 {offsets = [0, 16], sizes = [16, 4], strides = [1, 1]} : vector<16x40xf32> to vector<16x4xf32>
    %16 = vector.extract_strided_slice %8 {offsets = [0, 20], sizes = [16, 4], strides = [1, 1]} : vector<16x40xf32> to vector<16x4xf32>
    %17 = vector.extract_strided_slice %8 {offsets = [0, 24], sizes = [16, 4], strides = [1, 1]} : vector<16x40xf32> to vector<16x4xf32>
    %18 = vector.extract_strided_slice %8 {offsets = [0, 28], sizes = [16, 4], strides = [1, 1]} : vector<16x40xf32> to vector<16x4xf32>
    %19 = vector.extract_strided_slice %8 {offsets = [0, 32], sizes = [16, 4], strides = [1, 1]} : vector<16x40xf32> to vector<16x4xf32>
    %20 = vector.extract_strided_slice %8 {offsets = [0, 36], sizes = [16, 4], strides = [1, 1]} : vector<16x40xf32> to vector<16x4xf32>
    %21 = vector.shape_cast %11 : vector<16x4xf32> to vector<1x16x4xf32>
    %22 = vector.shape_cast %12 : vector<16x4xf32> to vector<1x16x4xf32>
    %23 = vector.shape_cast %13 : vector<16x4xf32> to vector<1x16x4xf32>
    %24 = vector.shape_cast %14 : vector<16x4xf32> to vector<1x16x4xf32>
    %25 = vector.shape_cast %15 : vector<16x4xf32> to vector<1x16x4xf32>
    %26 = vector.shape_cast %16 : vector<16x4xf32> to vector<1x16x4xf32>
    %27 = vector.shape_cast %17 : vector<16x4xf32> to vector<1x16x4xf32>
    %28 = vector.shape_cast %18 : vector<16x4xf32> to vector<1x16x4xf32>
    %29 = vector.shape_cast %19 : vector<16x4xf32> to vector<1x16x4xf32>
    %30 = vector.shape_cast %20 : vector<16x4xf32> to vector<1x16x4xf32>
    %31 = tpu.concatenate %21, %22, %23, %24, %25, %26, %27, %28, %29, %30 in 0 : vector<1x16x4xf32>, vector<1x16x4xf32>, vector<1x16x4xf32>, vector<1x16x4xf32>, vector<1x16x4xf32>, vector<1x16x4xf32>, vector<1x16x4xf32>, vector<1x16x4xf32>, vector<1x16x4xf32>, vector<1x16x4xf32> -> vector<10x16x4xf32>
    %32 = vector.shape_cast %31 : vector<10x16x4xf32> to vector<20x8x4xf32>
    %33 = vector.extract_strided_slice %9 {offsets = [0, 0], sizes = [16, 4], strides = [1, 1]} : vector<16x40xf32> to vector<16x4xf32>
    %34 = vector.extract_strided_slice %9 {offsets = [0, 4], sizes = [16, 4], strides = [1, 1]} : vector<16x40xf32> to vector<16x4xf32>
    %35 = vector.extract_strided_slice %9 {offsets = [0, 8], sizes = [16, 4], strides = [1, 1]} : vector<16x40xf32> to vector<16x4xf32>
    %36 = vector.extract_strided_slice %9 {offsets = [0, 12], sizes = [16, 4], strides = [1, 1]} : vector<16x40xf32> to vector<16x4xf32>
    %37 = vector.extract_strided_slice %9 {offsets = [0, 16], sizes = [16, 4], strides = [1, 1]} : vector<16x40xf32> to vector<16x4xf32>
    %38 = vector.extract_strided_slice %9 {offsets = [0, 20], sizes = [16, 4], strides = [1, 1]} : vector<16x40xf32> to vector<16x4xf32>
    %39 = vector.extract_strided_slice %9 {offsets = [0, 24], sizes = [16, 4], strides = [1, 1]} : vector<16x40xf32> to vector<16x4xf32>
    %40 = vector.extract_strided_slice %9 {offsets = [0, 28], sizes = [16, 4], strides = [1, 1]} : vector<16x40xf32> to vector<16x4xf32>
    %41 = vector.extract_strided_slice %9 {offsets = [0, 32], sizes = [16, 4], strides = [1, 1]} : vector<16x40xf32> to vector<16x4xf32>
    %42 = vector.extract_strided_slice %9 {offsets = [0, 36], sizes = [16, 4], strides = [1, 1]} : vector<16x40xf32> to vector<16x4xf32>
    %43 = vector.shape_cast %33 : vector<16x4xf32> to vector<1x16x4xf32>
    %44 = vector.shape_cast %34 : vector<16x4xf32> to vector<1x16x4xf32>
    %45 = vector.shape_cast %35 : vector<16x4xf32> to vector<1x16x4xf32>
    %46 = vector.shape_cast %36 : vector<16x4xf32> to vector<1x16x4xf32>
    %47 = vector.shape_cast %37 : vector<16x4xf32> to vector<1x16x4xf32>
    %48 = vector.shape_cast %38 : vector<16x4xf32> to vector<1x16x4xf32>
    %49 = vector.shape_cast %39 : vector<16x4xf32> to vector<1x16x4xf32>
    %50 = vector.shape_cast %40 : vector<16x4xf32> to vector<1x16x4xf32>
    %51 = vector.shape_cast %41 : vector<16x4xf32> to vector<1x16x4xf32>
    %52 = vector.shape_cast %42 : vector<16x4xf32> to vector<1x16x4xf32>
    %53 = tpu.concatenate %43, %44, %45, %46, %47, %48, %49, %50, %51, %52 in 0 : vector<1x16x4xf32>, vector<1x16x4xf32>, vector<1x16x4xf32>, vector<1x16x4xf32>, vector<1x16x4xf32>, vector<1x16x4xf32>, vector<1x16x4xf32>, vector<1x16x4xf32>, vector<1x16x4xf32>, vector<1x16x4xf32> -> vector<10x16x4xf32>
    %54 = vector.shape_cast %53 : vector<10x16x4xf32> to vector<20x8x4xf32>
    %55 = vector.extract_strided_slice %10 {offsets = [0, 0], sizes = [16, 4], strides = [1, 1]} : vector<16x40xf32> to vector<16x4xf32>
    %56 = vector.extract_strided_slice %10 {offsets = [0, 4], sizes = [16, 4], strides = [1, 1]} : vector<16x40xf32> to vector<16x4xf32>
    %57 = vector.extract_strided_slice %10 {offsets = [0, 8], sizes = [16, 4], strides = [1, 1]} : vector<16x40xf32> to vector<16x4xf32>
    %58 = vector.extract_strided_slice %10 {offsets = [0, 12], sizes = [16, 4], strides = [1, 1]} : vector<16x40xf32> to vector<16x4xf32>
    %59 = vector.extract_strided_slice %10 {offsets = [0, 16], sizes = [16, 4], strides = [1, 1]} : vector<16x40xf32> to vector<16x4xf32>
    %60 = vector.extract_strided_slice %10 {offsets = [0, 20], sizes = [16, 4], strides = [1, 1]} : vector<16x40xf32> to vector<16x4xf32>
    %61 = vector.extract_strided_slice %10 {offsets = [0, 24], sizes = [16, 4], strides = [1, 1]} : vector<16x40xf32> to vector<16x4xf32>
    %62 = vector.extract_strided_slice %10 {offsets = [0, 28], sizes = [16, 4], strides = [1, 1]} : vector<16x40xf32> to vector<16x4xf32>
    %63 = vector.extract_strided_slice %10 {offsets = [0, 32], sizes = [16, 4], strides = [1, 1]} : vector<16x40xf32> to vector<16x4xf32>
    %64 = vector.extract_strided_slice %10 {offsets = [0, 36], sizes = [16, 4], strides = [1, 1]} : vector<16x40xf32> to vector<16x4xf32>
    %65 = vector.shape_cast %55 : vector<16x4xf32> to vector<1x16x4xf32>
    %66 = vector.shape_cast %56 : vector<16x4xf32> to vector<1x16x4xf32>
    %67 = vector.shape_cast %57 : vector<16x4xf32> to vector<1x16x4xf32>
    %68 = vector.shape_cast %58 : vector<16x4xf32> to vector<1x16x4xf32>
    %69 = vector.shape_cast %59 : vector<16x4xf32> to vector<1x16x4xf32>
    %70 = vector.shape_cast %60 : vector<16x4xf32> to vector<1x16x4xf32>
    %71 = vector.shape_cast %61 : vector<16x4xf32> to vector<1x16x4xf32>
    %72 = vector.shape_cast %62 : vector<16x4xf32> to vector<1x16x4xf32>
    %73 = vector.shape_cast %63 : vector<16x4xf32> to vector<1x16x4xf32>
    %74 = vector.shape_cast %64 : vector<16x4xf32> to vector<1x16x4xf32>
    %75 = tpu.concatenate %65, %66, %67, %68, %69, %70, %71, %72, %73, %74 in 0 : vector<1x16x4xf32>, vector<1x16x4xf32>, vector<1x16x4xf32>, vector<1x16x4xf32>, vector<1x16x4xf32>, vector<1x16x4xf32>, vector<1x16x4xf32>, vector<1x16x4xf32>, vector<1x16x4xf32>, vector<1x16x4xf32> -> vector<10x16x4xf32>
    %76 = vector.shape_cast %75 : vector<10x16x4xf32> to vector<20x8x4xf32>
    %cst_6 = arith.constant dense<0.000000e+00> : vector<20x8x8xf32>
    %77 = tpu.matmul %32, %54, %cst_6 {dimension_numbers = #tpu.dot_dimension_numbers<[2], [2], [1], [1], [0, 0, 0, 1, 1, 1], [0], [0]>} : vector<20x8x4xf32>, vector<20x8x4xf32>, vector<20x8x8xf32> -> vector<20x8x8xf32>
    %cst_7 = arith.constant 5.000000e-01 : f32
    %78 = vector.broadcast %cst_7 : f32 to vector<20x8x8xf32>
    %79 = arith.mulf %77, %78 : vector<20x8x8xf32>
    %cst_8 = arith.constant dense<0xFF800000> : vector<20x8xf32>
    %80 = vector.multi_reduction <maximumf>, %79, %cst_8 [2] : vector<20x8x8xf32> to vector<20x8xf32>
    %81 = vector.shape_cast %80 : vector<20x8xf32> to vector<20x8x1xf32>
    %82 = vector.broadcast %81 : vector<20x8x1xf32> to vector<20x8x8xf32>
    %83 = arith.subf %79, %82 : vector<20x8x8xf32>
    %84 = math.exp %83 : vector<20x8x8xf32>
    %cst_9 = arith.constant dense<0.000000e+00> : vector<20x8xf32>
    %85 = vector.multi_reduction <add>, %84, %cst_9 [2] : vector<20x8x8xf32> to vector<20x8xf32>
    %86 = vector.shape_cast %85 : vector<20x8xf32> to vector<20x8x1xf32>
    %87 = tpu.reciprocal %86 {approx = true} : vector<20x8x1xf32> -> vector<20x8x1xf32>
    %88 = vector.broadcast %87 : vector<20x8x1xf32> to vector<20x8x8xf32>
    %89 = arith.mulf %84, %88 : vector<20x8x8xf32>
    %cst_10 = arith.constant dense<0.000000e+00> : vector<20x8x4xf32>
    %90 = tpu.matmul %89, %76, %cst_10 {dimension_numbers = #tpu.dot_dimension_numbers<[2], [1], [1], [2], [0, 0, 0, 1, 1, 2], [0], [0]>} : vector<20x8x8xf32>, vector<20x8x4xf32>, vector<20x8x4xf32> -> vector<20x8x4xf32>
    %91 = vector.shape_cast %90 : vector<20x8x4xf32> to vector<10x16x4xf32>
    %92 = vector.extract_strided_slice %91 {offsets = [0, 0, 0], sizes = [1, 16, 4], strides = [1, 1, 1]} : vector<10x16x4xf32> to vector<1x16x4xf32>
    %93 = vector.shape_cast %92 : vector<1x16x4xf32> to vector<16x4xf32>
    %94 = vector.extract_strided_slice %91 {offsets = [1, 0, 0], sizes = [1, 16, 4], strides = [1, 1, 1]} : vector<10x16x4xf32> to vector<1x16x4xf32>
    %95 = vector.shape_cast %94 : vector<1x16x4xf32> to vector<16x4xf32>
    %96 = vector.extract_strided_slice %91 {offsets = [2, 0, 0], sizes = [1, 16, 4], strides = [1, 1, 1]} : vector<10x16x4xf32> to vector<1x16x4xf32>
    %97 = vector.shape_cast %96 : vector<1x16x4xf32> to vector<16x4xf32>
    %98 = vector.extract_strided_slice %91 {offsets = [3, 0, 0], sizes = [1, 16, 4], strides = [1, 1, 1]} : vector<10x16x4xf32> to vector<1x16x4xf32>
    %99 = vector.shape_cast %98 : vector<1x16x4xf32> to vector<16x4xf32>
    %100 = vector.extract_strided_slice %91 {offsets = [4, 0, 0], sizes = [1, 16, 4], strides = [1, 1, 1]} : vector<10x16x4xf32> to vector<1x16x4xf32>
    %101 = vector.shape_cast %100 : vector<1x16x4xf32> to vector<16x4xf32>
    %102 = vector.extract_strided_slice %91 {offsets = [5, 0, 0], sizes = [1, 16, 4], strides = [1, 1, 1]} : vector<10x16x4xf32> to vector<1x16x4xf32>
    %103 = vector.shape_cast %102 : vector<1x16x4xf32> to vector<16x4xf32>
    %104 = vector.extract_strided_slice %91 {offsets = [6, 0, 0], sizes = [1, 16, 4], strides = [1, 1, 1]} : vector<10x16x4xf32> to vector<1x16x4xf32>
    %105 = vector.shape_cast %104 : vector<1x16x4xf32> to vector<16x4xf32>
    %106 = vector.extract_strided_slice %91 {offsets = [7, 0, 0], sizes = [1, 16, 4], strides = [1, 1, 1]} : vector<10x16x4xf32> to vector<1x16x4xf32>
    %107 = vector.shape_cast %106 : vector<1x16x4xf32> to vector<16x4xf32>
    %108 = vector.extract_strided_slice %91 {offsets = [8, 0, 0], sizes = [1, 16, 4], strides = [1, 1, 1]} : vector<10x16x4xf32> to vector<1x16x4xf32>
    %109 = vector.shape_cast %108 : vector<1x16x4xf32> to vector<16x4xf32>
    %110 = vector.extract_strided_slice %91 {offsets = [9, 0, 0], sizes = [1, 16, 4], strides = [1, 1, 1]} : vector<10x16x4xf32> to vector<1x16x4xf32>
    %111 = vector.shape_cast %110 : vector<1x16x4xf32> to vector<16x4xf32>
    %112 = tpu.concatenate %93, %95, %97, %99, %101, %103, %105, %107, %109, %111 in 1 : vector<16x4xf32>, vector<16x4xf32>, vector<16x4xf32>, vector<16x4xf32>, vector<16x4xf32>, vector<16x4xf32>, vector<16x4xf32>, vector<16x4xf32>, vector<16x4xf32>, vector<16x4xf32> -> vector<16x40xf32>
    %113 = arith.truncf %112 : vector<16x40xf32> to vector<16x40xbf16>
    %c0_11 = arith.constant 0 : index
    %c0_12 = arith.constant 0 : index
    %114 = vector.load %arg4[%c0_11, %c0_12] : memref<40x40xbf16, #tpu.memory_space<vmem>>, vector<40x40xbf16>
    %cst_13 = arith.constant dense<0.000000e+00> : vector<16x40xf32>
    %115 = tpu.matmul %113, %114, %cst_13 {dimension_numbers = #tpu.dot_dimension_numbers<[1], [0], [0], [1], [0, 0, 1, 1], [], []>} : vector<16x40xbf16>, vector<40x40xbf16>, vector<16x40xf32> -> vector<16x40xf32>
    %c0_14 = arith.constant 0 : index
    %c0_15 = arith.constant 0 : index
    %116 = vector.load %arg5[%c0_14, %c0_15] : memref<1x40xf32, #tpu.memory_space<vmem>>, vector<1x40xf32>
    %117 = vector.broadcast %116 : vector<1x40xf32> to vector<16x40xf32>
    %118 = arith.addf %115, %117 : vector<16x40xf32>
    %119 = arith.addf %1, %118 : vector<16x40xf32>
    %c0_16 = arith.constant 0 : index
    %c0_17 = arith.constant 0 : index
    %120 = vector.load %arg6[%c0_16, %c0_17] : memref<1x40xf32, #tpu.memory_space<vmem>>, vector<1x40xf32>
    %c0_18 = arith.constant 0 : index
    %c0_19 = arith.constant 0 : index
    %121 = vector.load %arg7[%c0_18, %c0_19] : memref<1x40xf32, #tpu.memory_space<vmem>>, vector<1x40xf32>
    %cst_20 = arith.constant dense<0.000000e+00> : vector<16xf32>
    %122 = vector.multi_reduction <add>, %119, %cst_20 [1] : vector<16x40xf32> to vector<16xf32>
    %123 = vector.shape_cast %122 : vector<16xf32> to vector<16x1xf32>
    %cst_21 = arith.constant 4.000000e+01 : f32
    %124 = vector.broadcast %cst_21 : f32 to vector<16x1xf32>
    %125 = arith.divf %123, %124 : vector<16x1xf32>
    %126 = vector.broadcast %125 : vector<16x1xf32> to vector<16x40xf32>
    %127 = arith.subf %119, %126 : vector<16x40xf32>
    %128 = arith.mulf %127, %127 : vector<16x40xf32>
    %cst_22 = arith.constant dense<0.000000e+00> : vector<16xf32>
    %129 = vector.multi_reduction <add>, %128, %cst_22 [1] : vector<16x40xf32> to vector<16xf32>
    %130 = vector.shape_cast %129 : vector<16xf32> to vector<16x1xf32>
    %cst_23 = arith.constant 4.000000e+01 : f32
    %131 = vector.broadcast %cst_23 : f32 to vector<16x1xf32>
    %132 = arith.divf %130, %131 : vector<16x1xf32>
    %133 = vector.broadcast %125 : vector<16x1xf32> to vector<16x40xf32>
    %134 = arith.subf %119, %133 : vector<16x40xf32>
    %cst_24 = arith.constant 9.99999974E-6 : f32
    %135 = vector.broadcast %cst_24 : f32 to vector<16x1xf32>
    %136 = arith.addf %132, %135 : vector<16x1xf32>
    %137 = math.rsqrt %136 : vector<16x1xf32>
    %138 = vector.broadcast %137 : vector<16x1xf32> to vector<16x40xf32>
    %139 = arith.mulf %134, %138 : vector<16x40xf32>
    %140 = vector.broadcast %120 : vector<1x40xf32> to vector<16x40xf32>
    %141 = arith.mulf %139, %140 : vector<16x40xf32>
    %142 = vector.broadcast %121 : vector<1x40xf32> to vector<16x40xf32>
    %143 = arith.addf %141, %142 : vector<16x40xf32>
    %144 = arith.truncf %143 : vector<16x40xf32> to vector<16x40xbf16>
    %c0_25 = arith.constant 0 : index
    %c0_26 = arith.constant 0 : index
    %145 = vector.load %arg10[%c0_25, %c0_26] : memref<40x2048xbf16, #tpu.memory_space<vmem>>, vector<40x2048xbf16>
    %cst_27 = arith.constant dense<0.000000e+00> : vector<16x2048xf32>
    %146 = tpu.matmul %144, %145, %cst_27 {dimension_numbers = #tpu.dot_dimension_numbers<[1], [0], [0], [1], [0, 0, 1, 1], [], []>} : vector<16x40xbf16>, vector<40x2048xbf16>, vector<16x2048xf32> -> vector<16x2048xf32>
    %c0_28 = arith.constant 0 : index
    %c0_29 = arith.constant 0 : index
    %147 = vector.load %arg11[%c0_28, %c0_29] : memref<1x2048xf32, #tpu.memory_space<vmem>>, vector<1x2048xf32>
    %148 = vector.broadcast %147 : vector<1x2048xf32> to vector<16x2048xf32>
    %149 = arith.addf %146, %148 : vector<16x2048xf32>
    %cst_30 = arith.constant 0.000000e+00 : f32
    %150 = vector.broadcast %cst_30 : f32 to vector<16x2048xf32>
    %151 = arith.maximumf %149, %150 : vector<16x2048xf32>
    %152 = arith.truncf %151 : vector<16x2048xf32> to vector<16x2048xbf16>
    %c0_31 = arith.constant 0 : index
    %c0_32 = arith.constant 0 : index
    %153 = vector.load %arg12[%c0_31, %c0_32] : memref<2048x40xbf16, #tpu.memory_space<vmem>>, vector<2048x40xbf16>
    %cst_33 = arith.constant dense<0.000000e+00> : vector<16x40xf32>
    %154 = tpu.matmul %152, %153, %cst_33 {dimension_numbers = #tpu.dot_dimension_numbers<[1], [0], [0], [1], [0, 0, 1, 1], [], []>} : vector<16x2048xbf16>, vector<2048x40xbf16>, vector<16x40xf32> -> vector<16x40xf32>
    %c0_34 = arith.constant 0 : index
    %c0_35 = arith.constant 0 : index
    %155 = vector.load %arg13[%c0_34, %c0_35] : memref<1x40xf32, #tpu.memory_space<vmem>>, vector<1x40xf32>
    %156 = vector.broadcast %155 : vector<1x40xf32> to vector<16x40xf32>
    %157 = arith.addf %154, %156 : vector<16x40xf32>
    %158 = arith.addf %143, %157 : vector<16x40xf32>
    %c0_36 = arith.constant 0 : index
    %c0_37 = arith.constant 0 : index
    %159 = vector.load %arg8[%c0_36, %c0_37] : memref<1x40xf32, #tpu.memory_space<vmem>>, vector<1x40xf32>
    %c0_38 = arith.constant 0 : index
    %c0_39 = arith.constant 0 : index
    %160 = vector.load %arg9[%c0_38, %c0_39] : memref<1x40xf32, #tpu.memory_space<vmem>>, vector<1x40xf32>
    %cst_40 = arith.constant dense<0.000000e+00> : vector<16xf32>
    %161 = vector.multi_reduction <add>, %158, %cst_40 [1] : vector<16x40xf32> to vector<16xf32>
    %162 = vector.shape_cast %161 : vector<16xf32> to vector<16x1xf32>
    %cst_41 = arith.constant 4.000000e+01 : f32
    %163 = vector.broadcast %cst_41 : f32 to vector<16x1xf32>
    %164 = arith.divf %162, %163 : vector<16x1xf32>
    %165 = vector.broadcast %164 : vector<16x1xf32> to vector<16x40xf32>
    %166 = arith.subf %158, %165 : vector<16x40xf32>
    %167 = arith.mulf %166, %166 : vector<16x40xf32>
    %cst_42 = arith.constant dense<0.000000e+00> : vector<16xf32>
    %168 = vector.multi_reduction <add>, %167, %cst_42 [1] : vector<16x40xf32> to vector<16xf32>
    %169 = vector.shape_cast %168 : vector<16xf32> to vector<16x1xf32>
    %cst_43 = arith.constant 4.000000e+01 : f32
    %170 = vector.broadcast %cst_43 : f32 to vector<16x1xf32>
    %171 = arith.divf %169, %170 : vector<16x1xf32>
    %172 = vector.broadcast %164 : vector<16x1xf32> to vector<16x40xf32>
    %173 = arith.subf %158, %172 : vector<16x40xf32>
    %cst_44 = arith.constant 9.99999974E-6 : f32
    %174 = vector.broadcast %cst_44 : f32 to vector<16x1xf32>
    %175 = arith.addf %171, %174 : vector<16x1xf32>
    %176 = math.rsqrt %175 : vector<16x1xf32>
    %177 = vector.broadcast %176 : vector<16x1xf32> to vector<16x40xf32>
    %178 = arith.mulf %173, %177 : vector<16x40xf32>
    %179 = vector.broadcast %159 : vector<1x40xf32> to vector<16x40xf32>
    %180 = arith.mulf %178, %179 : vector<16x40xf32>
    %181 = vector.broadcast %160 : vector<1x40xf32> to vector<16x40xf32>
    %182 = arith.addf %180, %181 : vector<16x40xf32>
    %183 = vector.shape_cast %182 : vector<16x40xf32> to vector<2x8x40xf32>
    %c0_45 = arith.constant 0 : index
    %c0_46 = arith.constant 0 : index
    %c0_47 = arith.constant 0 : index
    %184 = vector.load %arg14[%c0_45, %c0_46, %c0_47] : memref<2x8x40xf32, #tpu.memory_space<vmem>>, vector<2x8x40xf32>
    tpu.vector_store %arg14[%c0_45, %c0_46, %c0_47], %183 {strides = array<i32>} : memref<2x8x40xf32, #tpu.memory_space<vmem>>, vector<2x8x40xf32>,
    return
  }
  func.func @transform_0(%arg0: i32) -> (i32, i32, i32) {
    %c0_i32 = arith.constant 0 : i32
    %c0_i32_0 = arith.constant 0 : i32
    %c0_i32_1 = arith.constant 0 : i32
    return %arg0, %c0_i32, %c0_i32_0 : i32, i32, i32
  }
  func.func @transform_1(%arg0: i32) -> (i32, i32) {
    %c0_i32 = arith.constant 0 : i32
    %c0_i32_0 = arith.constant 0 : i32
    %c0_i32_1 = arith.constant 0 : i32
    return %c0_i32, %c0_i32_0 : i32, i32
  }
  func.func @transform_2(%arg0: i32) -> (i32, i32) {
    %c0_i32 = arith.constant 0 : i32
    %c0_i32_0 = arith.constant 0 : i32
    %c0_i32_1 = arith.constant 0 : i32
    return %c0_i32, %c0_i32_0 : i32, i32
  }
  func.func @transform_3(%arg0: i32) -> (i32, i32) {
    %c0_i32 = arith.constant 0 : i32
    %c0_i32_0 = arith.constant 0 : i32
    %c0_i32_1 = arith.constant 0 : i32
    return %c0_i32, %c0_i32_0 : i32, i32
  }
  func.func @transform_4(%arg0: i32) -> (i32, i32) {
    %c0_i32 = arith.constant 0 : i32
    %c0_i32_0 = arith.constant 0 : i32
    %c0_i32_1 = arith.constant 0 : i32
    return %c0_i32, %c0_i32_0 : i32, i32
  }
  func.func @transform_5(%arg0: i32) -> (i32, i32) {
    %c0_i32 = arith.constant 0 : i32
    %c0_i32_0 = arith.constant 0 : i32
    %c0_i32_1 = arith.constant 0 : i32
    return %c0_i32, %c0_i32_0 : i32, i32
  }
  func.func @transform_6(%arg0: i32) -> (i32, i32) {
    %c0_i32 = arith.constant 0 : i32
    %c0_i32_0 = arith.constant 0 : i32
    %c0_i32_1 = arith.constant 0 : i32
    return %c0_i32, %c0_i32_0 : i32, i32
  }
  func.func @transform_7(%arg0: i32) -> (i32, i32) {
    %c0_i32 = arith.constant 0 : i32
    %c0_i32_0 = arith.constant 0 : i32
    %c0_i32_1 = arith.constant 0 : i32
    return %c0_i32, %c0_i32_0 : i32, i32
  }
  func.func @transform_8(%arg0: i32) -> (i32, i32) {
    %c0_i32 = arith.constant 0 : i32
    %c0_i32_0 = arith.constant 0 : i32
    %c0_i32_1 = arith.constant 0 : i32
    return %c0_i32, %c0_i32_0 : i32, i32
  }
  func.func @transform_9(%arg0: i32) -> (i32, i32) {
    %c0_i32 = arith.constant 0 : i32
    %c0_i32_0 = arith.constant 0 : i32
    %c0_i32_1 = arith.constant 0 : i32
    return %c0_i32, %c0_i32_0 : i32, i32
  }
  func.func @transform_10(%arg0: i32) -> (i32, i32) {
    %c0_i32 = arith.constant 0 : i32
    %c0_i32_0 = arith.constant 0 : i32
    %c0_i32_1 = arith.constant 0 : i32
    return %c0_i32, %c0_i32_0 : i32, i32
  }
  func.func @transform_11(%arg0: i32) -> (i32, i32) {
    %c0_i32 = arith.constant 0 : i32
    %c0_i32_0 = arith.constant 0 : i32
    %c0_i32_1 = arith.constant 0 : i32
    return %c0_i32, %c0_i32_0 : i32, i32
  }
  func.func @transform_12(%arg0: i32) -> (i32, i32) {
    %c0_i32 = arith.constant 0 : i32
    %c0_i32_0 = arith.constant 0 : i32
    %c0_i32_1 = arith.constant 0 : i32
    return %c0_i32, %c0_i32_0 : i32, i32
  }
  func.func @transform_13(%arg0: i32) -> (i32, i32, i32) {
    %c0_i32 = arith.constant 0 : i32
    %c0_i32_0 = arith.constant 0 : i32
    %c0_i32_1 = arith.constant 0 : i32
    return %arg0, %c0_i32, %c0_i32_0 : i32, i32, i32
  }
}

</mosaic_0001>

<llo_original>
// kernel: tpu_custom_call.1
$region0: #{tpu_custom_call.1}
  #allocation0 [shape = 'u32[]', space=smem, size = 0x4, offset = 0x4, fixed_abs, tag = 'smem constant byte address 0x4 - core index']
  #allocation1 [shape = 'u32[144,128]{1,0:T(1,128)}', space=vmem, size = 0x12000, scoped, tag = 'internal scratch']
  %s0 = inlined_call_operand.vmem [shape: f32[2,8,40], index: 0, kind: input, shape index: {}]
  %s1 = inlined_call_operand.vmem [shape: bf16[40,120], index: 1, kind: input, shape index: {}]
  %s2 = inlined_call_operand.vmem [shape: f32[1,120], index: 2, kind: input, shape index: {}]
  %s3 = inlined_call_operand.vmem [shape: bf16[40,40], index: 3, kind: input, shape index: {}]
  %s4 = inlined_call_operand.vmem [shape: f32[1,40], index: 4, kind: input, shape index: {}]
  %s5 = inlined_call_operand.vmem [shape: f32[1,40], index: 5, kind: input, shape index: {}]
  %s6 = inlined_call_operand.vmem [shape: f32[1,40], index: 6, kind: input, shape index: {}]
  %s7 = inlined_call_operand.vmem [shape: f32[1,40], index: 7, kind: input, shape index: {}]
  %s8 = inlined_call_operand.vmem [shape: f32[1,40], index: 8, kind: input, shape index: {}]
  %s9 = inlined_call_operand.vmem [shape: bf16[40,2048], index: 9, kind: input, shape index: {}]
  %s10 = inlined_call_operand.vmem [shape: f32[1,2048], index: 10, kind: input, shape index: {}]
  %s11 = inlined_call_operand.vmem [shape: bf16[2048,40], index: 11, kind: input, shape index: {}]
  %s12 = inlined_call_operand.vmem [shape: f32[1,40], index: 12, kind: input, shape index: {}]
  %s13 = inlined_call_operand.hbm [shape: f32[2,8,40], index: 13, kind: output, shape index: {}]
  %s14 = sld [smem:[#allocation0]]
  $region62: #{tpu_custom_call.1} parent=0
    _
  %s16 = ssub.s32 1, %s14
  %s17 = scalar_select 0, %s16, %s14
  $region1: #{tpu_custom_call.1} parent=0
    #allocation2 [shape = 'u8[8192]{0}', space=vmem, size = 0x2000, scoped, tag = 'output window, operand 0, single buffered']
    #allocation3 [shape = 's32[1]{0}', space=sflag, size = 0x4, scoped, tag = 'scoped memory for tpu_custom_call.1']
    %18 = vsyncpa [#allocation3], 0
    // Predicated region
    $region2: #{tpu_custom_call.1} parent=1 // pred_check
      _
    $region3: #{tpu_custom_call.1} parent=1 // pred_check_branch
      %20 = sbr.rel (0) target = $region5
    $region4: #{tpu_custom_call.1} parent=1 // pred_region
      _
    $region5: #{tpu_custom_call.1} parent=1 // pred_fallthru
      _
    // Predicated region
    $region6: #{tpu_custom_call.1} parent=1 // pred_check
      _
    $region7: #{tpu_custom_call.1} parent=1 // pred_check_branch
      %22 = sbr.rel (0) target = $region9
    $region8: #{tpu_custom_call.1} parent=1 // pred_region
      _
    $region9: #{tpu_custom_call.1} parent=1 // pred_fallthru
      _
    // Predicated region
    $region10: #{tpu_custom_call.1} parent=1 // pred_check
      _
    $region11: #{tpu_custom_call.1} parent=1 // pred_check_branch
      %24 = sbr.rel (0) target = $region13
    $region12: #{tpu_custom_call.1} parent=1 // pred_region
      _
    $region13: #{tpu_custom_call.1} parent=1 // pred_fallthru
      _
    // Predicated region
    $region14: #{tpu_custom_call.1} parent=1 // pred_check
      _
    $region15: #{tpu_custom_call.1} parent=1 // pred_check_branch
      %26 = sbr.rel (0) target = $region17
    $region16: #{tpu_custom_call.1} parent=1 // pred_region
      _
    $region17: #{tpu_custom_call.1} parent=1 // pred_fallthru
      _
    // Predicated region
    $region18: #{tpu_custom_call.1} parent=1 // pred_check
      _
    $region19: #{tpu_custom_call.1} parent=1 // pred_check_branch
      %28 = sbr.rel (0) target = $region21
    $region20: #{tpu_custom_call.1} parent=1 // pred_region
      _
    $region21: #{tpu_custom_call.1} parent=1 // pred_fallthru
      _
    // Predicated region
    $region22: #{tpu_custom_call.1} parent=1 // pred_check
      _
    $region23: #{tpu_custom_call.1} parent=1 // pred_check_branch
      %30 = sbr.rel (0) target = $region25
    $region24: #{tpu_custom_call.1} parent=1 // pred_region
      _
    $region25: #{tpu_custom_call.1} parent=1 // pred_fallthru
      _
    // Predicated region
    $region26: #{tpu_custom_call.1} parent=1 // pred_check
      _
    $region27: #{tpu_custom_call.1} parent=1 // pred_check_branch
      %32 = sbr.rel (0) target = $region29
    $region28: #{tpu_custom_call.1} parent=1 // pred_region
      _
    $region29: #{tpu_custom_call.1} parent=1 // pred_fallthru
      _
    // Predicated region
    $region30: #{tpu_custom_call.1} parent=1 // pred_check
      _
    $region31: #{tpu_custom_call.1} parent=1 // pred_check_branch
      %34 = sbr.rel (0) target = $region33
    $region32: #{tpu_custom_call.1} parent=1 // pred_region
      _
    $region33: #{tpu_custom_call.1} parent=1 // pred_fallthru
      _
    // Predicated region
    $region34: #{tpu_custom_call.1} parent=1 // pred_check
      _
    $region35: #{tpu_custom_call.1} parent=1 // pred_check_branch
      %36 = sbr.rel (0) target = $region37
    $region36: #{tpu_custom_call.1} parent=1 // pred_region
      _
    $region37: #{tpu_custom_call.1} parent=1 // pred_fallthru
      _
    // Predicated region
    $region38: #{tpu_custom_call.1} parent=1 // pred_check
      _
    $region39: #{tpu_custom_call.1} parent=1 // pred_check_branch
      %38 = sbr.rel (0) target = $region41
    $region40: #{tpu_custom_call.1} parent=1 // pred_region
      _
    $region41: #{tpu_custom_call.1} parent=1 // pred_fallthru
      _
    // Predicated region
    $region42: #{tpu_custom_call.1} parent=1 // pred_check
      _
    $region43: #{tpu_custom_call.1} parent=1 // pred_check_branch
      %40 = sbr.rel (0) target = $region45
    $region44: #{tpu_custom_call.1} parent=1 // pred_region
      _
    $region45: #{tpu_custom_call.1} parent=1 // pred_fallthru
      _
    // Predicated region
    $region46: #{tpu_custom_call.1} parent=1 // pred_check
      _
    $region47: #{tpu_custom_call.1} parent=1 // pred_check_branch
      %42 = sbr.rel (0) target = $region49
    $region48: #{tpu_custom_call.1} parent=1 // pred_region
      _
    $region49: #{tpu_custom_call.1} parent=1 // pred_fallthru
      _
    // Predicated region
    $region50: #{tpu_custom_call.1} parent=1 // pred_check
      _
    $region51: #{tpu_custom_call.1} parent=1 // pred_check_branch
      %44 = sbr.rel (0) target = $region53
    $region52: #{tpu_custom_call.1} parent=1 // pred_region
      _
    $region53: #{tpu_custom_call.1} parent=1 // pred_fallthru
      _
    %v46 = vld [vmem:[%s0] sm:$0xff]
    %v47 = vld [vmem:[%s0 + $0x8] sm:$0xff]
    %v48 = vpack.c.bf16 %v47, %v46
    %v49 = vld [vmem:[%s1] sm:$0xf]
    %v50 = vld [vmem:[%s1 + $0x4] sm:$0xf]
    %v51 = vld [vmem:[%s1 + $0x8] sm:$0xf]
    %v52 = vld [vmem:[%s1 + $0xc] sm:$0xf]
    %v53 = vld [vmem:[%s1 + $0x10] sm:$0xf]
    %v54 = vld [vmem:[%s2] sm:$0x1]
    %v56 = vlaneseq
    %v57 = vshrl.u32 %v56, 7
    %v58 = vsub.s32 0, %v57
    %v59 = vrot.slane %v54, %v58
    %v66 = vunpack.c.l.b16 %v49
    %v67 = vunpack.c.l.b16 %v50
    %v68 = vunpack.c.l.b16 %v51
    %v69 = vunpack.c.l.b16 %v52
    %v70 = vunpack.c.l.b16 %v53
    %v71 = vpack.c.b16 %v67, %v66
    %v72 = vpack.c.b16 %v69, %v68
    %v73 = vpack.c.b16 %v70, %v70
    %vm76 = vcmask 326656
    %v78 = vsel %vm76, %v48, 0
    %vm80 = vcmask 1043456
    %v82 = vsel %vm80, %v73, 0
    %84 = vmatprep.subr.bf16.mxu0 0
    %85 = vmatpush1.bf16.msra.mxu0 %v71
    %86 = vmatprep.subr.bf16.mxu0 0
    %87 = vmatpush1.bf16.msra.mxu0 %v72
    %88 = vmatprep.subr.bf16.mxu0 0
    %89 = vmatpush1.bf16.msra.mxu0 %v82
    %90 = vmatprep.subr.bf16.mxu0 0
    %91 = vmatpush1.bf16.msra.mxu0 0
    %92 = vmatprep.subr.bf16.mxu0 0
    %93 = vmatpush1.bf16.msra.mxu0 0
    %94 = vmatprep.subr.bf16.mxu0 0
    %95 = vmatpush1.bf16.msra.mxu0 0
    %96 = vmatprep.subr.bf16.mxu0 0
    %97 = vmatpush1.bf16.msra.mxu0 0
    %98 = vmatprep.subr.bf16.mxu0 0
    %99 = vmatpush1.bf16.msra.mxu0 0
    %100 = vmatprep.subr.bf16.mxu0 0
    %101 = vmatpush1.bf16.msra.mxu0 0
    %102 = vmatprep.subr.bf16.mxu0 0
    %103 = vmatpush1.bf16.msra.mxu0 0
    %104 = vmatprep.subr.bf16.mxu0 0
    %105 = vmatpush1.bf16.msra.mxu0 0
    %106 = vmatprep.subr.bf16.mxu0 0
    %107 = vmatpush1.bf16.msra.mxu0 0
    %108 = vmatprep.subr.bf16.mxu0 0
    %109 = vmatpush1.bf16.msra.mxu0 0
    %110 = vmatprep.subr.bf16.mxu0 0
    %111 = vmatpush1.bf16.msra.mxu0 0
    %112 = vmatprep.subr.bf16.mxu0 0
    %113 = vmatpush1.bf16.msra.mxu0 0
    %114 = vmatprep.subr.bf16.mxu0 0
    %115 = vmatpush1.bf16.msra.mxu0 0
    %116 = vmatprep.mubr.bf16.mxu0 0
    %117 = vmatmul.mubr.bf16.gmra.mrb[0].mxu0 %v78
    %v118 = vpop.f32.mrb[0].mxu0
    %v119 = vadd.f32 %v59, %v118
    %v120 = vpop.f32.mrb[0].mxu0
    %v121 = vpop.f32.mrb[0].mxu0
    %v122 = vadd.f32 %v59, %v121
    %v123 = vpop.f32.mrb[0].mxu0
    %124 = vdwg.mxu0
    %127 = vrot.lane.b32.xlu0 %v119, 124
    %v128 = vpop.permute.xlu0 %127
    %129 = vrot.lane.b32.xlu0 %v122, 124
    %v130 = vpop.permute.xlu0 %129
    %131 = vrot.lane.b32.xlu0 %v119, 120
    %v132 = vpop.permute.xlu0 %131
    %133 = vrot.lane.b32.xlu0 %v122, 120
    %v134 = vpop.permute.xlu0 %133
    %135 = vrot.lane.b32.xlu0 %v119, 116
    %v136 = vpop.permute.xlu0 %135
    %137 = vrot.lane.b32.xlu0 %v122, 116
    %v138 = vpop.permute.xlu0 %137
    %139 = vrot.lane.b32.xlu0 %v119, 112
    %v140 = vpop.permute.xlu0 %139
    %141 = vrot.lane.b32.xlu0 %v122, 112
    %v142 = vpop.permute.xlu0 %141
    %143 = vrot.lane.b32.xlu0 %v119, 108
    %v144 = vpop.permute.xlu0 %143
    %145 = vrot.lane.b32.xlu0 %v122, 108
    %v146 = vpop.permute.xlu0 %145
    %147 = vrot.lane.b32.xlu0 %v119, 104
    %v148 = vpop.permute.xlu0 %147
    %149 = vrot.lane.b32.xlu0 %v122, 104
    %v150 = vpop.permute.xlu0 %149
    %151 = vrot.lane.b32.xlu0 %v119, 100
    %v152 = vpop.permute.xlu0 %151
    %153 = vrot.lane.b32.xlu0 %v122, 100
    %v154 = vpop.permute.xlu0 %153
    %155 = vrot.lane.b32.xlu0 %v119, 96
    %v156 = vpop.permute.xlu0 %155
    %157 = vrot.lane.b32.xlu0 %v122, 96
    %v158 = vpop.permute.xlu0 %157
    %159 = vrot.lane.b32.xlu0 %v119, 92
    %v160 = vpop.permute.xlu0 %159
    %161 = vrot.lane.b32.xlu0 %v122, 92
    %v162 = vpop.permute.xlu0 %161
    %163 = vrot.lane.b32.xlu0 %v119, 88
    %v164 = vpop.permute.xlu0 %163
    %vm165 = vcmask 31744
    %v166 = vsel %vm165, %v119, 0
    %v168 = vsel %vm165, %v164, 0
    %170 = vmatprep.subr.mxu0 0.0
    %171 = vmatpush1.xpose.msra.mxu0 %v168
    %172 = vmatprep.subr.mxu0 0.0
    %173 = vmatpush1.xpose.msra.mxu0 0.0
    %174 = vmatprep.subr.mxu0 0.0
    %175 = vmatpush1.xpose.msra.mxu0 0.0
    %176 = vmatprep.subr.mxu0 0.0
    %177 = vmatpush1.xpose.msra.mxu0 0.0
    %178 = vmatprep.subr.mxu0 0.0
    %179 = vmatpush1.xpose.msra.mxu0 0.0
    %180 = vmatprep.subr.mxu0 0.0
    %181 = vmatpush1.xpose.msra.mxu0 0.0
    %182 = vmatprep.subr.mxu0 0.0
    %183 = vmatpush1.xpose.msra.mxu0 0.0
    %184 = vmatprep.subr.mxu0 0.0
    %185 = vmatpush1.xpose.msra.mxu0 0.0
    %186 = vmatprep.subr.mxu0 0.0
    %187 = vmatpush1.xpose.msra.mxu0 0.0
    %188 = vmatprep.subr.mxu0 0.0
    %189 = vmatpush1.xpose.msra.mxu0 0.0
    %190 = vmatprep.subr.mxu0 0.0
    %191 = vmatpush1.xpose.msra.mxu0 0.0
    %192 = vmatprep.subr.mxu0 0.0
    %193 = vmatpush1.xpose.msra.mxu0 0.0
    %194 = vmatprep.subr.mxu0 0.0
    %195 = vmatpush1.xpose.msra.mxu0 0.0
    %196 = vmatprep.subr.mxu0 0.0
    %197 = vmatpush1.xpose.msra.mxu0 0.0
    %198 = vmatprep.subr.mxu0 0.0
    %199 = vmatpush1.xpose.msra.mxu0 0.0
    %200 = vmatprep.subr.mxu0 0.0
    %201 = vmatpush1.xpose.msra.mxu0 0.0
    %202 = vmatprep.subr.mxu0 0.0
    %203 = vmatpush1.xpose.msra.mxu0 0.0
    %204 = vmatprep.subr.mxu0 0.0
    %205 = vmatpush1.xpose.msra.mxu0 0.0
    %206 = vmatprep.subr.mxu0 0.0
    %207 = vmatpush1.xpose.msra.mxu0 0.0
    %208 = vmatprep.subr.mxu0 0.0
    %209 = vmatpush1.xpose.msra.mxu0 0.0
    %210 = vmatprep.subr.mxu0 0.0
    %211 = vmatpush1.xpose.msra.mxu0 0.0
    %212 = vmatprep.subr.mxu0 0.0
    %213 = vmatpush1.xpose.msra.mxu0 0.0
    %214 = vmatprep.subr.mxu0 0.0
    %215 = vmatpush1.xpose.msra.mxu0 0.0
    %216 = vmatprep.subr.mxu0 0.0
    %217 = vmatpush1.xpose.msra.mxu0 0.0
    %218 = vmatprep.subr.mxu0 0.0
    %219 = vmatpush1.xpose.msra.mxu0 0.0
    %220 = vmatprep.subr.mxu0 0.0
    %221 = vmatpush1.xpose.msra.mxu0 0.0
    %222 = vmatprep.subr.mxu0 0.0
    %223 = vmatpush1.xpose.msra.mxu0 0.0
    %224 = vmatprep.subr.mxu0 0.0
    %225 = vmatpush1.xpose.msra.mxu0 0.0
    %226 = vmatprep.subr.mxu0 0.0
    %227 = vmatpush1.xpose.msra.mxu0 0.0
    %228 = vmatprep.subr.mxu0 0.0
    %229 = vmatpush1.xpose.msra.mxu0 0.0
    %230 = vmatprep.subr.mxu0 0.0
    %231 = vmatpush1.xpose.msra.mxu0 0.0
    %232 = vmatprep.subr.mxu0 0.0
    %233 = vmatpush1.xpose.msra.mxu0 0.0
    %234 = vmatprep.mubr.f32.mxu0 0.0
    %235 = vmatmul.mubr.f32.gmra.mrb[0].mxu0 %v166
    %v236 = vpop.f32.mrb[0].mxu0
    %v237 = vadd.f32 0.0, %v236
    %v238 = vpop.f32.mrb[0].mxu0
    %239 = vdwg.mxu0
    %240 = vrot.lane.b32.xlu0 %v122, 88
    %v241 = vpop.permute.xlu0 %240
    %v242 = vsel %vm165, %v122, 0
    %v244 = vsel %vm165, %v241, 0
    %246 = vmatprep.subr.mxu0 0.0
    %247 = vmatpush1.xpose.msra.mxu0 %v244
    %248 = vmatprep.subr.mxu0 0.0
    %249 = vmatpush1.xpose.msra.mxu0 0.0
    %250 = vmatprep.subr.mxu0 0.0
    %251 = vmatpush1.xpose.msra.mxu0 0.0
    %252 = vmatprep.subr.mxu0 0.0
    %253 = vmatpush1.xpose.msra.mxu0 0.0
    %254 = vmatprep.subr.mxu0 0.0
    %255 = vmatpush1.xpose.msra.mxu0 0.0
    %256 = vmatprep.subr.mxu0 0.0
    %257 = vmatpush1.xpose.msra.mxu0 0.0
    %258 = vmatprep.subr.mxu0 0.0
    %259 = vmatpush1.xpose.msra.mxu0 0.0
    %260 = vmatprep.subr.mxu0 0.0
    %261 = vmatpush1.xpose.msra.mxu0 0.0
    %262 = vmatprep.subr.mxu0 0.0
    %263 = vmatpush1.xpose.msra.mxu0 0.0
    %264 = vmatprep.subr.mxu0 0.0
    %265 = vmatpush1.xpose.msra.mxu0 0.0
    %266 = vmatprep.subr.mxu0 0.0
    %267 = vmatpush1.xpose.msra.mxu0 0.0
    %268 = vmatprep.subr.mxu0 0.0
    %269 = vmatpush1.xpose.msra.mxu0 0.0
    %270 = vmatprep.subr.mxu0 0.0
    %271 = vmatpush1.xpose.msra.mxu0 0.0
    %272 = vmatprep.subr.mxu0 0.0
    %273 = vmatpush1.xpose.msra.mxu0 0.0
    %274 = vmatprep.subr.mxu0 0.0
    %275 = vmatpush1.xpose.msra.mxu0 0.0
    %276 = vmatprep.subr.mxu0 0.0
    %277 = vmatpush1.xpose.msra.mxu0 0.0
    %278 = vmatprep.subr.mxu0 0.0
    %279 = vmatpush1.xpose.msra.mxu0 0.0
    %280 = vmatprep.subr.mxu0 0.0
    %281 = vmatpush1.xpose.msra.mxu0 0.0
    %282 = vmatprep.subr.mxu0 0.0
    %283 = vmatpush1.xpose.msra.mxu0 0.0
    %284 = vmatprep.subr.mxu0 0.0
    %285 = vmatpush1.xpose.msra.mxu0 0.0
    %286 = vmatprep.subr.mxu0 0.0
    %287 = vmatpush1.xpose.msra.mxu0 0.0
    %288 = vmatprep.subr.mxu0 0.0
    %289 = vmatpush1.xpose.msra.mxu0 0.0
    %290 = vmatprep.subr.mxu0 0.0
    %291 = vmatpush1.xpose.msra.mxu0 0.0
    %292 = vmatprep.subr.mxu0 0.0
    %293 = vmatpush1.xpose.msra.mxu0 0.0
    %294 = vmatprep.subr.mxu0 0.0
    %295 = vmatpush1.xpose.msra.mxu0 0.0
    %296 = vmatprep.subr.mxu0 0.0
    %297 = vmatpush1.xpose.msra.mxu0 0.0
    %298 = vmatprep.subr.mxu0 0.0
    %299 = vmatpush1.xpose.msra.mxu0 0.0
    %300 = vmatprep.subr.mxu0 0.0
    %301 = vmatpush1.xpose.msra.mxu0 0.0
    %302 = vmatprep.subr.mxu0 0.0
    %303 = vmatpush1.xpose.msra.mxu0 0.0
    %304 = vmatprep.subr.mxu0 0.0
    %305 = vmatpush1.xpose.msra.mxu0 0.0
    %306 = vmatprep.subr.mxu0 0.0
    %307 = vmatpush1.xpose.msra.mxu0 0.0
    %308 = vmatprep.subr.mxu0 0.0
    %309 = vmatpush1.xpose.msra.mxu0 0.0
    %310 = vmatprep.mubr.f32.mxu0 0.0
    %311 = vmatmul.mubr.f32.gmra.mrb[0].mxu0 %v242
    %v312 = vpop.f32.mrb[0].mxu0
    %v313 = vadd.f32 0.0, %v312
    %v314 = vpop.f32.mrb[0].mxu0
    %315 = vdwg.mxu0
    %316 = vrot.lane.b32.xlu0 %v128, 88
    %v317 = vpop.permute.xlu0 %316
    %v318 = vsel %vm165, %v128, 0
    %v320 = vsel %vm165, %v317, 0
    %322 = vmatprep.subr.mxu0 0.0
    %323 = vmatpush1.xpose.msra.mxu0 %v320
    %324 = vmatprep.subr.mxu0 0.0
    %325 = vmatpush1.xpose.msra.mxu0 0.0
    %326 = vmatprep.subr.mxu0 0.0
    %327 = vmatpush1.xpose.msra.mxu0 0.0
    %328 = vmatprep.subr.mxu0 0.0
    %329 = vmatpush1.xpose.msra.mxu0 0.0
    %330 = vmatprep.subr.mxu0 0.0
    %331 = vmatpush1.xpose.msra.mxu0 0.0
    %332 = vmatprep.subr.mxu0 0.0
    %333 = vmatpush1.xpose.msra.mxu0 0.0
    %334 = vmatprep.subr.mxu0 0.0
    %335 = vmatpush1.xpose.msra.mxu0 0.0
    %336 = vmatprep.subr.mxu0 0.0
    %337 = vmatpush1.xpose.msra.mxu0 0.0
    %338 = vmatprep.subr.mxu0 0.0
    %339 = vmatpush1.xpose.msra.mxu0 0.0
    %340 = vmatprep.subr.mxu0 0.0
    %341 = vmatpush1.xpose.msra.mxu0 0.0
    %342 = vmatprep.subr.mxu0 0.0
    %343 = vmatpush1.xpose.msra.mxu0 0.0
    %344 = vmatprep.subr.mxu0 0.0
    %345 = vmatpush1.xpose.msra.mxu0 0.0
    %346 = vmatprep.subr.mxu0 0.0
    %347 = vmatpush1.xpose.msra.mxu0 0.0
    %348 = vmatprep.subr.mxu0 0.0
    %349 = vmatpush1.xpose.msra.mxu0 0.0
    %350 = vmatprep.subr.mxu0 0.0
    %351 = vmatpush1.xpose.msra.mxu0 0.0
    %352 = vmatprep.subr.mxu0 0.0
    %353 = vmatpush1.xpose.msra.mxu0 0.0
    %354 = vmatprep.subr.mxu0 0.0
    %355 = vmatpush1.xpose.msra.mxu0 0.0
    %356 = vmatprep.subr.mxu0 0.0
    %357 = vmatpush1.xpose.msra.mxu0 0.0
    %358 = vmatprep.subr.mxu0 0.0
    %359 = vmatpush1.xpose.msra.mxu0 0.0
    %360 = vmatprep.subr.mxu0 0.0
    %361 = vmatpush1.xpose.msra.mxu0 0.0
    %362 = vmatprep.subr.mxu0 0.0
    %363 = vmatpush1.xpose.msra.mxu0 0.0
    %364 = vmatprep.subr.mxu0 0.0
    %365 = vmatpush1.xpose.msra.mxu0 0.0
    %366 = vmatprep.subr.mxu0 0.0
    %367 = vmatpush1.xpose.msra.mxu0 0.0
    %368 = vmatprep.subr.mxu0 0.0
    %369 = vmatpush1.xpose.msra.mxu0 0.0
    %370 = vmatprep.subr.mxu0 0.0
    %371 = vmatpush1.xpose.msra.mxu0 0.0
    %372 = vmatprep.subr.mxu0 0.0
    %373 = vmatpush1.xpose.msra.mxu0 0.0
    %374 = vmatprep.subr.mxu0 0.0
    %375 = vmatpush1.xpose.msra.mxu0 0.0
    %376 = vmatprep.subr.mxu0 0.0
    %377 = vmatpush1.xpose.msra.mxu0 0.0
    %378 = vmatprep.subr.mxu0 0.0
    %379 = vmatpush1.xpose.msra.mxu0 0.0
    %380 = vmatprep.subr.mxu0 0.0
    %381 = vmatpush1.xpose.msra.mxu0 0.0
    %382 = vmatprep.subr.mxu0 0.0
    %383 = vmatpush1.xpose.msra.mxu0 0.0
    %384 = vmatprep.subr.mxu0 0.0
    %385 = vmatpush1.xpose.msra.mxu0 0.0
    %386 = vmatprep.mubr.f32.mxu0 0.0
    %387 = vmatmul.mubr.f32.gmra.mrb[0].mxu0 %v318
    %v388 = vpop.f32.mrb[0].mxu0
    %v389 = vadd.f32 0.0, %v388
    %v390 = vpop.f32.mrb[0].mxu0
    %391 = vdwg.mxu0
    %392 = vrot.lane.b32.xlu0 %v130, 88
    %v393 = vpop.permute.xlu0 %392
    %v394 = vsel %vm165, %v130, 0
    %v396 = vsel %vm165, %v393, 0
    %398 = vmatprep.subr.mxu0 0.0
    %399 = vmatpush1.xpose.msra.mxu0 %v396
    %400 = vmatprep.subr.mxu0 0.0
    %401 = vmatpush1.xpose.msra.mxu0 0.0
    %402 = vmatprep.subr.mxu0 0.0
    %403 = vmatpush1.xpose.msra.mxu0 0.0
    %404 = vmatprep.subr.mxu0 0.0
    %405 = vmatpush1.xpose.msra.mxu0 0.0
    %406 = vmatprep.subr.mxu0 0.0
    %407 = vmatpush1.xpose.msra.mxu0 0.0
    %408 = vmatprep.subr.mxu0 0.0
    %409 = vmatpush1.xpose.msra.mxu0 0.0
    %410 = vmatprep.subr.mxu0 0.0
    %411 = vmatpush1.xpose.msra.mxu0 0.0
    %412 = vmatprep.subr.mxu0 0.0
    %413 = vmatpush1.xpose.msra.mxu0 0.0
    %414 = vmatprep.subr.mxu0 0.0
    %415 = vmatpush1.xpose.msra.mxu0 0.0
    %416 = vmatprep.subr.mxu0 0.0
    %417 = vmatpush1.xpose.msra.mxu0 0.0
    %418 = vmatprep.subr.mxu0 0.0
    %419 = vmatpush1.xpose.msra.mxu0 0.0
    %420 = vmatprep.subr.mxu0 0.0
    %421 = vmatpush1.xpose.msra.mxu0 0.0
    %422 = vmatprep.subr.mxu0 0.0
    %423 = vmatpush1.xpose.msra.mxu0 0.0
    %424 = vmatprep.subr.mxu0 0.0
    %425 = vmatpush1.xpose.msra.mxu0 0.0
    %426 = vmatprep.subr.mxu0 0.0
    %427 = vmatpush1.xpose.msra.mxu0 0.0
    %428 = vmatprep.subr.mxu0 0.0
    %429 = vmatpush1.xpose.msra.mxu0 0.0
    %430 = vmatprep.subr.mxu0 0.0
    %431 = vmatpush1.xpose.msra.mxu0 0.0
    %432 = vmatprep.subr.mxu0 0.0
    %433 = vmatpush1.xpose.msra.mxu0 0.0
    %434 = vmatprep.subr.mxu0 0.0
    %435 = vmatpush1.xpose.msra.mxu0 0.0
    %436 = vmatprep.subr.mxu0 0.0
    %437 = vmatpush1.xpose.msra.mxu0 0.0
    %438 = vmatprep.subr.mxu0 0.0
    %439 = vmatpush1.xpose.msra.mxu0 0.0
    %440 = vmatprep.subr.mxu0 0.0
    %441 = vmatpush1.xpose.msra.mxu0 0.0
    %442 = vmatprep.subr.mxu0 0.0
    %443 = vmatpush1.xpose.msra.mxu0 0.0
    %444 = vmatprep.subr.mxu0 0.0
    %445 = vmatpush1.xpose.msra.mxu0 0.0
    %446 = vmatprep.subr.mxu0 0.0
    %447 = vmatpush1.xpose.msra.mxu0 0.0
    %448 = vmatprep.subr.mxu0 0.0
    %449 = vmatpush1.xpose.msra.mxu0 0.0
    %450 = vmatprep.subr.mxu0 0.0
    %451 = vmatpush1.xpose.msra.mxu0 0.0
    %452 = vmatprep.subr.mxu0 0.0
    %453 = vmatpush1.xpose.msra.mxu0 0.0
    %454 = vmatprep.subr.mxu0 0.0
    %455 = vmatpush1.xpose.msra.mxu0 0.0
    %456 = vmatprep.subr.mxu0 0.0
    %457 = vmatpush1.xpose.msra.mxu0 0.0
    %458 = vmatprep.subr.mxu0 0.0
    %459 = vmatpush1.xpose.msra.mxu0 0.0
    %460 = vmatprep.subr.mxu0 0.0
    %461 = vmatpush1.xpose.msra.mxu0 0.0
    %462 = vmatprep.mubr.f32.mxu0 0.0
    %463 = vmatmul.mubr.f32.gmra.mrb[0].mxu0 %v394
    %v464 = vpop.f32.mrb[0].mxu0
    %v465 = vadd.f32 0.0, %v464
    %v466 = vpop.f32.mrb[0].mxu0
    %467 = vdwg.mxu0
    %468 = vrot.lane.b32.xlu0 %v132, 88
    %v469 = vpop.permute.xlu0 %468
    %v470 = vsel %vm165, %v132, 0
    %v472 = vsel %vm165, %v469, 0
    %474 = vmatprep.subr.mxu0 0.0
    %475 = vmatpush1.xpose.msra.mxu0 %v472
    %476 = vmatprep.subr.mxu0 0.0
    %477 = vmatpush1.xpose.msra.mxu0 0.0
    %478 = vmatprep.subr.mxu0 0.0
    %479 = vmatpush1.xpose.msra.mxu0 0.0
    %480 = vmatprep.subr.mxu0 0.0
    %481 = vmatpush1.xpose.msra.mxu0 0.0
    %482 = vmatprep.subr.mxu0 0.0
    %483 = vmatpush1.xpose.msra.mxu0 0.0
    %484 = vmatprep.subr.mxu0 0.0
    %485 = vmatpush1.xpose.msra.mxu0 0.0
    %486 = vmatprep.subr.mxu0 0.0
    %487 = vmatpush1.xpose.msra.mxu0 0.0
    %488 = vmatprep.subr.mxu0 0.0
    %489 = vmatpush1.xpose.msra.mxu0 0.0
    %490 = vmatprep.subr.mxu0 0.0
    %491 = vmatpush1.xpose.msra.mxu0 0.0
    %492 = vmatprep.subr.mxu0 0.0
    %493 = vmatpush1.xpose.msra.mxu0 0.0
    %494 = vmatprep.subr.mxu0 0.0
    %495 = vmatpush1.xpose.msra.mxu0 0.0
    %496 = vmatprep.subr.mxu0 0.0
    %497 = vmatpush1.xpose.msra.mxu0 0.0
    %498 = vmatprep.subr.mxu0 0.0
    %499 = vmatpush1.xpose.msra.mxu0 0.0
    %500 = vmatprep.subr.mxu0 0.0
    %501 = vmatpush1.xpose.msra.mxu0 0.0
    %502 = vmatprep.subr.mxu0 0.0
    %503 = vmatpush1.xpose.msra.mxu0 0.0
    %504 = vmatprep.subr.mxu0 0.0
    %505 = vmatpush1.xpose.msra.mxu0 0.0
    %506 = vmatprep.subr.mxu0 0.0
    %507 = vmatpush1.xpose.msra.mxu0 0.0
    %508 = vmatprep.subr.mxu0 0.0
    %509 = vmatpush1.xpose.msra.mxu0 0.0
    %510 = vmatprep.subr.mxu0 0.0
    %511 = vmatpush1.xpose.msra.mxu0 0.0
    %512 = vmatprep.subr.mxu0 0.0
    %513 = vmatpush1.xpose.msra.mxu0 0.0
    %514 = vmatprep.subr.mxu0 0.0
    %515 = vmatpush1.xpose.msra.mxu0 0.0
    %516 = vmatprep.subr.mxu0 0.0
    %517 = vmatpush1.xpose.msra.mxu0 0.0
    %518 = vmatprep.subr.mxu0 0.0
    %519 = vmatpush1.xpose.msra.mxu0 0.0
    %520 = vmatprep.subr.mxu0 0.0
    %521 = vmatpush1.xpose.msra.mxu0 0.0
    %522 = vmatprep.subr.mxu0 0.0
    %523 = vmatpush1.xpose.msra.mxu0 0.0
    %524 = vmatprep.subr.mxu0 0.0
    %525 = vmatpush1.xpose.msra.mxu0 0.0
    %526 = vmatprep.subr.mxu0 0.0
    %527 = vmatpush1.xpose.msra.mxu0 0.0
    %528 = vmatprep.subr.mxu0 0.0
    %529 = vmatpush1.xpose.msra.mxu0 0.0
    %530 = vmatprep.subr.mxu0 0.0
    %531 = vmatpush1.xpose.msra.mxu0 0.0
    %532 = vmatprep.subr.mxu0 0.0
    %533 = vmatpush1.xpose.msra.mxu0 0.0
    %534 = vmatprep.subr.mxu0 0.0
    %535 = vmatpush1.xpose.msra.mxu0 0.0
    %536 = vmatprep.subr.mxu0 0.0
    %537 = vmatpush1.xpose.msra.mxu0 0.0
    %538 = vmatprep.mubr.f32.mxu0 0.0
    %539 = vmatmul.mubr.f32.gmra.mrb[0].mxu0 %v470
    %v540 = vpop.f32.mrb[0].mxu0
    %v541 = vadd.f32 0.0, %v540
    %v542 = vpop.f32.mrb[0].mxu0
    %543 = vdwg.mxu0
    %544 = vrot.lane.b32.xlu0 %v134, 88
    %v545 = vpop.permute.xlu0 %544
    %v546 = vsel %vm165, %v134, 0
    %v548 = vsel %vm165, %v545, 0
    %550 = vmatprep.subr.mxu0 0.0
    %551 = vmatpush1.xpose.msra.mxu0 %v548
    %552 = vmatprep.subr.mxu0 0.0
    %553 = vmatpush1.xpose.msra.mxu0 0.0
    %554 = vmatprep.subr.mxu0 0.0
    %555 = vmatpush1.xpose.msra.mxu0 0.0
    %556 = vmatprep.subr.mxu0 0.0
    %557 = vmatpush1.xpose.msra.mxu0 0.0
    %558 = vmatprep.subr.mxu0 0.0
    %559 = vmatpush1.xpose.msra.mxu0 0.0
    %560 = vmatprep.subr.mxu0 0.0
    %561 = vmatpush1.xpose.msra.mxu0 0.0
    %562 = vmatprep.subr.mxu0 0.0
    %563 = vmatpush1.xpose.msra.mxu0 0.0
    %564 = vmatprep.subr.mxu0 0.0
    %565 = vmatpush1.xpose.msra.mxu0 0.0
    %566 = vmatprep.subr.mxu0 0.0
    %567 = vmatpush1.xpose.msra.mxu0 0.0
    %568 = vmatprep.subr.mxu0 0.0
    %569 = vmatpush1.xpose.msra.mxu0 0.0
    %570 = vmatprep.subr.mxu0 0.0
    %571 = vmatpush1.xpose.msra.mxu0 0.0
    %572 = vmatprep.subr.mxu0 0.0
    %573 = vmatpush1.xpose.msra.mxu0 0.0
    %574 = vmatprep.subr.mxu0 0.0
    %575 = vmatpush1.xpose.msra.mxu0 0.0
    %576 = vmatprep.subr.mxu0 0.0
    %577 = vmatpush1.xpose.msra.mxu0 0.0
    %578 = vmatprep.subr.mxu0 0.0
    %579 = vmatpush1.xpose.msra.mxu0 0.0
    %580 = vmatprep.subr.mxu0 0.0
    %581 = vmatpush1.xpose.msra.mxu0 0.0
    %582 = vmatprep.subr.mxu0 0.0
    %583 = vmatpush1.xpose.msra.mxu0 0.0
    %584 = vmatprep.subr.mxu0 0.0
    %585 = vmatpush1.xpose.msra.mxu0 0.0
    %586 = vmatprep.subr.mxu0 0.0
    %587 = vmatpush1.xpose.msra.mxu0 0.0
    %588 = vmatprep.subr.mxu0 0.0
    %589 = vmatpush1.xpose.msra.mxu0 0.0
    %590 = vmatprep.subr.mxu0 0.0
    %591 = vmatpush1.xpose.msra.mxu0 0.0
    %592 = vmatprep.subr.mxu0 0.0
    %593 = vmatpush1.xpose.msra.mxu0 0.0
    %594 = vmatprep.subr.mxu0 0.0
    %595 = vmatpush1.xpose.msra.mxu0 0.0
    %596 = vmatprep.subr.mxu0 0.0
    %597 = vmatpush1.xpose.msra.mxu0 0.0
    %598 = vmatprep.subr.mxu0 0.0
    %599 = vmatpush1.xpose.msra.mxu0 0.0
    %600 = vmatprep.subr.mxu0 0.0
    %601 = vmatpush1.xpose.msra.mxu0 0.0
    %602 = vmatprep.subr.mxu0 0.0
    %603 = vmatpush1.xpose.msra.mxu0 0.0
    %604 = vmatprep.subr.mxu0 0.0
    %605 = vmatpush1.xpose.msra.mxu0 0.0
    %606 = vmatprep.subr.mxu0 0.0
    %607 = vmatpush1.xpose.msra.mxu0 0.0
    %608 = vmatprep.subr.mxu0 0.0
    %609 = vmatpush1.xpose.msra.mxu0 0.0
    %610 = vmatprep.subr.mxu0 0.0
    %611 = vmatpush1.xpose.msra.mxu0 0.0
    %612 = vmatprep.subr.mxu0 0.0
    %613 = vmatpush1.xpose.msra.mxu0 0.0
    %614 = vmatprep.mubr.f32.mxu0 0.0
    %615 = vmatmul.mubr.f32.gmra.mrb[0].mxu0 %v546
    %v616 = vpop.f32.mrb[0].mxu0
    %v617 = vadd.f32 0.0, %v616
    %v618 = vpop.f32.mrb[0].mxu0
    %619 = vdwg.mxu0
    %620 = vrot.lane.b32.xlu0 %v136, 88
    %v621 = vpop.permute.xlu0 %620
    %v622 = vsel %vm165, %v136, 0
    %v624 = vsel %vm165, %v621, 0
    %626 = vmatprep.subr.mxu0 0.0
    %627 = vmatpush1.xpose.msra.mxu0 %v624
    %628 = vmatprep.subr.mxu0 0.0
    %629 = vmatpush1.xpose.msra.mxu0 0.0
    %630 = vmatprep.subr.mxu0 0.0
    %631 = vmatpush1.xpose.msra.mxu0 0.0
    %632 = vmatprep.subr.mxu0 0.0
    %633 = vmatpush1.xpose.msra.mxu0 0.0
    %634 = vmatprep.subr.mxu0 0.0
    %635 = vmatpush1.xpose.msra.mxu0 0.0
    %636 = vmatprep.subr.mxu0 0.0
    %637 = vmatpush1.xpose.msra.mxu0 0.0
    %638 = vmatprep.subr.mxu0 0.0
    %639 = vmatpush1.xpose.msra.mxu0 0.0
    %640 = vmatprep.subr.mxu0 0.0
    %641 = vmatpush1.xpose.msra.mxu0 0.0
    %642 = vmatprep.subr.mxu0 0.0
    %643 = vmatpush1.xpose.msra.mxu0 0.0
    %644 = vmatprep.subr.mxu0 0.0
    %645 = vmatpush1.xpose.msra.mxu0 0.0
    %646 = vmatprep.subr.mxu0 0.0
    %647 = vmatpush1.xpose.msra.mxu0 0.0
    %648 = vmatprep.subr.mxu0 0.0
    %649 = vmatpush1.xpose.msra.mxu0 0.0
    %650 = vmatprep.subr.mxu0 0.0
    %651 = vmatpush1.xpose.msra.mxu0 0.0
    %652 = vmatprep.subr.mxu0 0.0
    %653 = vmatpush1.xpose.msra.mxu0 0.0
    %654 = vmatprep.subr.mxu0 0.0
    %655 = vmatpush1.xpose.msra.mxu0 0.0
    %656 = vmatprep.subr.mxu0 0.0
    %657 = vmatpush1.xpose.msra.mxu0 0.0
    %658 = vmatprep.subr.mxu0 0.0
    %659 = vmatpush1.xpose.msra.mxu0 0.0
    %660 = vmatprep.subr.mxu0 0.0
    %661 = vmatpush1.xpose.msra.mxu0 0.0
    %662 = vmatprep.subr.mxu0 0.0
    %663 = vmatpush1.xpose.msra.mxu0 0.0
    %664 = vmatprep.subr.mxu0 0.0
    %665 = vmatpush1.xpose.msra.mxu0 0.0
    %666 = vmatprep.subr.mxu0 0.0
    %667 = vmatpush1.xpose.msra.mxu0 0.0
    %668 = vmatprep.subr.mxu0 0.0
    %669 = vmatpush1.xpose.msra.mxu0 0.0
    %670 = vmatprep.subr.mxu0 0.0
    %671 = vmatpush1.xpose.msra.mxu0 0.0
    %672 = vmatprep.subr.mxu0 0.0
    %673 = vmatpush1.xpose.msra.mxu0 0.0
    %674 = vmatprep.subr.mxu0 0.0
    %675 = vmatpush1.xpose.msra.mxu0 0.0
    %676 = vmatprep.subr.mxu0 0.0
    %677 = vmatpush1.xpose.msra.mxu0 0.0
    %678 = vmatprep.subr.mxu0 0.0
    %679 = vmatpush1.xpose.msra.mxu0 0.0
    %680 = vmatprep.subr.mxu0 0.0
    %681 = vmatpush1.xpose.msra.mxu0 0.0
    %682 = vmatprep.subr.mxu0 0.0
    %683 = vmatpush1.xpose.msra.mxu0 0.0
    %684 = vmatprep.subr.mxu0 0.0
    %685 = vmatpush1.xpose.msra.mxu0 0.0
    %686 = vmatprep.subr.mxu0 0.0
    %687 = vmatpush1.xpose.msra.mxu0 0.0
    %688 = vmatprep.subr.mxu0 0.0
    %689 = vmatpush1.xpose.msra.mxu0 0.0
    %690 = vmatprep.mubr.f32.mxu0 0.0
    %691 = vmatmul.mubr.f32.gmra.mrb[0].mxu0 %v622
    %v692 = vpop.f32.mrb[0].mxu0
    %v693 = vadd.f32 0.0, %v692
    %v694 = vpop.f32.mrb[0].mxu0
    %695 = vdwg.mxu0
    %696 = vrot.lane.b32.xlu0 %v138, 88
    %v697 = vpop.permute.xlu0 %696
    %v698 = vsel %vm165, %v138, 0
    %v700 = vsel %vm165, %v697, 0
    %702 = vmatprep.subr.mxu0 0.0
    %703 = vmatpush1.xpose.msra.mxu0 %v700
    %704 = vmatprep.subr.mxu0 0.0
    %705 = vmatpush1.xpose.msra.mxu0 0.0
    %706 = vmatprep.subr.mxu0 0.0
    %707 = vmatpush1.xpose.msra.mxu0 0.0
    %708 = vmatprep.subr.mxu0 0.0
    %709 = vmatpush1.xpose.msra.mxu0 0.0
    %710 = vmatprep.subr.mxu0 0.0
    %711 = vmatpush1.xpose.msra.mxu0 0.0
    %712 = vmatprep.subr.mxu0 0.0
    %713 = vmatpush1.xpose.msra.mxu0 0.0
    %714 = vmatprep.subr.mxu0 0.0
    %715 = vmatpush1.xpose.msra.mxu0 0.0
    %716 = vmatprep.subr.mxu0 0.0
    %717 = vmatpush1.xpose.msra.mxu0 0.0
    %718 = vmatprep.subr.mxu0 0.0
    %719 = vmatpush1.xpose.msra.mxu0 0.0
    %720 = vmatprep.subr.mxu0 0.0
    %721 = vmatpush1.xpose.msra.mxu0 0.0
    %722 = vmatprep.subr.mxu0 0.0
    %723 = vmatpush1.xpose.msra.mxu0 0.0
    %724 = vmatprep.subr.mxu0 0.0
    %725 = vmatpush1.xpose.msra.mxu0 0.0
    %726 = vmatprep.subr.mxu0 0.0
    %727 = vmatpush1.xpose.msra.mxu0 0.0
    %728 = vmatprep.subr.mxu0 0.0
    %729 = vmatpush1.xpose.msra.mxu0 0.0
    %730 = vmatprep.subr.mxu0 0.0
    %731 = vmatpush1.xpose.msra.mxu0 0.0
    %732 = vmatprep.subr.mxu0 0.0
    %733 = vmatpush1.xpose.msra.mxu0 0.0
    %734 = vmatprep.subr.mxu0 0.0
    %735 = vmatpush1.xpose.msra.mxu0 0.0
    %736 = vmatprep.subr.mxu0 0.0
    %737 = vmatpush1.xpose.msra.mxu0 0.0
    %738 = vmatprep.subr.mxu0 0.0
    %739 = vmatpush1.xpose.msra.mxu0 0.0
    %740 = vmatprep.subr.mxu0 0.0
    %741 = vmatpush1.xpose.msra.mxu0 0.0
    %742 = vmatprep.subr.mxu0 0.0
    %743 = vmatpush1.xpose.msra.mxu0 0.0
    %744 = vmatprep.subr.mxu0 0.0
    %745 = vmatpush1.xpose.msra.mxu0 0.0
    %746 = vmatprep.subr.mxu0 0.0
    %747 = vmatpush1.xpose.msra.mxu0 0.0
    %748 = vmatprep.subr.mxu0 0.0
    %749 = vmatpush1.xpose.msra.mxu0 0.0
    %750 = vmatprep.subr.mxu0 0.0
    %751 = vmatpush1.xpose.msra.mxu0 0.0
    %752 = vmatprep.subr.mxu0 0.0
    %753 = vmatpush1.xpose.msra.mxu0 0.0
    %754 = vmatprep.subr.mxu0 0.0
    %755 = vmatpush1.xpose.msra.mxu0 0.0
    %756 = vmatprep.subr.mxu0 0.0
    %757 = vmatpush1.xpose.msra.mxu0 0.0
    %758 = vmatprep.subr.mxu0 0.0
    %759 = vmatpush1.xpose.msra.mxu0 0.0
    %760 = vmatprep.subr.mxu0 0.0
    %761 = vmatpush1.xpose.msra.mxu0 0.0
    %762 = vmatprep.subr.mxu0 0.0
    %763 = vmatpush1.xpose.msra.mxu0 0.0
    %764 = vmatprep.subr.mxu0 0.0
    %765 = vmatpush1.xpose.msra.mxu0 0.0
    %766 = vmatprep.mubr.f32.mxu0 0.0
    %767 = vmatmul.mubr.f32.gmra.mrb[0].mxu0 %v698
    %v768 = vpop.f32.mrb[0].mxu0
    %v769 = vadd.f32 0.0, %v768
    %v770 = vpop.f32.mrb[0].mxu0
    %771 = vdwg.mxu0
    %772 = vrot.lane.b32.xlu0 %v140, 88
    %v773 = vpop.permute.xlu0 %772
    %v774 = vsel %vm165, %v140, 0
    %v776 = vsel %vm165, %v773, 0
    %778 = vmatprep.subr.mxu0 0.0
    %779 = vmatpush1.xpose.msra.mxu0 %v776
    %780 = vmatprep.subr.mxu0 0.0
    %781 = vmatpush1.xpose.msra.mxu0 0.0
    %782 = vmatprep.subr.mxu0 0.0
    %783 = vmatpush1.xpose.msra.mxu0 0.0
    %784 = vmatprep.subr.mxu0 0.0
    %785 = vmatpush1.xpose.msra.mxu0 0.0
    %786 = vmatprep.subr.mxu0 0.0
    %787 = vmatpush1.xpose.msra.mxu0 0.0
    %788 = vmatprep.subr.mxu0 0.0
    %789 = vmatpush1.xpose.msra.mxu0 0.0
    %790 = vmatprep.subr.mxu0 0.0
    %791 = vmatpush1.xpose.msra.mxu0 0.0
    %792 = vmatprep.subr.mxu0 0.0
    %793 = vmatpush1.xpose.msra.mxu0 0.0
    %794 = vmatprep.subr.mxu0 0.0
    %795 = vmatpush1.xpose.msra.mxu0 0.0
    %796 = vmatprep.subr.mxu0 0.0
    %797 = vmatpush1.xpose.msra.mxu0 0.0
    %798 = vmatprep.subr.mxu0 0.0
    %799 = vmatpush1.xpose.msra.mxu0 0.0
    %800 = vmatprep.subr.mxu0 0.0
    %801 = vmatpush1.xpose.msra.mxu0 0.0
    %802 = vmatprep.subr.mxu0 0.0
    %803 = vmatpush1.xpose.msra.mxu0 0.0
    %804 = vmatprep.subr.mxu0 0.0
    %805 = vmatpush1.xpose.msra.mxu0 0.0
    %806 = vmatprep.subr.mxu0 0.0
    %807 = vmatpush1.xpose.msra.mxu0 0.0
    %808 = vmatprep.subr.mxu0 0.0
    %809 = vmatpush1.xpose.msra.mxu0 0.0
    %810 = vmatprep.subr.mxu0 0.0
    %811 = vmatpush1.xpose.msra.mxu0 0.0
    %812 = vmatprep.subr.mxu0 0.0
    %813 = vmatpush1.xpose.msra.mxu0 0.0
    %814 = vmatprep.subr.mxu0 0.0
    %815 = vmatpush1.xpose.msra.mxu0 0.0
    %816 = vmatprep.subr.mxu0 0.0
    %817 = vmatpush1.xpose.msra.mxu0 0.0
    %818 = vmatprep.subr.mxu0 0.0
    %819 = vmatpush1.xpose.msra.mxu0 0.0
    %820 = vmatprep.subr.mxu0 0.0
    %821 = vmatpush1.xpose.msra.mxu0 0.0
    %822 = vmatprep.subr.mxu0 0.0
    %823 = vmatpush1.xpose.msra.mxu0 0.0
    %824 = vmatprep.subr.mxu0 0.0
    %825 = vmatpush1.xpose.msra.mxu0 0.0
    %826 = vmatprep.subr.mxu0 0.0
    %827 = vmatpush1.xpose.msra.mxu0 0.0
    %828 = vmatprep.subr.mxu0 0.0
    %829 = vmatpush1.xpose.msra.mxu0 0.0
    %830 = vmatprep.subr.mxu0 0.0
    %831 = vmatpush1.xpose.msra.mxu0 0.0
    %832 = vmatprep.subr.mxu0 0.0
    %833 = vmatpush1.xpose.msra.mxu0 0.0
    %834 = vmatprep.subr.mxu0 0.0
    %835 = vmatpush1.xpose.msra.mxu0 0.0
    %836 = vmatprep.subr.mxu0 0.0
    %837 = vmatpush1.xpose.msra.mxu0 0.0
    %838 = vmatprep.subr.mxu0 0.0
    %839 = vmatpush1.xpose.msra.mxu0 0.0
    %840 = vmatprep.subr.mxu0 0.0
    %841 = vmatpush1.xpose.msra.mxu0 0.0
    %842 = vmatprep.mubr.f32.mxu0 0.0
    %843 = vmatmul.mubr.f32.gmra.mrb[0].mxu0 %v774
    %v844 = vpop.f32.mrb[0].mxu0
    %v845 = vadd.f32 0.0, %v844
    %v846 = vpop.f32.mrb[0].mxu0
    %847 = vdwg.mxu0
    %848 = vrot.lane.b32.xlu0 %v142, 88
    %v849 = vpop.permute.xlu0 %848
    %v850 = vsel %vm165, %v142, 0
    %v852 = vsel %vm165, %v849, 0
    %854 = vmatprep.subr.mxu0 0.0
    %855 = vmatpush1.xpose.msra.mxu0 %v852
    %856 = vmatprep.subr.mxu0 0.0
    %857 = vmatpush1.xpose.msra.mxu0 0.0
    %858 = vmatprep.subr.mxu0 0.0
    %859 = vmatpush1.xpose.msra.mxu0 0.0
    %860 = vmatprep.subr.mxu0 0.0
    %861 = vmatpush1.xpose.msra.mxu0 0.0
    %862 = vmatprep.subr.mxu0 0.0
    %863 = vmatpush1.xpose.msra.mxu0 0.0
    %864 = vmatprep.subr.mxu0 0.0
    %865 = vmatpush1.xpose.msra.mxu0 0.0
    %866 = vmatprep.subr.mxu0 0.0
    %867 = vmatpush1.xpose.msra.mxu0 0.0
    %868 = vmatprep.subr.mxu0 0.0
    %869 = vmatpush1.xpose.msra.mxu0 0.0
    %870 = vmatprep.subr.mxu0 0.0
    %871 = vmatpush1.xpose.msra.mxu0 0.0
    %872 = vmatprep.subr.mxu0 0.0
    %873 = vmatpush1.xpose.msra.mxu0 0.0
    %874 = vmatprep.subr.mxu0 0.0
    %875 = vmatpush1.xpose.msra.mxu0 0.0
    %876 = vmatprep.subr.mxu0 0.0
    %877 = vmatpush1.xpose.msra.mxu0 0.0
    %878 = vmatprep.subr.mxu0 0.0
    %879 = vmatpush1.xpose.msra.mxu0 0.0
    %880 = vmatprep.subr.mxu0 0.0
    %881 = vmatpush1.xpose.msra.mxu0 0.0
    %882 = vmatprep.subr.mxu0 0.0
    %883 = vmatpush1.xpose.msra.mxu0 0.0
    %884 = vmatprep.subr.mxu0 0.0
    %885 = vmatpush1.xpose.msra.mxu0 0.0
    %886 = vmatprep.subr.mxu0 0.0
    %887 = vmatpush1.xpose.msra.mxu0 0.0
    %888 = vmatprep.subr.mxu0 0.0
    %889 = vmatpush1.xpose.msra.mxu0 0.0
    %890 = vmatprep.subr.mxu0 0.0
    %891 = vmatpush1.xpose.msra.mxu0 0.0
    %892 = vmatprep.subr.mxu0 0.0
    %893 = vmatpush1.xpose.msra.mxu0 0.0
    %894 = vmatprep.subr.mxu0 0.0
    %895 = vmatpush1.xpose.msra.mxu0 0.0
    %896 = vmatprep.subr.mxu0 0.0
    %897 = vmatpush1.xpose.msra.mxu0 0.0
    %898 = vmatprep.subr.mxu0 0.0
    %899 = vmatpush1.xpose.msra.mxu0 0.0
    %900 = vmatprep.subr.mxu0 0.0
    %901 = vmatpush1.xpose.msra.mxu0 0.0
    %902 = vmatprep.subr.mxu0 0.0
    %903 = vmatpush1.xpose.msra.mxu0 0.0
    %904 = vmatprep.subr.mxu0 0.0
    %905 = vmatpush1.xpose.msra.mxu0 0.0
    %906 = vmatprep.subr.mxu0 0.0
    %907 = vmatpush1.xpose.msra.mxu0 0.0
    %908 = vmatprep.subr.mxu0 0.0
    %909 = vmatpush1.xpose.msra.mxu0 0.0
    %910 = vmatprep.subr.mxu0 0.0
    %911 = vmatpush1.xpose.msra.mxu0 0.0
    %912 = vmatprep.subr.mxu0 0.0
    %913 = vmatpush1.xpose.msra.mxu0 0.0
    %914 = vmatprep.subr.mxu0 0.0
    %915 = vmatpush1.xpose.msra.mxu0 0.0
    %916 = vmatprep.subr.mxu0 0.0
    %917 = vmatpush1.xpose.msra.mxu0 0.0
    %918 = vmatprep.mubr.f32.mxu0 0.0
    %919 = vmatmul.mubr.f32.gmra.mrb[0].mxu0 %v850
    %v920 = vpop.f32.mrb[0].mxu0
    %v921 = vadd.f32 0.0, %v920
    %v922 = vpop.f32.mrb[0].mxu0
    %923 = vdwg.mxu0
    %924 = vrot.lane.b32.xlu0 %v144, 88
    %v925 = vpop.permute.xlu0 %924
    %v926 = vsel %vm165, %v144, 0
    %v928 = vsel %vm165, %v925, 0
    %930 = vmatprep.subr.mxu0 0.0
    %931 = vmatpush1.xpose.msra.mxu0 %v928
    %932 = vmatprep.subr.mxu0 0.0
    %933 = vmatpush1.xpose.msra.mxu0 0.0
    %934 = vmatprep.subr.mxu0 0.0
    %935 = vmatpush1.xpose.msra.mxu0 0.0
    %936 = vmatprep.subr.mxu0 0.0
    %937 = vmatpush1.xpose.msra.mxu0 0.0
    %938 = vmatprep.subr.mxu0 0.0
    %939 = vmatpush1.xpose.msra.mxu0 0.0
    %940 = vmatprep.subr.mxu0 0.0
    %941 = vmatpush1.xpose.msra.mxu0 0.0
    %942 = vmatprep.subr.mxu0 0.0
    %943 = vmatpush1.xpose.msra.mxu0 0.0
    %944 = vmatprep.subr.mxu0 0.0
    %945 = vmatpush1.xpose.msra.mxu0 0.0
    %946 = vmatprep.subr.mxu0 0.0
    %947 = vmatpush1.xpose.msra.mxu0 0.0
    %948 = vmatprep.subr.mxu0 0.0
    %949 = vmatpush1.xpose.msra.mxu0 0.0
    %950 = vmatprep.subr.mxu0 0.0
    %951 = vmatpush1.xpose.msra.mxu0 0.0
    %952 = vmatprep.subr.mxu0 0.0
    %953 = vmatpush1.xpose.msra.mxu0 0.0
    %954 = vmatprep.subr.mxu0 0.0
    %955 = vmatpush1.xpose.msra.mxu0 0.0
    %956 = vmatprep.subr.mxu0 0.0
    %957 = vmatpush1.xpose.msra.mxu0 0.0
    %958 = vmatprep.subr.mxu0 0.0
    %959 = vmatpush1.xpose.msra.mxu0 0.0
    %960 = vmatprep.subr.mxu0 0.0
    %961 = vmatpush1.xpose.msra.mxu0 0.0
    %962 = vmatprep.subr.mxu0 0.0
    %963 = vmatpush1.xpose.msra.mxu0 0.0
    %964 = vmatprep.subr.mxu0 0.0
    %965 = vmatpush1.xpose.msra.mxu0 0.0
    %966 = vmatprep.subr.mxu0 0.0
    %967 = vmatpush1.xpose.msra.mxu0 0.0
    %968 = vmatprep.subr.mxu0 0.0
    %969 = vmatpush1.xpose.msra.mxu0 0.0
    %970 = vmatprep.subr.mxu0 0.0
    %971 = vmatpush1.xpose.msra.mxu0 0.0
    %972 = vmatprep.subr.mxu0 0.0
    %973 = vmatpush1.xpose.msra.mxu0 0.0
    %974 = vmatprep.subr.mxu0 0.0
    %975 = vmatpush1.xpose.msra.mxu0 0.0
    %976 = vmatprep.subr.mxu0 0.0
    %977 = vmatpush1.xpose.msra.mxu0 0.0
    %978 = vmatprep.subr.mxu0 0.0
    %979 = vmatpush1.xpose.msra.mxu0 0.0
    %980 = vmatprep.subr.mxu0 0.0
    %981 = vmatpush1.xpose.msra.mxu0 0.0
    %982 = vmatprep.subr.mxu0 0.0
    %983 = vmatpush1.xpose.msra.mxu0 0.0
    %984 = vmatprep.subr.mxu0 0.0
    %985 = vmatpush1.xpose.msra.mxu0 0.0
    %986 = vmatprep.subr.mxu0 0.0
    %987 = vmatpush1.xpose.msra.mxu0 0.0
    %988 = vmatprep.subr.mxu0 0.0
    %989 = vmatpush1.xpose.msra.mxu0 0.0
    %990 = vmatprep.subr.mxu0 0.0
    %991 = vmatpush1.xpose.msra.mxu0 0.0
    %992 = vmatprep.subr.mxu0 0.0
    %993 = vmatpush1.xpose.msra.mxu0 0.0
    %994 = vmatprep.mubr.f32.mxu0 0.0
    %995 = vmatmul.mubr.f32.gmra.mrb[0].mxu0 %v926
    %v996 = vpop.f32.mrb[0].mxu0
    %v997 = vadd.f32 0.0, %v996
    %v998 = vpop.f32.mrb[0].mxu0
    %999 = vdwg.mxu0
    %1000 = vrot.lane.b32.xlu0 %v146, 88
    %v1001 = vpop.permute.xlu0 %1000
    %v1002 = vsel %vm165, %v146, 0
    %v1004 = vsel %vm165, %v1001, 0
    %1006 = vmatprep.subr.mxu0 0.0
    %1007 = vmatpush1.xpose.msra.mxu0 %v1004
    %1008 = vmatprep.subr.mxu0 0.0
    %1009 = vmatpush1.xpose.msra.mxu0 0.0
    %1010 = vmatprep.subr.mxu0 0.0
    %1011 = vmatpush1.xpose.msra.mxu0 0.0
    %1012 = vmatprep.subr.mxu0 0.0
    %1013 = vmatpush1.xpose.msra.mxu0 0.0
    %1014 = vmatprep.subr.mxu0 0.0
    %1015 = vmatpush1.xpose.msra.mxu0 0.0
    %1016 = vmatprep.subr.mxu0 0.0
    %1017 = vmatpush1.xpose.msra.mxu0 0.0
    %1018 = vmatprep.subr.mxu0 0.0
    %1019 = vmatpush1.xpose.msra.mxu0 0.0
    %1020 = vmatprep.subr.mxu0 0.0
    %1021 = vmatpush1.xpose.msra.mxu0 0.0
    %1022 = vmatprep.subr.mxu0 0.0
    %1023 = vmatpush1.xpose.msra.mxu0 0.0
    %1024 = vmatprep.subr.mxu0 0.0
    %1025 = vmatpush1.xpose.msra.mxu0 0.0
    %1026 = vmatprep.subr.mxu0 0.0
    %1027 = vmatpush1.xpose.msra.mxu0 0.0
    %1028 = vmatprep.subr.mxu0 0.0
    %1029 = vmatpush1.xpose.msra.mxu0 0.0
    %1030 = vmatprep.subr.mxu0 0.0
    %1031 = vmatpush1.xpose.msra.mxu0 0.0
    %1032 = vmatprep.subr.mxu0 0.0
    %1033 = vmatpush1.xpose.msra.mxu0 0.0
    %1034 = vmatprep.subr.mxu0 0.0
    %1035 = vmatpush1.xpose.msra.mxu0 0.0
    %1036 = vmatprep.subr.mxu0 0.0
    %1037 = vmatpush1.xpose.msra.mxu0 0.0
    %1038 = vmatprep.subr.mxu0 0.0
    %1039 = vmatpush1.xpose.msra.mxu0 0.0
    %1040 = vmatprep.subr.mxu0 0.0
    %1041 = vmatpush1.xpose.msra.mxu0 0.0
    %1042 = vmatprep.subr.mxu0 0.0
    %1043 = vmatpush1.xpose.msra.mxu0 0.0
    %1044 = vmatprep.subr.mxu0 0.0
    %1045 = vmatpush1.xpose.msra.mxu0 0.0
    %1046 = vmatprep.subr.mxu0 0.0
    %1047 = vmatpush1.xpose.msra.mxu0 0.0
    %1048 = vmatprep.subr.mxu0 0.0
    %1049 = vmatpush1.xpose.msra.mxu0 0.0
    %1050 = vmatprep.subr.mxu0 0.0
    %1051 = vmatpush1.xpose.msra.mxu0 0.0
    %1052 = vmatprep.subr.mxu0 0.0
    %1053 = vmatpush1.xpose.msra.mxu0 0.0
    %1054 = vmatprep.subr.mxu0 0.0
    %1055 = vmatpush1.xpose.msra.mxu0 0.0
    %1056 = vmatprep.subr.mxu0 0.0
    %1057 = vmatpush1.xpose.msra.mxu0 0.0
    %1058 = vmatprep.subr.mxu0 0.0
    %1059 = vmatpush1.xpose.msra.mxu0 0.0
    %1060 = vmatprep.subr.mxu0 0.0
    %1061 = vmatpush1.xpose.msra.mxu0 0.0
    %1062 = vmatprep.subr.mxu0 0.0
    %1063 = vmatpush1.xpose.msra.mxu0 0.0
    %1064 = vmatprep.subr.mxu0 0.0
    %1065 = vmatpush1.xpose.msra.mxu0 0.0
    %1066 = vmatprep.subr.mxu0 0.0
    %1067 = vmatpush1.xpose.msra.mxu0 0.0
    %1068 = vmatprep.subr.mxu0 0.0
    %1069 = vmatpush1.xpose.msra.mxu0 0.0
    %1070 = vmatprep.mubr.f32.mxu0 0.0
    %1071 = vmatmul.mubr.f32.gmra.mrb[0].mxu0 %v1002
    %v1072 = vpop.f32.mrb[0].mxu0
    %v1073 = vadd.f32 0.0, %v1072
    %v1074 = vpop.f32.mrb[0].mxu0
    %1075 = vdwg.mxu0
    %1076 = vrot.lane.b32.xlu0 %v148, 88
    %v1077 = vpop.permute.xlu0 %1076
    %v1078 = vsel %vm165, %v148, 0
    %v1080 = vsel %vm165, %v1077, 0
    %1082 = vmatprep.subr.mxu0 0.0
    %1083 = vmatpush1.xpose.msra.mxu0 %v1080
    %1084 = vmatprep.subr.mxu0 0.0
    %1085 = vmatpush1.xpose.msra.mxu0 0.0
    %1086 = vmatprep.subr.mxu0 0.0
    %1087 = vmatpush1.xpose.msra.mxu0 0.0
    %1088 = vmatprep.subr.mxu0 0.0
    %1089 = vmatpush1.xpose.msra.mxu0 0.0
    %1090 = vmatprep.subr.mxu0 0.0
    %1091 = vmatpush1.xpose.msra.mxu0 0.0
    %1092 = vmatprep.subr.mxu0 0.0
    %1093 = vmatpush1.xpose.msra.mxu0 0.0
    %1094 = vmatprep.subr.mxu0 0.0
    %1095 = vmatpush1.xpose.msra.mxu0 0.0
    %1096 = vmatprep.subr.mxu0 0.0
    %1097 = vmatpush1.xpose.msra.mxu0 0.0
    %1098 = vmatprep.subr.mxu0 0.0
    %1099 = vmatpush1.xpose.msra.mxu0 0.0
    %1100 = vmatprep.subr.mxu0 0.0
    %1101 = vmatpush1.xpose.msra.mxu0 0.0
    %1102 = vmatprep.subr.mxu0 0.0
    %1103 = vmatpush1.xpose.msra.mxu0 0.0
    %1104 = vmatprep.subr.mxu0 0.0
    %1105 = vmatpush1.xpose.msra.mxu0 0.0
    %1106 = vmatprep.subr.mxu0 0.0
    %1107 = vmatpush1.xpose.msra.mxu0 0.0
    %1108 = vmatprep.subr.mxu0 0.0
    %1109 = vmatpush1.xpose.msra.mxu0 0.0
    %1110 = vmatprep.subr.mxu0 0.0
    %1111 = vmatpush1.xpose.msra.mxu0 0.0
    %1112 = vmatprep.subr.mxu0 0.0
    %1113 = vmatpush1.xpose.msra.mxu0 0.0
    %1114 = vmatprep.subr.mxu0 0.0
    %1115 = vmatpush1.xpose.msra.mxu0 0.0
    %1116 = vmatprep.subr.mxu0 0.0
    %1117 = vmatpush1.xpose.msra.mxu0 0.0
    %1118 = vmatprep.subr.mxu0 0.0
    %1119 = vmatpush1.xpose.msra.mxu0 0.0
    %1120 = vmatprep.subr.mxu0 0.0
    %1121 = vmatpush1.xpose.msra.mxu0 0.0
    %1122 = vmatprep.subr.mxu0 0.0
    %1123 = vmatpush1.xpose.msra.mxu0 0.0
    %1124 = vmatprep.subr.mxu0 0.0
    %1125 = vmatpush1.xpose.msra.mxu0 0.0
    %1126 = vmatprep.subr.mxu0 0.0
    %1127 = vmatpush1.xpose.msra.mxu0 0.0
    %1128 = vmatprep.subr.mxu0 0.0
    %1129 = vmatpush1.xpose.msra.mxu0 0.0
    %1130 = vmatprep.subr.mxu0 0.0
    %1131 = vmatpush1.xpose.msra.mxu0 0.0
    %1132 = vmatprep.subr.mxu0 0.0
    %1133 = vmatpush1.xpose.msra.mxu0 0.0
    %1134 = vmatprep.subr.mxu0 0.0
    %1135 = vmatpush1.xpose.msra.mxu0 0.0
    %1136 = vmatprep.subr.mxu0 0.0
    %1137 = vmatpush1.xpose.msra.mxu0 0.0
    %1138 = vmatprep.subr.mxu0 0.0
    %1139 = vmatpush1.xpose.msra.mxu0 0.0
    %1140 = vmatprep.subr.mxu0 0.0
    %1141 = vmatpush1.xpose.msra.mxu0 0.0
    %1142 = vmatprep.subr.mxu0 0.0
    %1143 = vmatpush1.xpose.msra.mxu0 0.0
    %1144 = vmatprep.subr.mxu0 0.0
    %1145 = vmatpush1.xpose.msra.mxu0 0.0
    %1146 = vmatprep.mubr.f32.mxu0 0.0
    %1147 = vmatmul.mubr.f32.gmra.mrb[0].mxu0 %v1078
    %v1148 = vpop.f32.mrb[0].mxu0
    %v1149 = vadd.f32 0.0, %v1148
    %v1150 = vpop.f32.mrb[0].mxu0
    %1151 = vdwg.mxu0
    %1152 = vrot.lane.b32.xlu0 %v150, 88
    %v1153 = vpop.permute.xlu0 %1152
    %v1154 = vsel %vm165, %v150, 0
    %v1156 = vsel %vm165, %v1153, 0
    %1158 = vmatprep.subr.mxu0 0.0
    %1159 = vmatpush1.xpose.msra.mxu0 %v1156
    %1160 = vmatprep.subr.mxu0 0.0
    %1161 = vmatpush1.xpose.msra.mxu0 0.0
    %1162 = vmatprep.subr.mxu0 0.0
    %1163 = vmatpush1.xpose.msra.mxu0 0.0
    %1164 = vmatprep.subr.mxu0 0.0
    %1165 = vmatpush1.xpose.msra.mxu0 0.0
    %1166 = vmatprep.subr.mxu0 0.0
    %1167 = vmatpush1.xpose.msra.mxu0 0.0
    %1168 = vmatprep.subr.mxu0 0.0
    %1169 = vmatpush1.xpose.msra.mxu0 0.0
    %1170 = vmatprep.subr.mxu0 0.0
    %1171 = vmatpush1.xpose.msra.mxu0 0.0
    %1172 = vmatprep.subr.mxu0 0.0
    %1173 = vmatpush1.xpose.msra.mxu0 0.0
    %1174 = vmatprep.subr.mxu0 0.0
    %1175 = vmatpush1.xpose.msra.mxu0 0.0
    %1176 = vmatprep.subr.mxu0 0.0
    %1177 = vmatpush1.xpose.msra.mxu0 0.0
    %1178 = vmatprep.subr.mxu0 0.0
    %1179 = vmatpush1.xpose.msra.mxu0 0.0
    %1180 = vmatprep.subr.mxu0 0.0
    %1181 = vmatpush1.xpose.msra.mxu0 0.0
    %1182 = vmatprep.subr.mxu0 0.0
    %1183 = vmatpush1.xpose.msra.mxu0 0.0
    %1184 = vmatprep.subr.mxu0 0.0
    %1185 = vmatpush1.xpose.msra.mxu0 0.0
    %1186 = vmatprep.subr.mxu0 0.0
    %1187 = vmatpush1.xpose.msra.mxu0 0.0
    %1188 = vmatprep.subr.mxu0 0.0
    %1189 = vmatpush1.xpose.msra.mxu0 0.0
    %1190 = vmatprep.subr.mxu0 0.0
    %1191 = vmatpush1.xpose.msra.mxu0 0.0
    %1192 = vmatprep.subr.mxu0 0.0
    %1193 = vmatpush1.xpose.msra.mxu0 0.0
    %1194 = vmatprep.subr.mxu0 0.0
    %1195 = vmatpush1.xpose.msra.mxu0 0.0
    %1196 = vmatprep.subr.mxu0 0.0
    %1197 = vmatpush1.xpose.msra.mxu0 0.0
    %1198 = vmatprep.subr.mxu0 0.0
    %1199 = vmatpush1.xpose.msra.mxu0 0.0
    %1200 = vmatprep.subr.mxu0 0.0
    %1201 = vmatpush1.xpose.msra.mxu0 0.0
    %1202 = vmatprep.subr.mxu0 0.0
    %1203 = vmatpush1.xpose.msra.mxu0 0.0
    %1204 = vmatprep.subr.mxu0 0.0
    %1205 = vmatpush1.xpose.msra.mxu0 0.0
    %1206 = vmatprep.subr.mxu0 0.0
    %1207 = vmatpush1.xpose.msra.mxu0 0.0
    %1208 = vmatprep.subr.mxu0 0.0
    %1209 = vmatpush1.xpose.msra.mxu0 0.0
    %1210 = vmatprep.subr.mxu0 0.0
    %1211 = vmatpush1.xpose.msra.mxu0 0.0
    %1212 = vmatprep.subr.mxu0 0.0
    %1213 = vmatpush1.xpose.msra.mxu0 0.0
    %1214 = vmatprep.subr.mxu0 0.0
    %1215 = vmatpush1.xpose.msra.mxu0 0.0
    %1216 = vmatprep.subr.mxu0 0.0
    %1217 = vmatpush1.xpose.msra.mxu0 0.0
    %1218 = vmatprep.subr.mxu0 0.0
    %1219 = vmatpush1.xpose.msra.mxu0 0.0
    %1220 = vmatprep.subr.mxu0 0.0
    %1221 = vmatpush1.xpose.msra.mxu0 0.0
    %1222 = vmatprep.mubr.f32.mxu0 0.0
    %1223 = vmatmul.mubr.f32.gmra.mrb[0].mxu0 %v1154
    %v1224 = vpop.f32.mrb[0].mxu0
    %v1225 = vadd.f32 0.0, %v1224
    %v1226 = vpop.f32.mrb[0].mxu0
    %1227 = vdwg.mxu0
    %1228 = vrot.lane.b32.xlu0 %v152, 88
    %v1229 = vpop.permute.xlu0 %1228
    %v1230 = vsel %vm165, %v152, 0
    %v1232 = vsel %vm165, %v1229, 0
    %1234 = vmatprep.subr.mxu0 0.0
    %1235 = vmatpush1.xpose.msra.mxu0 %v1232
    %1236 = vmatprep.subr.mxu0 0.0
    %1237 = vmatpush1.xpose.msra.mxu0 0.0
    %1238 = vmatprep.subr.mxu0 0.0
    %1239 = vmatpush1.xpose.msra.mxu0 0.0
    %1240 = vmatprep.subr.mxu0 0.0
    %1241 = vmatpush1.xpose.msra.mxu0 0.0
    %1242 = vmatprep.subr.mxu0 0.0
    %1243 = vmatpush1.xpose.msra.mxu0 0.0
    %1244 = vmatprep.subr.mxu0 0.0
    %1245 = vmatpush1.xpose.msra.mxu0 0.0
    %1246 = vmatprep.subr.mxu0 0.0
    %1247 = vmatpush1.xpose.msra.mxu0 0.0
    %1248 = vmatprep.subr.mxu0 0.0
    %1249 = vmatpush1.xpose.msra.mxu0 0.0
    %1250 = vmatprep.subr.mxu0 0.0
    %1251 = vmatpush1.xpose.msra.mxu0 0.0
    %1252 = vmatprep.subr.mxu0 0.0
    %1253 = vmatpush1.xpose.msra.mxu0 0.0
    %1254 = vmatprep.subr.mxu0 0.0
    %1255 = vmatpush1.xpose.msra.mxu0 0.0
    %1256 = vmatprep.subr.mxu0 0.0
    %1257 = vmatpush1.xpose.msra.mxu0 0.0
    %1258 = vmatprep.subr.mxu0 0.0
    %1259 = vmatpush1.xpose.msra.mxu0 0.0
    %1260 = vmatprep.subr.mxu0 0.0
    %1261 = vmatpush1.xpose.msra.mxu0 0.0
    %1262 = vmatprep.subr.mxu0 0.0
    %1263 = vmatpush1.xpose.msra.mxu0 0.0
    %1264 = vmatprep.subr.mxu0 0.0
    %1265 = vmatpush1.xpose.msra.mxu0 0.0
    %1266 = vmatprep.subr.mxu0 0.0
    %1267 = vmatpush1.xpose.msra.mxu0 0.0
    %1268 = vmatprep.subr.mxu0 0.0
    %1269 = vmatpush1.xpose.msra.mxu0 0.0
    %1270 = vmatprep.subr.mxu0 0.0
    %1271 = vmatpush1.xpose.msra.mxu0 0.0
    %1272 = vmatprep.subr.mxu0 0.0
    %1273 = vmatpush1.xpose.msra.mxu0 0.0
    %1274 = vmatprep.subr.mxu0 0.0
    %1275 = vmatpush1.xpose.msra.mxu0 0.0
    %1276 = vmatprep.subr.mxu0 0.0
    %1277 = vmatpush1.xpose.msra.mxu0 0.0
    %1278 = vmatprep.subr.mxu0 0.0
    %1279 = vmatpush1.xpose.msra.mxu0 0.0
    %1280 = vmatprep.subr.mxu0 0.0
    %1281 = vmatpush1.xpose.msra.mxu0 0.0
    %1282 = vmatprep.subr.mxu0 0.0
    %1283 = vmatpush1.xpose.msra.mxu0 0.0
    %1284 = vmatprep.subr.mxu0 0.0
    %1285 = vmatpush1.xpose.msra.mxu0 0.0
    %1286 = vmatprep.subr.mxu0 0.0
    %1287 = vmatpush1.xpose.msra.mxu0 0.0
    %1288 = vmatprep.subr.mxu0 0.0
    %1289 = vmatpush1.xpose.msra.mxu0 0.0
    %1290 = vmatprep.subr.mxu0 0.0
    %1291 = vmatpush1.xpose.msra.mxu0 0.0
    %1292 = vmatprep.subr.mxu0 0.0
    %1293 = vmatpush1.xpose.msra.mxu0 0.0
    %1294 = vmatprep.subr.mxu0 0.0
    %1295 = vmatpush1.xpose.msra.mxu0 0.0
    %1296 = vmatprep.subr.mxu0 0.0
    %1297 = vmatpush1.xpose.msra.mxu0 0.0
    %1298 = vmatprep.mubr.f32.mxu0 0.0
    %1299 = vmatmul.mubr.f32.gmra.mrb[0].mxu0 %v1230
    %v1300 = vpop.f32.mrb[0].mxu0
    %v1301 = vadd.f32 0.0, %v1300
    %v1302 = vpop.f32.mrb[0].mxu0
    %1303 = vdwg.mxu0
    %1304 = vrot.lane.b32.xlu0 %v154, 88
    %v1305 = vpop.permute.xlu0 %1304
    %v1306 = vsel %vm165, %v154, 0
    %v1308 = vsel %vm165, %v1305, 0
    %1310 = vmatprep.subr.mxu0 0.0
    %1311 = vmatpush1.xpose.msra.mxu0 %v1308
    %1312 = vmatprep.subr.mxu0 0.0
    %1313 = vmatpush1.xpose.msra.mxu0 0.0
    %1314 = vmatprep.subr.mxu0 0.0
    %1315 = vmatpush1.xpose.msra.mxu0 0.0
    %1316 = vmatprep.subr.mxu0 0.0
    %1317 = vmatpush1.xpose.msra.mxu0 0.0
    %1318 = vmatprep.subr.mxu0 0.0
    %1319 = vmatpush1.xpose.msra.mxu0 0.0
    %1320 = vmatprep.subr.mxu0 0.0
    %1321 = vmatpush1.xpose.msra.mxu0 0.0
    %1322 = vmatprep.subr.mxu0 0.0
    %1323 = vmatpush1.xpose.msra.mxu0 0.0
    %1324 = vmatprep.subr.mxu0 0.0
    %1325 = vmatpush1.xpose.msra.mxu0 0.0
    %1326 = vmatprep.subr.mxu0 0.0
    %1327 = vmatpush1.xpose.msra.mxu0 0.0
    %1328 = vmatprep.subr.mxu0 0.0
    %1329 = vmatpush1.xpose.msra.mxu0 0.0
    %1330 = vmatprep.subr.mxu0 0.0
    %1331 = vmatpush1.xpose.msra.mxu0 0.0
    %1332 = vmatprep.subr.mxu0 0.0
    %1333 = vmatpush1.xpose.msra.mxu0 0.0
    %1334 = vmatprep.subr.mxu0 0.0
    %1335 = vmatpush1.xpose.msra.mxu0 0.0
    %1336 = vmatprep.subr.mxu0 0.0
    %1337 = vmatpush1.xpose.msra.mxu0 0.0
    %1338 = vmatprep.subr.mxu0 0.0
    %1339 = vmatpush1.xpose.msra.mxu0 0.0
    %1340 = vmatprep.subr.mxu0 0.0
    %1341 = vmatpush1.xpose.msra.mxu0 0.0
    %1342 = vmatprep.subr.mxu0 0.0
    %1343 = vmatpush1.xpose.msra.mxu0 0.0
    %1344 = vmatprep.subr.mxu0 0.0
    %1345 = vmatpush1.xpose.msra.mxu0 0.0
    %1346 = vmatprep.subr.mxu0 0.0
    %1347 = vmatpush1.xpose.msra.mxu0 0.0
    %1348 = vmatprep.subr.mxu0 0.0
    %1349 = vmatpush1.xpose.msra.mxu0 0.0
    %1350 = vmatprep.subr.mxu0 0.0
    %1351 = vmatpush1.xpose.msra.mxu0 0.0
    %1352 = vmatprep.subr.mxu0 0.0
    %1353 = vmatpush1.xpose.msra.mxu0 0.0
    %1354 = vmatprep.subr.mxu0 0.0
    %1355 = vmatpush1.xpose.msra.mxu0 0.0
    %1356 = vmatprep.subr.mxu0 0.0
    %1357 = vmatpush1.xpose.msra.mxu0 0.0
    %1358 = vmatprep.subr.mxu0 0.0
    %1359 = vmatpush1.xpose.msra.mxu0 0.0
    %1360 = vmatprep.subr.mxu0 0.0
    %1361 = vmatpush1.xpose.msra.mxu0 0.0
    %1362 = vmatprep.subr.mxu0 0.0
    %1363 = vmatpush1.xpose.msra.mxu0 0.0
    %1364 = vmatprep.subr.mxu0 0.0
    %1365 = vmatpush1.xpose.msra.mxu0 0.0
    %1366 = vmatprep.subr.mxu0 0.0
    %1367 = vmatpush1.xpose.msra.mxu0 0.0
    %1368 = vmatprep.subr.mxu0 0.0
    %1369 = vmatpush1.xpose.msra.mxu0 0.0
    %1370 = vmatprep.subr.mxu0 0.0
    %1371 = vmatpush1.xpose.msra.mxu0 0.0
    %1372 = vmatprep.subr.mxu0 0.0
    %1373 = vmatpush1.xpose.msra.mxu0 0.0
    %1374 = vmatprep.mubr.f32.mxu0 0.0
    %1375 = vmatmul.mubr.f32.gmra.mrb[0].mxu0 %v1306
    %v1376 = vpop.f32.mrb[0].mxu0
    %v1377 = vadd.f32 0.0, %v1376
    %v1378 = vpop.f32.mrb[0].mxu0
    %1379 = vdwg.mxu0
    %1380 = vrot.lane.b32.xlu0 %v156, 88
    %v1381 = vpop.permute.xlu0 %1380
    %v1382 = vsel %vm165, %v156, 0
    %v1384 = vsel %vm165, %v1381, 0
    %1386 = vmatprep.subr.mxu0 0.0
    %1387 = vmatpush1.xpose.msra.mxu0 %v1384
    %1388 = vmatprep.subr.mxu0 0.0
    %1389 = vmatpush1.xpose.msra.mxu0 0.0
    %1390 = vmatprep.subr.mxu0 0.0
    %1391 = vmatpush1.xpose.msra.mxu0 0.0
    %1392 = vmatprep.subr.mxu0 0.0
    %1393 = vmatpush1.xpose.msra.mxu0 0.0
    %1394 = vmatprep.subr.mxu0 0.0
    %1395 = vmatpush1.xpose.msra.mxu0 0.0
    %1396 = vmatprep.subr.mxu0 0.0
    %1397 = vmatpush1.xpose.msra.mxu0 0.0
    %1398 = vmatprep.subr.mxu0 0.0
    %1399 = vmatpush1.xpose.msra.mxu0 0.0
    %1400 = vmatprep.subr.mxu0 0.0
    %1401 = vmatpush1.xpose.msra.mxu0 0.0
    %1402 = vmatprep.subr.mxu0 0.0
    %1403 = vmatpush1.xpose.msra.mxu0 0.0
    %1404 = vmatprep.subr.mxu0 0.0
    %1405 = vmatpush1.xpose.msra.mxu0 0.0
    %1406 = vmatprep.subr.mxu0 0.0
    %1407 = vmatpush1.xpose.msra.mxu0 0.0
    %1408 = vmatprep.subr.mxu0 0.0
    %1409 = vmatpush1.xpose.msra.mxu0 0.0
    %1410 = vmatprep.subr.mxu0 0.0
    %1411 = vmatpush1.xpose.msra.mxu0 0.0
    %1412 = vmatprep.subr.mxu0 0.0
    %1413 = vmatpush1.xpose.msra.mxu0 0.0
    %1414 = vmatprep.subr.mxu0 0.0
    %1415 = vmatpush1.xpose.msra.mxu0 0.0
    %1416 = vmatprep.subr.mxu0 0.0
    %1417 = vmatpush1.xpose.msra.mxu0 0.0
    %1418 = vmatprep.subr.mxu0 0.0
    %1419 = vmatpush1.xpose.msra.mxu0 0.0
    %1420 = vmatprep.subr.mxu0 0.0
    %1421 = vmatpush1.xpose.msra.mxu0 0.0
    %1422 = vmatprep.subr.mxu0 0.0
    %1423 = vmatpush1.xpose.msra.mxu0 0.0
    %1424 = vmatprep.subr.mxu0 0.0
    %1425 = vmatpush1.xpose.msra.mxu0 0.0
    %1426 = vmatprep.subr.mxu0 0.0
    %1427 = vmatpush1.xpose.msra.mxu0 0.0
    %1428 = vmatprep.subr.mxu0 0.0
    %1429 = vmatpush1.xpose.msra.mxu0 0.0
    %1430 = vmatprep.subr.mxu0 0.0
    %1431 = vmatpush1.xpose.msra.mxu0 0.0
    %1432 = vmatprep.subr.mxu0 0.0
    %1433 = vmatpush1.xpose.msra.mxu0 0.0
    %1434 = vmatprep.subr.mxu0 0.0
    %1435 = vmatpush1.xpose.msra.mxu0 0.0
    %1436 = vmatprep.subr.mxu0 0.0
    %1437 = vmatpush1.xpose.msra.mxu0 0.0
    %1438 = vmatprep.subr.mxu0 0.0
    %1439 = vmatpush1.xpose.msra.mxu0 0.0
    %1440 = vmatprep.subr.mxu0 0.0
    %1441 = vmatpush1.xpose.msra.mxu0 0.0
    %1442 = vmatprep.subr.mxu0 0.0
    %1443 = vmatpush1.xpose.msra.mxu0 0.0
    %1444 = vmatprep.subr.mxu0 0.0
    %1445 = vmatpush1.xpose.msra.mxu0 0.0
    %1446 = vmatprep.subr.mxu0 0.0
    %1447 = vmatpush1.xpose.msra.mxu0 0.0
    %1448 = vmatprep.subr.mxu0 0.0
    %1449 = vmatpush1.xpose.msra.mxu0 0.0
    %1450 = vmatprep.mubr.f32.mxu0 0.0
    %1451 = vmatmul.mubr.f32.gmra.mrb[0].mxu0 %v1382
    %v1452 = vpop.f32.mrb[0].mxu0
    %v1453 = vadd.f32 0.0, %v1452
    %v1454 = vpop.f32.mrb[0].mxu0
    %1455 = vdwg.mxu0
    %1456 = vrot.lane.b32.xlu0 %v158, 88
    %v1457 = vpop.permute.xlu0 %1456
    %v1458 = vsel %vm165, %v158, 0
    %v1460 = vsel %vm165, %v1457, 0
    %1462 = vmatprep.subr.mxu0 0.0
    %1463 = vmatpush1.xpose.msra.mxu0 %v1460
    %1464 = vmatprep.subr.mxu0 0.0
    %1465 = vmatpush1.xpose.msra.mxu0 0.0
    %1466 = vmatprep.subr.mxu0 0.0
    %1467 = vmatpush1.xpose.msra.mxu0 0.0
    %1468 = vmatprep.subr.mxu0 0.0
    %1469 = vmatpush1.xpose.msra.mxu0 0.0
    %1470 = vmatprep.subr.mxu0 0.0
    %1471 = vmatpush1.xpose.msra.mxu0 0.0
    %1472 = vmatprep.subr.mxu0 0.0
    %1473 = vmatpush1.xpose.msra.mxu0 0.0
    %1474 = vmatprep.subr.mxu0 0.0
    %1475 = vmatpush1.xpose.msra.mxu0 0.0
    %1476 = vmatprep.subr.mxu0 0.0
    %1477 = vmatpush1.xpose.msra.mxu0 0.0
    %1478 = vmatprep.subr.mxu0 0.0
    %1479 = vmatpush1.xpose.msra.mxu0 0.0
    %1480 = vmatprep.subr.mxu0 0.0
    %1481 = vmatpush1.xpose.msra.mxu0 0.0
    %1482 = vmatprep.subr.mxu0 0.0
    %1483 = vmatpush1.xpose.msra.mxu0 0.0
    %1484 = vmatprep.subr.mxu0 0.0
    %1485 = vmatpush1.xpose.msra.mxu0 0.0
    %1486 = vmatprep.subr.mxu0 0.0
    %1487 = vmatpush1.xpose.msra.mxu0 0.0
    %1488 = vmatprep.subr.mxu0 0.0
    %1489 = vmatpush1.xpose.msra.mxu0 0.0
    %1490 = vmatprep.subr.mxu0 0.0
    %1491 = vmatpush1.xpose.msra.mxu0 0.0
    %1492 = vmatprep.subr.mxu0 0.0
    %1493 = vmatpush1.xpose.msra.mxu0 0.0
    %1494 = vmatprep.subr.mxu0 0.0
    %1495 = vmatpush1.xpose.msra.mxu0 0.0
    %1496 = vmatprep.subr.mxu0 0.0
    %1497 = vmatpush1.xpose.msra.mxu0 0.0
    %1498 = vmatprep.subr.mxu0 0.0
    %1499 = vmatpush1.xpose.msra.mxu0 0.0
    %1500 = vmatprep.subr.mxu0 0.0
    %1501 = vmatpush1.xpose.msra.mxu0 0.0
    %1502 = vmatprep.subr.mxu0 0.0
    %1503 = vmatpush1.xpose.msra.mxu0 0.0
    %1504 = vmatprep.subr.mxu0 0.0
    %1505 = vmatpush1.xpose.msra.mxu0 0.0
    %1506 = vmatprep.subr.mxu0 0.0
    %1507 = vmatpush1.xpose.msra.mxu0 0.0
    %1508 = vmatprep.subr.mxu0 0.0
    %1509 = vmatpush1.xpose.msra.mxu0 0.0
    %1510 = vmatprep.subr.mxu0 0.0
    %1511 = vmatpush1.xpose.msra.mxu0 0.0
    %1512 = vmatprep.subr.mxu0 0.0
    %1513 = vmatpush1.xpose.msra.mxu0 0.0
    %1514 = vmatprep.subr.mxu0 0.0
    %1515 = vmatpush1.xpose.msra.mxu0 0.0
    %1516 = vmatprep.subr.mxu0 0.0
    %1517 = vmatpush1.xpose.msra.mxu0 0.0
    %1518 = vmatprep.subr.mxu0 0.0
    %1519 = vmatpush1.xpose.msra.mxu0 0.0
    %1520 = vmatprep.subr.mxu0 0.0
    %1521 = vmatpush1.xpose.msra.mxu0 0.0
    %1522 = vmatprep.subr.mxu0 0.0
    %1523 = vmatpush1.xpose.msra.mxu0 0.0
    %1524 = vmatprep.subr.mxu0 0.0
    %1525 = vmatpush1.xpose.msra.mxu0 0.0
    %1526 = vmatprep.mubr.f32.mxu0 0.0
    %1527 = vmatmul.mubr.f32.gmra.mrb[0].mxu0 %v1458
    %v1528 = vpop.f32.mrb[0].mxu0
    %v1529 = vadd.f32 0.0, %v1528
    %v1530 = vpop.f32.mrb[0].mxu0
    %1531 = vdwg.mxu0
    %1532 = vrot.lane.b32.xlu0 %v160, 88
    %v1533 = vpop.permute.xlu0 %1532
    %v1534 = vsel %vm165, %v160, 0
    %v1536 = vsel %vm165, %v1533, 0
    %1538 = vmatprep.subr.mxu0 0.0
    %1539 = vmatpush1.xpose.msra.mxu0 %v1536
    %1540 = vmatprep.subr.mxu0 0.0
    %1541 = vmatpush1.xpose.msra.mxu0 0.0
    %1542 = vmatprep.subr.mxu0 0.0
    %1543 = vmatpush1.xpose.msra.mxu0 0.0
    %1544 = vmatprep.subr.mxu0 0.0
    %1545 = vmatpush1.xpose.msra.mxu0 0.0
    %1546 = vmatprep.subr.mxu0 0.0
    %1547 = vmatpush1.xpose.msra.mxu0 0.0
    %1548 = vmatprep.subr.mxu0 0.0
    %1549 = vmatpush1.xpose.msra.mxu0 0.0
    %1550 = vmatprep.subr.mxu0 0.0
    %1551 = vmatpush1.xpose.msra.mxu0 0.0
    %1552 = vmatprep.subr.mxu0 0.0
    %1553 = vmatpush1.xpose.msra.mxu0 0.0
    %1554 = vmatprep.subr.mxu0 0.0
    %1555 = vmatpush1.xpose.msra.mxu0 0.0
    %1556 = vmatprep.subr.mxu0 0.0
    %1557 = vmatpush1.xpose.msra.mxu0 0.0
    %1558 = vmatprep.subr.mxu0 0.0
    %1559 = vmatpush1.xpose.msra.mxu0 0.0
    %1560 = vmatprep.subr.mxu0 0.0
    %1561 = vmatpush1.xpose.msra.mxu0 0.0
    %1562 = vmatprep.subr.mxu0 0.0
    %1563 = vmatpush1.xpose.msra.mxu0 0.0
    %1564 = vmatprep.subr.mxu0 0.0
    %1565 = vmatpush1.xpose.msra.mxu0 0.0
    %1566 = vmatprep.subr.mxu0 0.0
    %1567 = vmatpush1.xpose.msra.mxu0 0.0
    %1568 = vmatprep.subr.mxu0 0.0
    %1569 = vmatpush1.xpose.msra.mxu0 0.0
    %1570 = vmatprep.subr.mxu0 0.0
    %1571 = vmatpush1.xpose.msra.mxu0 0.0
    %1572 = vmatprep.subr.mxu0 0.0
    %1573 = vmatpush1.xpose.msra.mxu0 0.0
    %1574 = vmatprep.subr.mxu0 0.0
    %1575 = vmatpush1.xpose.msra.mxu0 0.0
    %1576 = vmatprep.subr.mxu0 0.0
    %1577 = vmatpush1.xpose.msra.mxu0 0.0
    %1578 = vmatprep.subr.mxu0 0.0
    %1579 = vmatpush1.xpose.msra.mxu0 0.0
    %1580 = vmatprep.subr.mxu0 0.0
    %1581 = vmatpush1.xpose.msra.mxu0 0.0
    %1582 = vmatprep.subr.mxu0 0.0
    %1583 = vmatpush1.xpose.msra.mxu0 0.0
    %1584 = vmatprep.subr.mxu0 0.0
    %1585 = vmatpush1.xpose.msra.mxu0 0.0
    %1586 = vmatprep.subr.mxu0 0.0
    %1587 = vmatpush1.xpose.msra.mxu0 0.0
    %1588 = vmatprep.subr.mxu0 0.0
    %1589 = vmatpush1.xpose.msra.mxu0 0.0
    %1590 = vmatprep.subr.mxu0 0.0
    %1591 = vmatpush1.xpose.msra.mxu0 0.0
    %1592 = vmatprep.subr.mxu0 0.0
    %1593 = vmatpush1.xpose.msra.mxu0 0.0
    %1594 = vmatprep.subr.mxu0 0.0
    %1595 = vmatpush1.xpose.msra.mxu0 0.0
    %1596 = vmatprep.subr.mxu0 0.0
    %1597 = vmatpush1.xpose.msra.mxu0 0.0
    %1598 = vmatprep.subr.mxu0 0.0
    %1599 = vmatpush1.xpose.msra.mxu0 0.0
    %1600 = vmatprep.subr.mxu0 0.0
    %1601 = vmatpush1.xpose.msra.mxu0 0.0
    %1602 = vmatprep.mubr.f32.mxu0 0.0
    %1603 = vmatmul.mubr.f32.gmra.mrb[0].mxu0 %v1534
    %v1604 = vpop.f32.mrb[0].mxu0
    %v1605 = vadd.f32 0.0, %v1604
    %v1606 = vpop.f32.mrb[0].mxu0
    %1607 = vdwg.mxu0
    %1608 = vrot.lane.b32.xlu0 %v162, 88
    %v1609 = vpop.permute.xlu0 %1608
    %v1610 = vsel %vm165, %v162, 0
    %v1612 = vsel %vm165, %v1609, 0
    %1614 = vmatprep.subr.mxu0 0.0
    %1615 = vmatpush1.xpose.msra.mxu0 %v1612
    %1616 = vmatprep.subr.mxu0 0.0
    %1617 = vmatpush1.xpose.msra.mxu0 0.0
    %1618 = vmatprep.subr.mxu0 0.0
    %1619 = vmatpush1.xpose.msra.mxu0 0.0
    %1620 = vmatprep.subr.mxu0 0.0
    %1621 = vmatpush1.xpose.msra.mxu0 0.0
    %1622 = vmatprep.subr.mxu0 0.0
    %1623 = vmatpush1.xpose.msra.mxu0 0.0
    %1624 = vmatprep.subr.mxu0 0.0
    %1625 = vmatpush1.xpose.msra.mxu0 0.0
    %1626 = vmatprep.subr.mxu0 0.0
    %1627 = vmatpush1.xpose.msra.mxu0 0.0
    %1628 = vmatprep.subr.mxu0 0.0
    %1629 = vmatpush1.xpose.msra.mxu0 0.0
    %1630 = vmatprep.subr.mxu0 0.0
    %1631 = vmatpush1.xpose.msra.mxu0 0.0
    %1632 = vmatprep.subr.mxu0 0.0
    %1633 = vmatpush1.xpose.msra.mxu0 0.0
    %1634 = vmatprep.subr.mxu0 0.0
    %1635 = vmatpush1.xpose.msra.mxu0 0.0
    %1636 = vmatprep.subr.mxu0 0.0
    %1637 = vmatpush1.xpose.msra.mxu0 0.0
    %1638 = vmatprep.subr.mxu0 0.0
    %1639 = vmatpush1.xpose.msra.mxu0 0.0
    %1640 = vmatprep.subr.mxu0 0.0
    %1641 = vmatpush1.xpose.msra.mxu0 0.0
    %1642 = vmatprep.subr.mxu0 0.0
    %1643 = vmatpush1.xpose.msra.mxu0 0.0
    %1644 = vmatprep.subr.mxu0 0.0
    %1645 = vmatpush1.xpose.msra.mxu0 0.0
    %1646 = vmatprep.subr.mxu0 0.0
    %1647 = vmatpush1.xpose.msra.mxu0 0.0
    %1648 = vmatprep.subr.mxu0 0.0
    %1649 = vmatpush1.xpose.msra.mxu0 0.0
    %1650 = vmatprep.subr.mxu0 0.0
    %1651 = vmatpush1.xpose.msra.mxu0 0.0
    %1652 = vmatprep.subr.mxu0 0.0
    %1653 = vmatpush1.xpose.msra.mxu0 0.0
    %1654 = vmatprep.subr.mxu0 0.0
    %1655 = vmatpush1.xpose.msra.mxu0 0.0
    %1656 = vmatprep.subr.mxu0 0.0
    %1657 = vmatpush1.xpose.msra.mxu0 0.0
    %1658 = vmatprep.subr.mxu0 0.0
    %1659 = vmatpush1.xpose.msra.mxu0 0.0
    %1660 = vmatprep.subr.mxu0 0.0
    %1661 = vmatpush1.xpose.msra.mxu0 0.0
    %1662 = vmatprep.subr.mxu0 0.0
    %1663 = vmatpush1.xpose.msra.mxu0 0.0
    %1664 = vmatprep.subr.mxu0 0.0
    %1665 = vmatpush1.xpose.msra.mxu0 0.0
    %1666 = vmatprep.subr.mxu0 0.0
    %1667 = vmatpush1.xpose.msra.mxu0 0.0
    %1668 = vmatprep.subr.mxu0 0.0
    %1669 = vmatpush1.xpose.msra.mxu0 0.0
    %1670 = vmatprep.subr.mxu0 0.0
    %1671 = vmatpush1.xpose.msra.mxu0 0.0
    %1672 = vmatprep.subr.mxu0 0.0
    %1673 = vmatpush1.xpose.msra.mxu0 0.0
    %1674 = vmatprep.subr.mxu0 0.0
    %1675 = vmatpush1.xpose.msra.mxu0 0.0
    %1676 = vmatprep.subr.mxu0 0.0
    %1677 = vmatpush1.xpose.msra.mxu0 0.0
    %1678 = vmatprep.mubr.f32.mxu0 0.0
    %1679 = vmatmul.mubr.f32.gmra.mrb[0].mxu0 %v1610
    %v1680 = vpop.f32.mrb[0].mxu0
    %v1681 = vadd.f32 0.0, %v1680
    %v1682 = vpop.f32.mrb[0].mxu0
    %1683 = vdwg.mxu0
    %v1684 = vmul.f32 %v237, 0.5
    %v1685 = vmul.f32 %v313, 0.5
    %v1686 = vmul.f32 %v389, 0.5
    %v1687 = vmul.f32 %v465, 0.5
    %v1688 = vmul.f32 %v541, 0.5
    %v1689 = vmul.f32 %v617, 0.5
    %v1690 = vmul.f32 %v693, 0.5
    %v1691 = vmul.f32 %v769, 0.5
    %v1692 = vmul.f32 %v845, 0.5
    %v1693 = vmul.f32 %v921, 0.5
    %v1694 = vmul.f32 %v997, 0.5
    %v1695 = vmul.f32 %v1073, 0.5
    %v1696 = vmul.f32 %v1149, 0.5
    %v1697 = vmul.f32 %v1225, 0.5
    %v1698 = vmul.f32 %v1301, 0.5
    %v1699 = vmul.f32 %v1377, 0.5
    %v1700 = vmul.f32 %v1453, 0.5
    %v1701 = vmul.f32 %v1529, 0.5
    %v1702 = vmul.f32 %v1605, 0.5
    %v1703 = vmul.f32 %v1681, 0.5
    %vm1704 = vcmask 64512
    %v1705 = vsel %vm1704, %v1684, -inf
    %1706 = vmax.xlane.f32.xlu0 %v1705
    %v1707 = vpop.xlane.xlu0 %1706
    %v1708 = vsel %vm1704, %v1685, -inf
    %1709 = vmax.xlane.f32.xlu0 %v1708
    %v1710 = vpop.xlane.xlu0 %1709
    %v1711 = vsel %vm1704, %v1686, -inf
    %1712 = vmax.xlane.f32.xlu0 %v1711
    %v1713 = vpop.xlane.xlu0 %1712
    %v1714 = vsel %vm1704, %v1687, -inf
    %1715 = vmax.xlane.f32.xlu0 %v1714
    %v1716 = vpop.xlane.xlu0 %1715
    %v1717 = vsel %vm1704, %v1688, -inf
    %1718 = vmax.xlane.f32.xlu0 %v1717
    %v1719 = vpop.xlane.xlu0 %1718
    %v1720 = vsel %vm1704, %v1689, -inf
    %1721 = vmax.xlane.f32.xlu0 %v1720
    %v1722 = vpop.xlane.xlu0 %1721
    %v1723 = vsel %vm1704, %v1690, -inf
    %1724 = vmax.xlane.f32.xlu0 %v1723
    %v1725 = vpop.xlane.xlu0 %1724
    %v1726 = vsel %vm1704, %v1691, -inf
    %1727 = vmax.xlane.f32.xlu0 %v1726
    %v1728 = vpop.xlane.xlu0 %1727
    %v1729 = vsel %vm1704, %v1692, -inf
    %1730 = vmax.xlane.f32.xlu0 %v1729
    %v1731 = vpop.xlane.xlu0 %1730
    %v1732 = vsel %vm1704, %v1693, -inf
    %1733 = vmax.xlane.f32.xlu0 %v1732
    %v1734 = vpop.xlane.xlu0 %1733
    %v1735 = vsel %vm1704, %v1694, -inf
    %1736 = vmax.xlane.f32.xlu0 %v1735
    %v1737 = vpop.xlane.xlu0 %1736
    %v1738 = vsel %vm1704, %v1695, -inf
    %1739 = vmax.xlane.f32.xlu0 %v1738
    %v1740 = vpop.xlane.xlu0 %1739
    %v1741 = vsel %vm1704, %v1696, -inf
    %1742 = vmax.xlane.f32.xlu0 %v1741
    %v1743 = vpop.xlane.xlu0 %1742
    %v1744 = vsel %vm1704, %v1697, -inf
    %1745 = vmax.xlane.f32.xlu0 %v1744
    %v1746 = vpop.xlane.xlu0 %1745
    %v1747 = vsel %vm1704, %v1698, -inf
    %1748 = vmax.xlane.f32.xlu0 %v1747
    %v1749 = vpop.xlane.xlu0 %1748
    %v1750 = vsel %vm1704, %v1699, -inf
    %1751 = vmax.xlane.f32.xlu0 %v1750
    %v1752 = vpop.xlane.xlu0 %1751
    %v1753 = vsel %vm1704, %v1700, -inf
    %1754 = vmax.xlane.f32.xlu0 %v1753
    %v1755 = vpop.xlane.xlu0 %1754
    %v1756 = vsel %vm1704, %v1701, -inf
    %1757 = vmax.xlane.f32.xlu0 %v1756
    %v1758 = vpop.xlane.xlu0 %1757
    %v1759 = vsel %vm1704, %v1702, -inf
    %1760 = vmax.xlane.f32.xlu0 %v1759
    %v1761 = vpop.xlane.xlu0 %1760
    %v1762 = vsel %vm1704, %v1703, -inf
    %1763 = vmax.xlane.f32.xlu0 %v1762
    %v1764 = vpop.xlane.xlu0 %1763
    %v1765 = vsub.f32 %v1684, %v1707
    %v1766 = vsub.f32 %v1685, %v1710
    %v1767 = vsub.f32 %v1686, %v1713
    %v1768 = vsub.f32 %v1687, %v1716
    %v1769 = vsub.f32 %v1688, %v1719
    %v1770 = vsub.f32 %v1689, %v1722
    %v1771 = vsub.f32 %v1690, %v1725
    %v1772 = vsub.f32 %v1691, %v1728
    %v1773 = vsub.f32 %v1692, %v1731
    %v1774 = vsub.f32 %v1693, %v1734
    %v1775 = vsub.f32 %v1694, %v1737
    %v1776 = vsub.f32 %v1695, %v1740
    %v1777 = vsub.f32 %v1696, %v1743
    %v1778 = vsub.f32 %v1697, %v1746
    %v1779 = vsub.f32 %v1698, %v1749
    %v1780 = vsub.f32 %v1699, %v1752
    %v1781 = vsub.f32 %v1700, %v1755
    %v1782 = vsub.f32 %v1701, %v1758
    %v1783 = vsub.f32 %v1702, %v1761
    %v1784 = vsub.f32 %v1703, %v1764
    %v1785 = vmul.f32 %v1765, 1.442695
    %v1786 = vpow.pop %v1785
    %v1787 = vmul.f32 %v1766, 1.442695
    %v1788 = vpow.pop %v1787
    %v1789 = vmul.f32 %v1767, 1.442695
    %v1790 = vpow.pop %v1789
    %v1791 = vmul.f32 %v1768, 1.442695
    %v1792 = vpow.pop %v1791
    %v1793 = vmul.f32 %v1769, 1.442695
    %v1794 = vpow.pop %v1793
    %v1795 = vmul.f32 %v1770, 1.442695
    %v1796 = vpow.pop %v1795
    %v1797 = vmul.f32 %v1771, 1.442695
    %v1798 = vpow.pop %v1797
    %v1799 = vmul.f32 %v1772, 1.442695
    %v1800 = vpow.pop %v1799
    %v1801 = vmul.f32 %v1773, 1.442695
    %v1802 = vpow.pop %v1801
    %v1803 = vmul.f32 %v1774, 1.442695
    %v1804 = vpow.pop %v1803
    %v1805 = vmul.f32 %v1775, 1.442695
    %v1806 = vpow.pop %v1805
    %v1807 = vmul.f32 %v1776, 1.442695
    %v1808 = vpow.pop %v1807
    %v1809 = vmul.f32 %v1777, 1.442695
    %v1810 = vpow.pop %v1809
    %v1811 = vmul.f32 %v1778, 1.442695
    %v1812 = vpow.pop %v1811
    %v1813 = vmul.f32 %v1779, 1.442695
    %v1814 = vpow.pop %v1813
    %v1815 = vmul.f32 %v1780, 1.442695
    %v1816 = vpow.pop %v1815
    %v1817 = vmul.f32 %v1781, 1.442695
    %v1818 = vpow.pop %v1817
    %v1819 = vmul.f32 %v1782, 1.442695
    %v1820 = vpow.pop %v1819
    %v1821 = vmul.f32 %v1783, 1.442695
    %v1822 = vpow.pop %v1821
    %v1823 = vmul.f32 %v1784, 1.442695
    %v1824 = vpow.pop %v1823
    %v1825 = vsel %vm1704, %v1786, 0.0
    %1826 = vadd.xlane.f32.xlu0 %v1825
    %v1827 = vpop.xlane.xlu0 %1826
    %v1828 = vsel %vm1704, %v1788, 0.0
    %1829 = vadd.xlane.f32.xlu0 %v1828
    %v1830 = vpop.xlane.xlu0 %1829
    %v1831 = vsel %vm1704, %v1790, 0.0
    %1832 = vadd.xlane.f32.xlu0 %v1831
    %v1833 = vpop.xlane.xlu0 %1832
    %v1834 = vsel %vm1704, %v1792, 0.0
    %1835 = vadd.xlane.f32.xlu0 %v1834
    %v1836 = vpop.xlane.xlu0 %1835
    %v1837 = vsel %vm1704, %v1794, 0.0
    %1838 = vadd.xlane.f32.xlu0 %v1837
    %v1839 = vpop.xlane.xlu0 %1838
    %v1840 = vsel %vm1704, %v1796, 0.0
    %1841 = vadd.xlane.f32.xlu0 %v1840
    %v1842 = vpop.xlane.xlu0 %1841
    %v1843 = vsel %vm1704, %v1798, 0.0
    %1844 = vadd.xlane.f32.xlu0 %v1843
    %v1845 = vpop.xlane.xlu0 %1844
    %v1846 = vsel %vm1704, %v1800, 0.0
    %1847 = vadd.xlane.f32.xlu0 %v1846
    %v1848 = vpop.xlane.xlu0 %1847
    %v1849 = vsel %vm1704, %v1802, 0.0
    %1850 = vadd.xlane.f32.xlu0 %v1849
    %v1851 = vpop.xlane.xlu0 %1850
    %v1852 = vsel %vm1704, %v1804, 0.0
    %1853 = vadd.xlane.f32.xlu0 %v1852
    %v1854 = vpop.xlane.xlu0 %1853
    %v1855 = vsel %vm1704, %v1806, 0.0
    %1856 = vadd.xlane.f32.xlu0 %v1855
    %v1857 = vpop.xlane.xlu0 %1856
    %v1858 = vsel %vm1704, %v1808, 0.0
    %1859 = vadd.xlane.f32.xlu0 %v1858
    %v1860 = vpop.xlane.xlu0 %1859
    %v1861 = vsel %vm1704, %v1810, 0.0
    %1862 = vadd.xlane.f32.xlu0 %v1861
    %v1863 = vpop.xlane.xlu0 %1862
    %v1864 = vsel %vm1704, %v1812, 0.0
    %1865 = vadd.xlane.f32.xlu0 %v1864
    %v1866 = vpop.xlane.xlu0 %1865
    %v1867 = vsel %vm1704, %v1814, 0.0
    %1868 = vadd.xlane.f32.xlu0 %v1867
    %v1869 = vpop.xlane.xlu0 %1868
    %v1870 = vsel %vm1704, %v1816, 0.0
    %1871 = vadd.xlane.f32.xlu0 %v1870
    %v1872 = vpop.xlane.xlu0 %1871
    %v1873 = vsel %vm1704, %v1818, 0.0
    %1874 = vadd.xlane.f32.xlu0 %v1873
    %v1875 = vpop.xlane.xlu0 %1874
    %v1876 = vsel %vm1704, %v1820, 0.0
    %1877 = vadd.xlane.f32.xlu0 %v1876
    %v1878 = vpop.xlane.xlu0 %1877
    %v1879 = vsel %vm1704, %v1822, 0.0
    %1880 = vadd.xlane.f32.xlu0 %v1879
    %v1881 = vpop.xlane.xlu0 %1880
    %v1882 = vsel %vm1704, %v1824, 0.0
    %1883 = vadd.xlane.f32.xlu0 %v1882
    %v1884 = vpop.xlane.xlu0 %1883
    %v1885 = vrcp.pop %v1827
    %v1886 = vrcp.pop %v1830
    %v1887 = vrcp.pop %v1833
    %v1888 = vrcp.pop %v1836
    %v1889 = vrcp.pop %v1839
    %v1890 = vrcp.pop %v1842
    %v1891 = vrcp.pop %v1845
    %v1892 = vrcp.pop %v1848
    %v1893 = vrcp.pop %v1851
    %v1894 = vrcp.pop %v1854
    %v1895 = vrcp.pop %v1857
    %v1896 = vrcp.pop %v1860
    %v1897 = vrcp.pop %v1863
    %v1898 = vrcp.pop %v1866
    %v1899 = vrcp.pop %v1869
    %v1900 = vrcp.pop %v1872
    %v1901 = vrcp.pop %v1875
    %v1902 = vrcp.pop %v1878
    %v1903 = vrcp.pop %v1881
    %v1904 = vrcp.pop %v1884
    %v1905 = vmul.f32 %v1786, %v1885
    %v1906 = vmul.f32 %v1788, %v1886
    %v1907 = vmul.f32 %v1790, %v1887
    %v1908 = vmul.f32 %v1792, %v1888
    %v1909 = vmul.f32 %v1794, %v1889
    %v1910 = vmul.f32 %v1796, %v1890
    %v1911 = vmul.f32 %v1798, %v1891
    %v1912 = vmul.f32 %v1800, %v1892
    %v1913 = vmul.f32 %v1802, %v1893
    %v1914 = vmul.f32 %v1804, %v1894
    %v1915 = vmul.f32 %v1806, %v1895
    %v1916 = vmul.f32 %v1808, %v1896
    %v1917 = vmul.f32 %v1810, %v1897
    %v1918 = vmul.f32 %v1812, %v1898
    %v1919 = vmul.f32 %v1814, %v1899
    %v1920 = vmul.f32 %v1816, %v1900
    %v1921 = vmul.f32 %v1818, %v1901
    %v1922 = vmul.f32 %v1820, %v1902
    %v1923 = vmul.f32 %v1822, %v1903
    %v1924 = vmul.f32 %v1824, %v1904
    %1925 = vrot.lane.b32.xlu0 %v119, 48
    %v1926 = vpop.permute.xlu0 %1925
    %v1929 = vsel %vm1704, %v1905, 0
    %1931 = vmatprep.subr.mxu0 0.0
    %1932 = vmatpush1.msra.mxu0 %v1926
    %1933 = vmatprep.subr.mxu0 0.0
    %1934 = vmatpush1.msra.mxu0 0.0
    %1935 = vmatprep.subr.mxu0 0.0
    %1936 = vmatpush1.msra.mxu0 0.0
    %1937 = vmatprep.subr.mxu0 0.0
    %1938 = vmatpush1.msra.mxu0 0.0
    %1939 = vmatprep.subr.mxu0 0.0
    %1940 = vmatpush1.msra.mxu0 0.0
    %1941 = vmatprep.subr.mxu0 0.0
    %1942 = vmatpush1.msra.mxu0 0.0
    %1943 = vmatprep.subr.mxu0 0.0
    %1944 = vmatpush1.msra.mxu0 0.0
    %1945 = vmatprep.subr.mxu0 0.0
    %1946 = vmatpush1.msra.mxu0 0.0
    %1947 = vmatprep.subr.mxu0 0.0
    %1948 = vmatpush1.msra.mxu0 0.0
    %1949 = vmatprep.subr.mxu0 0.0
    %1950 = vmatpush1.msra.mxu0 0.0
    %1951 = vmatprep.subr.mxu0 0.0
    %1952 = vmatpush1.msra.mxu0 0.0
    %1953 = vmatprep.subr.mxu0 0.0
    %1954 = vmatpush1.msra.mxu0 0.0
    %1955 = vmatprep.subr.mxu0 0.0
    %1956 = vmatpush1.msra.mxu0 0.0
    %1957 = vmatprep.subr.mxu0 0.0
    %1958 = vmatpush1.msra.mxu0 0.0
    %1959 = vmatprep.subr.mxu0 0.0
    %1960 = vmatpush1.msra.mxu0 0.0
    %1961 = vmatprep.subr.mxu0 0.0
    %1962 = vmatpush1.msra.mxu0 0.0
    %1963 = vmatprep.subr.mxu0 0.0
    %1964 = vmatpush1.msra.mxu0 0.0
    %1965 = vmatprep.subr.mxu0 0.0
    %1966 = vmatpush1.msra.mxu0 0.0
    %1967 = vmatprep.subr.mxu0 0.0
    %1968 = vmatpush1.msra.mxu0 0.0
    %1969 = vmatprep.subr.mxu0 0.0
    %1970 = vmatpush1.msra.mxu0 0.0
    %1971 = vmatprep.subr.mxu0 0.0
    %1972 = vmatpush1.msra.mxu0 0.0
    %1973 = vmatprep.subr.mxu0 0.0
    %1974 = vmatpush1.msra.mxu0 0.0
    %1975 = vmatprep.subr.mxu0 0.0
    %1976 = vmatpush1.msra.mxu0 0.0
    %1977 = vmatprep.subr.mxu0 0.0
    %1978 = vmatpush1.msra.mxu0 0.0
    %1979 = vmatprep.subr.mxu0 0.0
    %1980 = vmatpush1.msra.mxu0 0.0
    %1981 = vmatprep.subr.mxu0 0.0
    %1982 = vmatpush1.msra.mxu0 0.0
    %1983 = vmatprep.subr.mxu0 0.0
    %1984 = vmatpush1.msra.mxu0 0.0
    %1985 = vmatprep.subr.mxu0 0.0
    %1986 = vmatpush1.msra.mxu0 0.0
    %1987 = vmatprep.subr.mxu0 0.0
    %1988 = vmatpush1.msra.mxu0 0.0
    %1989 = vmatprep.subr.mxu0 0.0
    %1990 = vmatpush1.msra.mxu0 0.0
    %1991 = vmatprep.subr.mxu0 0.0
    %1992 = vmatpush1.msra.mxu0 0.0
    %1993 = vmatprep.subr.mxu0 0.0
    %1994 = vmatpush1.msra.mxu0 0.0
    %1995 = vmatprep.mubr.f32.mxu0 0.0
    %1996 = vmatmul.mubr.f32.gmra.mrb[0].mxu0 %v1929
    %v1997 = vpop.f32.mrb[0].mxu0
    %v1998 = vadd.f32 0.0, %v1997
    %v1999 = vpop.f32.mrb[0].mxu0
    %2000 = vdwg.mxu0
    %2001 = vrot.lane.b32.xlu0 %v122, 48
    %v2002 = vpop.permute.xlu0 %2001
    %v2005 = vsel %vm1704, %v1906, 0
    %2007 = vmatprep.subr.mxu0 0.0
    %2008 = vmatpush1.msra.mxu0 %v2002
    %2009 = vmatprep.subr.mxu0 0.0
    %2010 = vmatpush1.msra.mxu0 0.0
    %2011 = vmatprep.subr.mxu0 0.0
    %2012 = vmatpush1.msra.mxu0 0.0
    %2013 = vmatprep.subr.mxu0 0.0
    %2014 = vmatpush1.msra.mxu0 0.0
    %2015 = vmatprep.subr.mxu0 0.0
    %2016 = vmatpush1.msra.mxu0 0.0
    %2017 = vmatprep.subr.mxu0 0.0
    %2018 = vmatpush1.msra.mxu0 0.0
    %2019 = vmatprep.subr.mxu0 0.0
    %2020 = vmatpush1.msra.mxu0 0.0
    %2021 = vmatprep.subr.mxu0 0.0
    %2022 = vmatpush1.msra.mxu0 0.0
    %2023 = vmatprep.subr.mxu0 0.0
    %2024 = vmatpush1.msra.mxu0 0.0
    %2025 = vmatprep.subr.mxu0 0.0
    %2026 = vmatpush1.msra.mxu0 0.0
    %2027 = vmatprep.subr.mxu0 0.0
    %2028 = vmatpush1.msra.mxu0 0.0
    %2029 = vmatprep.subr.mxu0 0.0
    %2030 = vmatpush1.msra.mxu0 0.0
    %2031 = vmatprep.subr.mxu0 0.0
    %2032 = vmatpush1.msra.mxu0 0.0
    %2033 = vmatprep.subr.mxu0 0.0
    %2034 = vmatpush1.msra.mxu0 0.0
    %2035 = vmatprep.subr.mxu0 0.0
    %2036 = vmatpush1.msra.mxu0 0.0
    %2037 = vmatprep.subr.mxu0 0.0
    %2038 = vmatpush1.msra.mxu0 0.0
    %2039 = vmatprep.subr.mxu0 0.0
    %2040 = vmatpush1.msra.mxu0 0.0
    %2041 = vmatprep.subr.mxu0 0.0
    %2042 = vmatpush1.msra.mxu0 0.0
    %2043 = vmatprep.subr.mxu0 0.0
    %2044 = vmatpush1.msra.mxu0 0.0
    %2045 = vmatprep.subr.mxu0 0.0
    %2046 = vmatpush1.msra.mxu0 0.0
    %2047 = vmatprep.subr.mxu0 0.0
    %2048 = vmatpush1.msra.mxu0 0.0
    %2049 = vmatprep.subr.mxu0 0.0
    %2050 = vmatpush1.msra.mxu0 0.0
    %2051 = vmatprep.subr.mxu0 0.0
    %2052 = vmatpush1.msra.mxu0 0.0
    %2053 = vmatprep.subr.mxu0 0.0
    %2054 = vmatpush1.msra.mxu0 0.0
    %2055 = vmatprep.subr.mxu0 0.0
    %2056 = vmatpush1.msra.mxu0 0.0
    %2057 = vmatprep.subr.mxu0 0.0
    %2058 = vmatpush1.msra.mxu0 0.0
    %2059 = vmatprep.subr.mxu0 0.0
    %2060 = vmatpush1.msra.mxu0 0.0
    %2061 = vmatprep.subr.mxu0 0.0
    %2062 = vmatpush1.msra.mxu0 0.0
    %2063 = vmatprep.subr.mxu0 0.0
    %2064 = vmatpush1.msra.mxu0 0.0
    %2065 = vmatprep.subr.mxu0 0.0
    %2066 = vmatpush1.msra.mxu0 0.0
    %2067 = vmatprep.subr.mxu0 0.0
    %2068 = vmatpush1.msra.mxu0 0.0
    %2069 = vmatprep.subr.mxu0 0.0
    %2070 = vmatpush1.msra.mxu0 0.0
    %2071 = vmatprep.mubr.f32.mxu0 0.0
    %2072 = vmatmul.mubr.f32.gmra.mrb[0].mxu0 %v2005
    %v2073 = vpop.f32.mrb[0].mxu0
    %v2074 = vadd.f32 0.0, %v2073
    %v2075 = vpop.f32.mrb[0].mxu0
    %2076 = vdwg.mxu0
    %2077 = vrot.lane.b32.xlu0 %v128, 48
    %v2078 = vpop.permute.xlu0 %2077
    %v2081 = vsel %vm1704, %v1907, 0
    %2083 = vmatprep.subr.mxu0 0.0
    %2084 = vmatpush1.msra.mxu0 %v2078
    %2085 = vmatprep.subr.mxu0 0.0
    %2086 = vmatpush1.msra.mxu0 0.0
    %2087 = vmatprep.subr.mxu0 0.0
    %2088 = vmatpush1.msra.mxu0 0.0
    %2089 = vmatprep.subr.mxu0 0.0
    %2090 = vmatpush1.msra.mxu0 0.0
    %2091 = vmatprep.subr.mxu0 0.0
    %2092 = vmatpush1.msra.mxu0 0.0
    %2093 = vmatprep.subr.mxu0 0.0
    %2094 = vmatpush1.msra.mxu0 0.0
    %2095 = vmatprep.subr.mxu0 0.0
    %2096 = vmatpush1.msra.mxu0 0.0
    %2097 = vmatprep.subr.mxu0 0.0
    %2098 = vmatpush1.msra.mxu0 0.0
    %2099 = vmatprep.subr.mxu0 0.0
    %2100 = vmatpush1.msra.mxu0 0.0
    %2101 = vmatprep.subr.mxu0 0.0
    %2102 = vmatpush1.msra.mxu0 0.0
    %2103 = vmatprep.subr.mxu0 0.0
    %2104 = vmatpush1.msra.mxu0 0.0
    %2105 = vmatprep.subr.mxu0 0.0
    %2106 = vmatpush1.msra.mxu0 0.0
    %2107 = vmatprep.subr.mxu0 0.0
    %2108 = vmatpush1.msra.mxu0 0.0
    %2109 = vmatprep.subr.mxu0 0.0
    %2110 = vmatpush1.msra.mxu0 0.0
    %2111 = vmatprep.subr.mxu0 0.0
    %2112 = vmatpush1.msra.mxu0 0.0
    %2113 = vmatprep.subr.mxu0 0.0
    %2114 = vmatpush1.msra.mxu0 0.0
    %2115 = vmatprep.subr.mxu0 0.0
    %2116 = vmatpush1.msra.mxu0 0.0
    %2117 = vmatprep.subr.mxu0 0.0
    %2118 = vmatpush1.msra.mxu0 0.0
    %2119 = vmatprep.subr.mxu0 0.0
    %2120 = vmatpush1.msra.mxu0 0.0
    %2121 = vmatprep.subr.mxu0 0.0
    %2122 = vmatpush1.msra.mxu0 0.0
    %2123 = vmatprep.subr.mxu0 0.0
    %2124 = vmatpush1.msra.mxu0 0.0
    %2125 = vmatprep.subr.mxu0 0.0
    %2126 = vmatpush1.msra.mxu0 0.0
    %2127 = vmatprep.subr.mxu0 0.0
    %2128 = vmatpush1.msra.mxu0 0.0
    %2129 = vmatprep.subr.mxu0 0.0
    %2130 = vmatpush1.msra.mxu0 0.0
    %2131 = vmatprep.subr.mxu0 0.0
    %2132 = vmatpush1.msra.mxu0 0.0
    %2133 = vmatprep.subr.mxu0 0.0
    %2134 = vmatpush1.msra.mxu0 0.0
    %2135 = vmatprep.subr.mxu0 0.0
    %2136 = vmatpush1.msra.mxu0 0.0
    %2137 = vmatprep.subr.mxu0 0.0
    %2138 = vmatpush1.msra.mxu0 0.0
    %2139 = vmatprep.subr.mxu0 0.0
    %2140 = vmatpush1.msra.mxu0 0.0
    %2141 = vmatprep.subr.mxu0 0.0
    %2142 = vmatpush1.msra.mxu0 0.0
    %2143 = vmatprep.subr.mxu0 0.0
    %2144 = vmatpush1.msra.mxu0 0.0
    %2145 = vmatprep.subr.mxu0 0.0
    %2146 = vmatpush1.msra.mxu0 0.0
    %2147 = vmatprep.mubr.f32.mxu0 0.0
    %2148 = vmatmul.mubr.f32.gmra.mrb[0].mxu0 %v2081
    %v2149 = vpop.f32.mrb[0].mxu0
    %v2150 = vadd.f32 0.0, %v2149
    %v2151 = vpop.f32.mrb[0].mxu0
    %2152 = vdwg.mxu0
    %2153 = vrot.lane.b32.xlu0 %v130, 48
    %v2154 = vpop.permute.xlu0 %2153
    %v2157 = vsel %vm1704, %v1908, 0
    %2159 = vmatprep.subr.mxu0 0.0
    %2160 = vmatpush1.msra.mxu0 %v2154
    %2161 = vmatprep.subr.mxu0 0.0
    %2162 = vmatpush1.msra.mxu0 0.0
    %2163 = vmatprep.subr.mxu0 0.0
    %2164 = vmatpush1.msra.mxu0 0.0
    %2165 = vmatprep.subr.mxu0 0.0
    %2166 = vmatpush1.msra.mxu0 0.0
    %2167 = vmatprep.subr.mxu0 0.0
    %2168 = vmatpush1.msra.mxu0 0.0
    %2169 = vmatprep.subr.mxu0 0.0
    %2170 = vmatpush1.msra.mxu0 0.0
    %2171 = vmatprep.subr.mxu0 0.0
    %2172 = vmatpush1.msra.mxu0 0.0
    %2173 = vmatprep.subr.mxu0 0.0
    %2174 = vmatpush1.msra.mxu0 0.0
    %2175 = vmatprep.subr.mxu0 0.0
    %2176 = vmatpush1.msra.mxu0 0.0
    %2177 = vmatprep.subr.mxu0 0.0
    %2178 = vmatpush1.msra.mxu0 0.0
    %2179 = vmatprep.subr.mxu0 0.0
    %2180 = vmatpush1.msra.mxu0 0.0
    %2181 = vmatprep.subr.mxu0 0.0
    %2182 = vmatpush1.msra.mxu0 0.0
    %2183 = vmatprep.subr.mxu0 0.0
    %2184 = vmatpush1.msra.mxu0 0.0
    %2185 = vmatprep.subr.mxu0 0.0
    %2186 = vmatpush1.msra.mxu0 0.0
    %2187 = vmatprep.subr.mxu0 0.0
    %2188 = vmatpush1.msra.mxu0 0.0
    %2189 = vmatprep.subr.mxu0 0.0
    %2190 = vmatpush1.msra.mxu0 0.0
    %2191 = vmatprep.subr.mxu0 0.0
    %2192 = vmatpush1.msra.mxu0 0.0
    %2193 = vmatprep.subr.mxu0 0.0
    %2194 = vmatpush1.msra.mxu0 0.0
    %2195 = vmatprep.subr.mxu0 0.0
    %2196 = vmatpush1.msra.mxu0 0.0
    %2197 = vmatprep.subr.mxu0 0.0
    %2198 = vmatpush1.msra.mxu0 0.0
    %2199 = vmatprep.subr.mxu0 0.0
    %2200 = vmatpush1.msra.mxu0 0.0
    %2201 = vmatprep.subr.mxu0 0.0
    %2202 = vmatpush1.msra.mxu0 0.0
    %2203 = vmatprep.subr.mxu0 0.0
    %2204 = vmatpush1.msra.mxu0 0.0
    %2205 = vmatprep.subr.mxu0 0.0
    %2206 = vmatpush1.msra.mxu0 0.0
    %2207 = vmatprep.subr.mxu0 0.0
    %2208 = vmatpush1.msra.mxu0 0.0
    %2209 = vmatprep.subr.mxu0 0.0
    %2210 = vmatpush1.msra.mxu0 0.0
    %2211 = vmatprep.subr.mxu0 0.0
    %2212 = vmatpush1.msra.mxu0 0.0
    %2213 = vmatprep.subr.mxu0 0.0
    %2214 = vmatpush1.msra.mxu0 0.0
    %2215 = vmatprep.subr.mxu0 0.0
    %2216 = vmatpush1.msra.mxu0 0.0
    %2217 = vmatprep.subr.mxu0 0.0
    %2218 = vmatpush1.msra.mxu0 0.0
    %2219 = vmatprep.subr.mxu0 0.0
    %2220 = vmatpush1.msra.mxu0 0.0
    %2221 = vmatprep.subr.mxu0 0.0
    %2222 = vmatpush1.msra.mxu0 0.0
    %2223 = vmatprep.mubr.f32.mxu0 0.0
    %2224 = vmatmul.mubr.f32.gmra.mrb[0].mxu0 %v2157
    %v2225 = vpop.f32.mrb[0].mxu0
    %v2226 = vadd.f32 0.0, %v2225
    %v2227 = vpop.f32.mrb[0].mxu0
    %2228 = vdwg.mxu0
    %2229 = vrot.lane.b32.xlu0 %v132, 48
    %v2230 = vpop.permute.xlu0 %2229
    %v2233 = vsel %vm1704, %v1909, 0
    %2235 = vmatprep.subr.mxu0 0.0
    %2236 = vmatpush1.msra.mxu0 %v2230
    %2237 = vmatprep.subr.mxu0 0.0
    %2238 = vmatpush1.msra.mxu0 0.0
    %2239 = vmatprep.subr.mxu0 0.0
    %2240 = vmatpush1.msra.mxu0 0.0
    %2241 = vmatprep.subr.mxu0 0.0
    %2242 = vmatpush1.msra.mxu0 0.0
    %2243 = vmatprep.subr.mxu0 0.0
    %2244 = vmatpush1.msra.mxu0 0.0
    %2245 = vmatprep.subr.mxu0 0.0
    %2246 = vmatpush1.msra.mxu0 0.0
    %2247 = vmatprep.subr.mxu0 0.0
    %2248 = vmatpush1.msra.mxu0 0.0
    %2249 = vmatprep.subr.mxu0 0.0
    %2250 = vmatpush1.msra.mxu0 0.0
    %2251 = vmatprep.subr.mxu0 0.0
    %2252 = vmatpush1.msra.mxu0 0.0
    %2253 = vmatprep.subr.mxu0 0.0
    %2254 = vmatpush1.msra.mxu0 0.0
    %2255 = vmatprep.subr.mxu0 0.0
    %2256 = vmatpush1.msra.mxu0 0.0
    %2257 = vmatprep.subr.mxu0 0.0
    %2258 = vmatpush1.msra.mxu0 0.0
    %2259 = vmatprep.subr.mxu0 0.0
    %2260 = vmatpush1.msra.mxu0 0.0
    %2261 = vmatprep.subr.mxu0 0.0
    %2262 = vmatpush1.msra.mxu0 0.0
    %2263 = vmatprep.subr.mxu0 0.0
    %2264 = vmatpush1.msra.mxu0 0.0
    %2265 = vmatprep.subr.mxu0 0.0
    %2266 = vmatpush1.msra.mxu0 0.0
    %2267 = vmatprep.subr.mxu0 0.0
    %2268 = vmatpush1.msra.mxu0 0.0
    %2269 = vmatprep.subr.mxu0 0.0
    %2270 = vmatpush1.msra.mxu0 0.0
    %2271 = vmatprep.subr.mxu0 0.0
    %2272 = vmatpush1.msra.mxu0 0.0
    %2273 = vmatprep.subr.mxu0 0.0
    %2274 = vmatpush1.msra.mxu0 0.0
    %2275 = vmatprep.subr.mxu0 0.0
    %2276 = vmatpush1.msra.mxu0 0.0
    %2277 = vmatprep.subr.mxu0 0.0
    %2278 = vmatpush1.msra.mxu0 0.0
    %2279 = vmatprep.subr.mxu0 0.0
    %2280 = vmatpush1.msra.mxu0 0.0
    %2281 = vmatprep.subr.mxu0 0.0
    %2282 = vmatpush1.msra.mxu0 0.0
    %2283 = vmatprep.subr.mxu0 0.0
    %2284 = vmatpush1.msra.mxu0 0.0
    %2285 = vmatprep.subr.mxu0 0.0
    %2286 = vmatpush1.msra.mxu0 0.0
    %2287 = vmatprep.subr.mxu0 0.0
    %2288 = vmatpush1.msra.mxu0 0.0
    %2289 = vmatprep.subr.mxu0 0.0
    %2290 = vmatpush1.msra.mxu0 0.0
    %2291 = vmatprep.subr.mxu0 0.0
    %2292 = vmatpush1.msra.mxu0 0.0
    %2293 = vmatprep.subr.mxu0 0.0
    %2294 = vmatpush1.msra.mxu0 0.0
    %2295 = vmatprep.subr.mxu0 0.0
    %2296 = vmatpush1.msra.mxu0 0.0
    %2297 = vmatprep.subr.mxu0 0.0
    %2298 = vmatpush1.msra.mxu0 0.0
    %2299 = vmatprep.mubr.f32.mxu0 0.0
    %2300 = vmatmul.mubr.f32.gmra.mrb[0].mxu0 %v2233
    %v2301 = vpop.f32.mrb[0].mxu0
    %v2302 = vadd.f32 0.0, %v2301
    %v2303 = vpop.f32.mrb[0].mxu0
    %2304 = vdwg.mxu0
    %2305 = vrot.lane.b32.xlu0 %v134, 48
    %v2306 = vpop.permute.xlu0 %2305
    %v2309 = vsel %vm1704, %v1910, 0
    %2311 = vmatprep.subr.mxu0 0.0
    %2312 = vmatpush1.msra.mxu0 %v2306
    %2313 = vmatprep.subr.mxu0 0.0
    %2314 = vmatpush1.msra.mxu0 0.0
    %2315 = vmatprep.subr.mxu0 0.0
    %2316 = vmatpush1.msra.mxu0 0.0
    %2317 = vmatprep.subr.mxu0 0.0
    %2318 = vmatpush1.msra.mxu0 0.0
    %2319 = vmatprep.subr.mxu0 0.0
    %2320 = vmatpush1.msra.mxu0 0.0
    %2321 = vmatprep.subr.mxu0 0.0
    %2322 = vmatpush1.msra.mxu0 0.0
    %2323 = vmatprep.subr.mxu0 0.0
    %2324 = vmatpush1.msra.mxu0 0.0
    %2325 = vmatprep.subr.mxu0 0.0
    %2326 = vmatpush1.msra.mxu0 0.0
    %2327 = vmatprep.subr.mxu0 0.0
    %2328 = vmatpush1.msra.mxu0 0.0
    %2329 = vmatprep.subr.mxu0 0.0
    %2330 = vmatpush1.msra.mxu0 0.0
    %2331 = vmatprep.subr.mxu0 0.0
    %2332 = vmatpush1.msra.mxu0 0.0
    %2333 = vmatprep.subr.mxu0 0.0
    %2334 = vmatpush1.msra.mxu0 0.0
    %2335 = vmatprep.subr.mxu0 0.0
    %2336 = vmatpush1.msra.mxu0 0.0
    %2337 = vmatprep.subr.mxu0 0.0
    %2338 = vmatpush1.msra.mxu0 0.0
    %2339 = vmatprep.subr.mxu0 0.0
    %2340 = vmatpush1.msra.mxu0 0.0
    %2341 = vmatprep.subr.mxu0 0.0
    %2342 = vmatpush1.msra.mxu0 0.0
    %2343 = vmatprep.subr.mxu0 0.0
    %2344 = vmatpush1.msra.mxu0 0.0
    %2345 = vmatprep.subr.mxu0 0.0
    %2346 = vmatpush1.msra.mxu0 0.0
    %2347 = vmatprep.subr.mxu0 0.0
    %2348 = vmatpush1.msra.mxu0 0.0
    %2349 = vmatprep.subr.mxu0 0.0
    %2350 = vmatpush1.msra.mxu0 0.0
    %2351 = vmatprep.subr.mxu0 0.0
    %2352 = vmatpush1.msra.mxu0 0.0
    %2353 = vmatprep.subr.mxu0 0.0
    %2354 = vmatpush1.msra.mxu0 0.0
    %2355 = vmatprep.subr.mxu0 0.0
    %2356 = vmatpush1.msra.mxu0 0.0
    %2357 = vmatprep.subr.mxu0 0.0
    %2358 = vmatpush1.msra.mxu0 0.0
    %2359 = vmatprep.subr.mxu0 0.0
    %2360 = vmatpush1.msra.mxu0 0.0
    %2361 = vmatprep.subr.mxu0 0.0
    %2362 = vmatpush1.msra.mxu0 0.0
    %2363 = vmatprep.subr.mxu0 0.0
    %2364 = vmatpush1.msra.mxu0 0.0
    %2365 = vmatprep.subr.mxu0 0.0
    %2366 = vmatpush1.msra.mxu0 0.0
    %2367 = vmatprep.subr.mxu0 0.0
    %2368 = vmatpush1.msra.mxu0 0.0
    %2369 = vmatprep.subr.mxu0 0.0
    %2370 = vmatpush1.msra.mxu0 0.0
    %2371 = vmatprep.subr.mxu0 0.0
    %2372 = vmatpush1.msra.mxu0 0.0
    %2373 = vmatprep.subr.mxu0 0.0
    %2374 = vmatpush1.msra.mxu0 0.0
    %2375 = vmatprep.mubr.f32.mxu0 0.0
    %2376 = vmatmul.mubr.f32.gmra.mrb[0].mxu0 %v2309
    %v2377 = vpop.f32.mrb[0].mxu0
    %v2378 = vadd.f32 0.0, %v2377
    %v2379 = vpop.f32.mrb[0].mxu0
    %2380 = vdwg.mxu0
    %2381 = vrot.lane.b32.xlu0 %v136, 48
    %v2382 = vpop.permute.xlu0 %2381
    %v2385 = vsel %vm1704, %v1911, 0
    %2387 = vmatprep.subr.mxu0 0.0
    %2388 = vmatpush1.msra.mxu0 %v2382
    %2389 = vmatprep.subr.mxu0 0.0
    %2390 = vmatpush1.msra.mxu0 0.0
    %2391 = vmatprep.subr.mxu0 0.0
    %2392 = vmatpush1.msra.mxu0 0.0
    %2393 = vmatprep.subr.mxu0 0.0
    %2394 = vmatpush1.msra.mxu0 0.0
    %2395 = vmatprep.subr.mxu0 0.0
    %2396 = vmatpush1.msra.mxu0 0.0
    %2397 = vmatprep.subr.mxu0 0.0
    %2398 = vmatpush1.msra.mxu0 0.0
    %2399 = vmatprep.subr.mxu0 0.0
    %2400 = vmatpush1.msra.mxu0 0.0
    %2401 = vmatprep.subr.mxu0 0.0
    %2402 = vmatpush1.msra.mxu0 0.0
    %2403 = vmatprep.subr.mxu0 0.0
    %2404 = vmatpush1.msra.mxu0 0.0
    %2405 = vmatprep.subr.mxu0 0.0
    %2406 = vmatpush1.msra.mxu0 0.0
    %2407 = vmatprep.subr.mxu0 0.0
    %2408 = vmatpush1.msra.mxu0 0.0
    %2409 = vmatprep.subr.mxu0 0.0
    %2410 = vmatpush1.msra.mxu0 0.0
    %2411 = vmatprep.subr.mxu0 0.0
    %2412 = vmatpush1.msra.mxu0 0.0
    %2413 = vmatprep.subr.mxu0 0.0
    %2414 = vmatpush1.msra.mxu0 0.0
    %2415 = vmatprep.subr.mxu0 0.0
    %2416 = vmatpush1.msra.mxu0 0.0
    %2417 = vmatprep.subr.mxu0 0.0
    %2418 = vmatpush1.msra.mxu0 0.0
    %2419 = vmatprep.subr.mxu0 0.0
    %2420 = vmatpush1.msra.mxu0 0.0
    %2421 = vmatprep.subr.mxu0 0.0
    %2422 = vmatpush1.msra.mxu0 0.0
    %2423 = vmatprep.subr.mxu0 0.0
    %2424 = vmatpush1.msra.mxu0 0.0
    %2425 = vmatprep.subr.mxu0 0.0
    %2426 = vmatpush1.msra.mxu0 0.0
    %2427 = vmatprep.subr.mxu0 0.0
    %2428 = vmatpush1.msra.mxu0 0.0
    %2429 = vmatprep.subr.mxu0 0.0
    %2430 = vmatpush1.msra.mxu0 0.0
    %2431 = vmatprep.subr.mxu0 0.0
    %2432 = vmatpush1.msra.mxu0 0.0
    %2433 = vmatprep.subr.mxu0 0.0
    %2434 = vmatpush1.msra.mxu0 0.0
    %2435 = vmatprep.subr.mxu0 0.0
    %2436 = vmatpush1.msra.mxu0 0.0
    %2437 = vmatprep.subr.mxu0 0.0
    %2438 = vmatpush1.msra.mxu0 0.0
    %2439 = vmatprep.subr.mxu0 0.0
    %2440 = vmatpush1.msra.mxu0 0.0
    %2441 = vmatprep.subr.mxu0 0.0
    %2442 = vmatpush1.msra.mxu0 0.0
    %2443 = vmatprep.subr.mxu0 0.0
    %2444 = vmatpush1.msra.mxu0 0.0
    %2445 = vmatprep.subr.mxu0 0.0
    %2446 = vmatpush1.msra.mxu0 0.0
    %2447 = vmatprep.subr.mxu0 0.0
    %2448 = vmatpush1.msra.mxu0 0.0
    %2449 = vmatprep.subr.mxu0 0.0
    %2450 = vmatpush1.msra.mxu0 0.0
    %2451 = vmatprep.mubr.f32.mxu0 0.0
    %2452 = vmatmul.mubr.f32.gmra.mrb[0].mxu0 %v2385
    %v2453 = vpop.f32.mrb[0].mxu0
    %v2454 = vadd.f32 0.0, %v2453
    %v2455 = vpop.f32.mrb[0].mxu0
    %2456 = vdwg.mxu0
    %2457 = vrot.lane.b32.xlu0 %v138, 48
    %v2458 = vpop.permute.xlu0 %2457
    %v2461 = vsel %vm1704, %v1912, 0
    %2463 = vmatprep.subr.mxu0 0.0
    %2464 = vmatpush1.msra.mxu0 %v2458
    %2465 = vmatprep.subr.mxu0 0.0
    %2466 = vmatpush1.msra.mxu0 0.0
    %2467 = vmatprep.subr.mxu0 0.0
    %2468 = vmatpush1.msra.mxu0 0.0
    %2469 = vmatprep.subr.mxu0 0.0
    %2470 = vmatpush1.msra.mxu0 0.0
    %2471 = vmatprep.subr.mxu0 0.0
    %2472 = vmatpush1.msra.mxu0 0.0
    %2473 = vmatprep.subr.mxu0 0.0
    %2474 = vmatpush1.msra.mxu0 0.0
    %2475 = vmatprep.subr.mxu0 0.0
    %2476 = vmatpush1.msra.mxu0 0.0
    %2477 = vmatprep.subr.mxu0 0.0
    %2478 = vmatpush1.msra.mxu0 0.0
    %2479 = vmatprep.subr.mxu0 0.0
    %2480 = vmatpush1.msra.mxu0 0.0
    %2481 = vmatprep.subr.mxu0 0.0
    %2482 = vmatpush1.msra.mxu0 0.0
    %2483 = vmatprep.subr.mxu0 0.0
    %2484 = vmatpush1.msra.mxu0 0.0
    %2485 = vmatprep.subr.mxu0 0.0
    %2486 = vmatpush1.msra.mxu0 0.0
    %2487 = vmatprep.subr.mxu0 0.0
    %2488 = vmatpush1.msra.mxu0 0.0
    %2489 = vmatprep.subr.mxu0 0.0
    %2490 = vmatpush1.msra.mxu0 0.0
    %2491 = vmatprep.subr.mxu0 0.0
    %2492 = vmatpush1.msra.mxu0 0.0
    %2493 = vmatprep.subr.mxu0 0.0
    %2494 = vmatpush1.msra.mxu0 0.0
    %2495 = vmatprep.subr.mxu0 0.0
    %2496 = vmatpush1.msra.mxu0 0.0
    %2497 = vmatprep.subr.mxu0 0.0
    %2498 = vmatpush1.msra.mxu0 0.0
    %2499 = vmatprep.subr.mxu0 0.0
    %2500 = vmatpush1.msra.mxu0 0.0
    %2501 = vmatprep.subr.mxu0 0.0
    %2502 = vmatpush1.msra.mxu0 0.0
    %2503 = vmatprep.subr.mxu0 0.0
    %2504 = vmatpush1.msra.mxu0 0.0
    %2505 = vmatprep.subr.mxu0 0.0
    %2506 = vmatpush1.msra.mxu0 0.0
    %2507 = vmatprep.subr.mxu0 0.0
    %2508 = vmatpush1.msra.mxu0 0.0
    %2509 = vmatprep.subr.mxu0 0.0
    %2510 = vmatpush1.msra.mxu0 0.0
    %2511 = vmatprep.subr.mxu0 0.0
    %2512 = vmatpush1.msra.mxu0 0.0
    %2513 = vmatprep.subr.mxu0 0.0
    %2514 = vmatpush1.msra.mxu0 0.0
    %2515 = vmatprep.subr.mxu0 0.0
    %2516 = vmatpush1.msra.mxu0 0.0
    %2517 = vmatprep.subr.mxu0 0.0
    %2518 = vmatpush1.msra.mxu0 0.0
    %2519 = vmatprep.subr.mxu0 0.0
    %2520 = vmatpush1.msra.mxu0 0.0
    %2521 = vmatprep.subr.mxu0 0.0
    %2522 = vmatpush1.msra.mxu0 0.0
    %2523 = vmatprep.subr.mxu0 0.0
    %2524 = vmatpush1.msra.mxu0 0.0
    %2525 = vmatprep.subr.mxu0 0.0
    %2526 = vmatpush1.msra.mxu0 0.0
    %2527 = vmatprep.mubr.f32.mxu0 0.0
    %2528 = vmatmul.mubr.f32.gmra.mrb[0].mxu0 %v2461
    %v2529 = vpop.f32.mrb[0].mxu0
    %v2530 = vadd.f32 0.0, %v2529
    %v2531 = vpop.f32.mrb[0].mxu0
    %2532 = vdwg.mxu0
    %2533 = vrot.lane.b32.xlu0 %v140, 48
    %v2534 = vpop.permute.xlu0 %2533
    %v2537 = vsel %vm1704, %v1913, 0
    %2539 = vmatprep.subr.mxu0 0.0
    %2540 = vmatpush1.msra.mxu0 %v2534
    %2541 = vmatprep.subr.mxu0 0.0
    %2542 = vmatpush1.msra.mxu0 0.0
    %2543 = vmatprep.subr.mxu0 0.0
    %2544 = vmatpush1.msra.mxu0 0.0
    %2545 = vmatprep.subr.mxu0 0.0
    %2546 = vmatpush1.msra.mxu0 0.0
    %2547 = vmatprep.subr.mxu0 0.0
    %2548 = vmatpush1.msra.mxu0 0.0
    %2549 = vmatprep.subr.mxu0 0.0
    %2550 = vmatpush1.msra.mxu0 0.0
    %2551 = vmatprep.subr.mxu0 0.0
    %2552 = vmatpush1.msra.mxu0 0.0
    %2553 = vmatprep.subr.mxu0 0.0
    %2554 = vmatpush1.msra.mxu0 0.0
    %2555 = vmatprep.subr.mxu0 0.0
    %2556 = vmatpush1.msra.mxu0 0.0
    %2557 = vmatprep.subr.mxu0 0.0
    %2558 = vmatpush1.msra.mxu0 0.0
    %2559 = vmatprep.subr.mxu0 0.0
    %2560 = vmatpush1.msra.mxu0 0.0
    %2561 = vmatprep.subr.mxu0 0.0
    %2562 = vmatpush1.msra.mxu0 0.0
    %2563 = vmatprep.subr.mxu0 0.0
    %2564 = vmatpush1.msra.mxu0 0.0
    %2565 = vmatprep.subr.mxu0 0.0
    %2566 = vmatpush1.msra.mxu0 0.0
    %2567 = vmatprep.subr.mxu0 0.0
    %2568 = vmatpush1.msra.mxu0 0.0
    %2569 = vmatprep.subr.mxu0 0.0
    %2570 = vmatpush1.msra.mxu0 0.0
    %2571 = vmatprep.subr.mxu0 0.0
    %2572 = vmatpush1.msra.mxu0 0.0
    %2573 = vmatprep.subr.mxu0 0.0
    %2574 = vmatpush1.msra.mxu0 0.0
    %2575 = vmatprep.subr.mxu0 0.0
    %2576 = vmatpush1.msra.mxu0 0.0
    %2577 = vmatprep.subr.mxu0 0.0
    %2578 = vmatpush1.msra.mxu0 0.0
    %2579 = vmatprep.subr.mxu0 0.0
    %2580 = vmatpush1.msra.mxu0 0.0
    %2581 = vmatprep.subr.mxu0 0.0
    %2582 = vmatpush1.msra.mxu0 0.0
    %2583 = vmatprep.subr.mxu0 0.0
    %2584 = vmatpush1.msra.mxu0 0.0
    %2585 = vmatprep.subr.mxu0 0.0
    %2586 = vmatpush1.msra.mxu0 0.0
    %2587 = vmatprep.subr.mxu0 0.0
    %2588 = vmatpush1.msra.mxu0 0.0
    %2589 = vmatprep.subr.mxu0 0.0
    %2590 = vmatpush1.msra.mxu0 0.0
    %2591 = vmatprep.subr.mxu0 0.0
    %2592 = vmatpush1.msra.mxu0 0.0
    %2593 = vmatprep.subr.mxu0 0.0
    %2594 = vmatpush1.msra.mxu0 0.0
    %2595 = vmatprep.subr.mxu0 0.0
    %2596 = vmatpush1.msra.mxu0 0.0
    %2597 = vmatprep.subr.mxu0 0.0
    %2598 = vmatpush1.msra.mxu0 0.0
    %2599 = vmatprep.subr.mxu0 0.0
    %2600 = vmatpush1.msra.mxu0 0.0
    %2601 = vmatprep.subr.mxu0 0.0
    %2602 = vmatpush1.msra.mxu0 0.0
    %2603 = vmatprep.mubr.f32.mxu0 0.0
    %2604 = vmatmul.mubr.f32.gmra.mrb[0].mxu0 %v2537
    %v2605 = vpop.f32.mrb[0].mxu0
    %v2606 = vadd.f32 0.0, %v2605
    %v2607 = vpop.f32.mrb[0].mxu0
    %2608 = vdwg.mxu0
    %2609 = vrot.lane.b32.xlu0 %v142, 48
    %v2610 = vpop.permute.xlu0 %2609
    %v2613 = vsel %vm1704, %v1914, 0
    %2615 = vmatprep.subr.mxu0 0.0
    %2616 = vmatpush1.msra.mxu0 %v2610
    %2617 = vmatprep.subr.mxu0 0.0
    %2618 = vmatpush1.msra.mxu0 0.0
    %2619 = vmatprep.subr.mxu0 0.0
    %2620 = vmatpush1.msra.mxu0 0.0
    %2621 = vmatprep.subr.mxu0 0.0
    %2622 = vmatpush1.msra.mxu0 0.0
    %2623 = vmatprep.subr.mxu0 0.0
    %2624 = vmatpush1.msra.mxu0 0.0
    %2625 = vmatprep.subr.mxu0 0.0
    %2626 = vmatpush1.msra.mxu0 0.0
    %2627 = vmatprep.subr.mxu0 0.0
    %2628 = vmatpush1.msra.mxu0 0.0
    %2629 = vmatprep.subr.mxu0 0.0
    %2630 = vmatpush1.msra.mxu0 0.0
    %2631 = vmatprep.subr.mxu0 0.0
    %2632 = vmatpush1.msra.mxu0 0.0
    %2633 = vmatprep.subr.mxu0 0.0
    %2634 = vmatpush1.msra.mxu0 0.0
    %2635 = vmatprep.subr.mxu0 0.0
    %2636 = vmatpush1.msra.mxu0 0.0
    %2637 = vmatprep.subr.mxu0 0.0
    %2638 = vmatpush1.msra.mxu0 0.0
    %2639 = vmatprep.subr.mxu0 0.0
    %2640 = vmatpush1.msra.mxu0 0.0
    %2641 = vmatprep.subr.mxu0 0.0
    %2642 = vmatpush1.msra.mxu0 0.0
    %2643 = vmatprep.subr.mxu0 0.0
    %2644 = vmatpush1.msra.mxu0 0.0
    %2645 = vmatprep.subr.mxu0 0.0
    %2646 = vmatpush1.msra.mxu0 0.0
    %2647 = vmatprep.subr.mxu0 0.0
    %2648 = vmatpush1.msra.mxu0 0.0
    %2649 = vmatprep.subr.mxu0 0.0
    %2650 = vmatpush1.msra.mxu0 0.0
    %2651 = vmatprep.subr.mxu0 0.0
    %2652 = vmatpush1.msra.mxu0 0.0
    %2653 = vmatprep.subr.mxu0 0.0
    %2654 = vmatpush1.msra.mxu0 0.0
    %2655 = vmatprep.subr.mxu0 0.0
    %2656 = vmatpush1.msra.mxu0 0.0
    %2657 = vmatprep.subr.mxu0 0.0
    %2658 = vmatpush1.msra.mxu0 0.0
    %2659 = vmatprep.subr.mxu0 0.0
    %2660 = vmatpush1.msra.mxu0 0.0
    %2661 = vmatprep.subr.mxu0 0.0
    %2662 = vmatpush1.msra.mxu0 0.0
    %2663 = vmatprep.subr.mxu0 0.0
    %2664 = vmatpush1.msra.mxu0 0.0
    %2665 = vmatprep.subr.mxu0 0.0
    %2666 = vmatpush1.msra.mxu0 0.0
    %2667 = vmatprep.subr.mxu0 0.0
    %2668 = vmatpush1.msra.mxu0 0.0
    %2669 = vmatprep.subr.mxu0 0.0
    %2670 = vmatpush1.msra.mxu0 0.0
    %2671 = vmatprep.subr.mxu0 0.0
    %2672 = vmatpush1.msra.mxu0 0.0
    %2673 = vmatprep.subr.mxu0 0.0
    %2674 = vmatpush1.msra.mxu0 0.0
    %2675 = vmatprep.subr.mxu0 0.0
    %2676 = vmatpush1.msra.mxu0 0.0
    %2677 = vmatprep.subr.mxu0 0.0
    %2678 = vmatpush1.msra.mxu0 0.0
    %2679 = vmatprep.mubr.f32.mxu0 0.0
    %2680 = vmatmul.mubr.f32.gmra.mrb[0].mxu0 %v2613
    %v2681 = vpop.f32.mrb[0].mxu0
    %v2682 = vadd.f32 0.0, %v2681
    %v2683 = vpop.f32.mrb[0].mxu0
    %2684 = vdwg.mxu0
    %2685 = vrot.lane.b32.xlu0 %v144, 48
    %v2686 = vpop.permute.xlu0 %2685
    %v2689 = vsel %vm1704, %v1915, 0
    %2691 = vmatprep.subr.mxu0 0.0
    %2692 = vmatpush1.msra.mxu0 %v2686
    %2693 = vmatprep.subr.mxu0 0.0
    %2694 = vmatpush1.msra.mxu0 0.0
    %2695 = vmatprep.subr.mxu0 0.0
    %2696 = vmatpush1.msra.mxu0 0.0
    %2697 = vmatprep.subr.mxu0 0.0
    %2698 = vmatpush1.msra.mxu0 0.0
    %2699 = vmatprep.subr.mxu0 0.0
    %2700 = vmatpush1.msra.mxu0 0.0
    %2701 = vmatprep.subr.mxu0 0.0
    %2702 = vmatpush1.msra.mxu0 0.0
    %2703 = vmatprep.subr.mxu0 0.0
    %2704 = vmatpush1.msra.mxu0 0.0
    %2705 = vmatprep.subr.mxu0 0.0
    %2706 = vmatpush1.msra.mxu0 0.0
    %2707 = vmatprep.subr.mxu0 0.0
    %2708 = vmatpush1.msra.mxu0 0.0
    %2709 = vmatprep.subr.mxu0 0.0
    %2710 = vmatpush1.msra.mxu0 0.0
    %2711 = vmatprep.subr.mxu0 0.0
    %2712 = vmatpush1.msra.mxu0 0.0
    %2713 = vmatprep.subr.mxu0 0.0
    %2714 = vmatpush1.msra.mxu0 0.0
    %2715 = vmatprep.subr.mxu0 0.0
    %2716 = vmatpush1.msra.mxu0 0.0
    %2717 = vmatprep.subr.mxu0 0.0
    %2718 = vmatpush1.msra.mxu0 0.0
    %2719 = vmatprep.subr.mxu0 0.0
    %2720 = vmatpush1.msra.mxu0 0.0
    %2721 = vmatprep.subr.mxu0 0.0
    %2722 = vmatpush1.msra.mxu0 0.0
    %2723 = vmatprep.subr.mxu0 0.0
    %2724 = vmatpush1.msra.mxu0 0.0
    %2725 = vmatprep.subr.mxu0 0.0
    %2726 = vmatpush1.msra.mxu0 0.0
    %2727 = vmatprep.subr.mxu0 0.0
    %2728 = vmatpush1.msra.mxu0 0.0
    %2729 = vmatprep.subr.mxu0 0.0
    %2730 = vmatpush1.msra.mxu0 0.0
    %2731 = vmatprep.subr.mxu0 0.0
    %2732 = vmatpush1.msra.mxu0 0.0
    %2733 = vmatprep.subr.mxu0 0.0
    %2734 = vmatpush1.msra.mxu0 0.0
    %2735 = vmatprep.subr.mxu0 0.0
    %2736 = vmatpush1.msra.mxu0 0.0
    %2737 = vmatprep.subr.mxu0 0.0
    %2738 = vmatpush1.msra.mxu0 0.0
    %2739 = vmatprep.subr.mxu0 0.0
    %2740 = vmatpush1.msra.mxu0 0.0
    %2741 = vmatprep.subr.mxu0 0.0
    %2742 = vmatpush1.msra.mxu0 0.0
    %2743 = vmatprep.subr.mxu0 0.0
    %2744 = vmatpush1.msra.mxu0 0.0
    %2745 = vmatprep.subr.mxu0 0.0
    %2746 = vmatpush1.msra.mxu0 0.0
    %2747 = vmatprep.subr.mxu0 0.0
    %2748 = vmatpush1.msra.mxu0 0.0
    %2749 = vmatprep.subr.mxu0 0.0
    %2750 = vmatpush1.msra.mxu0 0.0
    %2751 = vmatprep.subr.mxu0 0.0
    %2752 = vmatpush1.msra.mxu0 0.0
    %2753 = vmatprep.subr.mxu0 0.0
    %2754 = vmatpush1.msra.mxu0 0.0
    %2755 = vmatprep.mubr.f32.mxu0 0.0
    %2756 = vmatmul.mubr.f32.gmra.mrb[0].mxu0 %v2689
    %v2757 = vpop.f32.mrb[0].mxu0
    %v2758 = vadd.f32 0.0, %v2757
    %v2759 = vpop.f32.mrb[0].mxu0
    %2760 = vdwg.mxu0
    %2761 = vrot.lane.b32.xlu0 %v146, 48
    %v2762 = vpop.permute.xlu0 %2761
    %v2765 = vsel %vm1704, %v1916, 0
    %2767 = vmatprep.subr.mxu0 0.0
    %2768 = vmatpush1.msra.mxu0 %v2762
    %2769 = vmatprep.subr.mxu0 0.0
    %2770 = vmatpush1.msra.mxu0 0.0
    %2771 = vmatprep.subr.mxu0 0.0
    %2772 = vmatpush1.msra.mxu0 0.0
    %2773 = vmatprep.subr.mxu0 0.0
    %2774 = vmatpush1.msra.mxu0 0.0
    %2775 = vmatprep.subr.mxu0 0.0
    %2776 = vmatpush1.msra.mxu0 0.0
    %2777 = vmatprep.subr.mxu0 0.0
    %2778 = vmatpush1.msra.mxu0 0.0
    %2779 = vmatprep.subr.mxu0 0.0
    %2780 = vmatpush1.msra.mxu0 0.0
    %2781 = vmatprep.subr.mxu0 0.0
    %2782 = vmatpush1.msra.mxu0 0.0
    %2783 = vmatprep.subr.mxu0 0.0
    %2784 = vmatpush1.msra.mxu0 0.0
    %2785 = vmatprep.subr.mxu0 0.0
    %2786 = vmatpush1.msra.mxu0 0.0
    %2787 = vmatprep.subr.mxu0 0.0
    %2788 = vmatpush1.msra.mxu0 0.0
    %2789 = vmatprep.subr.mxu0 0.0
    %2790 = vmatpush1.msra.mxu0 0.0
    %2791 = vmatprep.subr.mxu0 0.0
    %2792 = vmatpush1.msra.mxu0 0.0
    %2793 = vmatprep.subr.mxu0 0.0
    %2794 = vmatpush1.msra.mxu0 0.0
    %2795 = vmatprep.subr.mxu0 0.0
    %2796 = vmatpush1.msra.mxu0 0.0
    %2797 = vmatprep.subr.mxu0 0.0
    %2798 = vmatpush1.msra.mxu0 0.0
    %2799 = vmatprep.subr.mxu0 0.0
    %2800 = vmatpush1.msra.mxu0 0.0
    %2801 = vmatprep.subr.mxu0 0.0
    %2802 = vmatpush1.msra.mxu0 0.0
    %2803 = vmatprep.subr.mxu0 0.0
    %2804 = vmatpush1.msra.mxu0 0.0
    %2805 = vmatprep.subr.mxu0 0.0
    %2806 = vmatpush1.msra.mxu0 0.0
    %2807 = vmatprep.subr.mxu0 0.0
    %2808 = vmatpush1.msra.mxu0 0.0
    %2809 = vmatprep.subr.mxu0 0.0
    %2810 = vmatpush1.msra.mxu0 0.0
    %2811 = vmatprep.subr.mxu0 0.0
    %2812 = vmatpush1.msra.mxu0 0.0
    %2813 = vmatprep.subr.mxu0 0.0
    %2814 = vmatpush1.msra.mxu0 0.0
    %2815 = vmatprep.subr.mxu0 0.0
    %2816 = vmatpush1.msra.mxu0 0.0
    %2817 = vmatprep.subr.mxu0 0.0
    %2818 = vmatpush1.msra.mxu0 0.0
    %2819 = vmatprep.subr.mxu0 0.0
    %2820 = vmatpush1.msra.mxu0 0.0
    %2821 = vmatprep.subr.mxu0 0.0
    %2822 = vmatpush1.msra.mxu0 0.0
    %2823 = vmatprep.subr.mxu0 0.0
    %2824 = vmatpush1.msra.mxu0 0.0
    %2825 = vmatprep.subr.mxu0 0.0
    %2826 = vmatpush1.msra.mxu0 0.0
    %2827 = vmatprep.subr.mxu0 0.0
    %2828 = vmatpush1.msra.mxu0 0.0
    %2829 = vmatprep.subr.mxu0 0.0
    %2830 = vmatpush1.msra.mxu0 0.0
    %2831 = vmatprep.mubr.f32.mxu0 0.0
    %2832 = vmatmul.mubr.f32.gmra.mrb[0].mxu0 %v2765
    %v2833 = vpop.f32.mrb[0].mxu0
    %v2834 = vadd.f32 0.0, %v2833
    %v2835 = vpop.f32.mrb[0].mxu0
    %2836 = vdwg.mxu0
    %2837 = vrot.lane.b32.xlu0 %v148, 48
    %v2838 = vpop.permute.xlu0 %2837
    %v2841 = vsel %vm1704, %v1917, 0
    %2843 = vmatprep.subr.mxu0 0.0
    %2844 = vmatpush1.msra.mxu0 %v2838
    %2845 = vmatprep.subr.mxu0 0.0
    %2846 = vmatpush1.msra.mxu0 0.0
    %2847 = vmatprep.subr.mxu0 0.0
    %2848 = vmatpush1.msra.mxu0 0.0
    %2849 = vmatprep.subr.mxu0 0.0
    %2850 = vmatpush1.msra.mxu0 0.0
    %2851 = vmatprep.subr.mxu0 0.0
    %2852 = vmatpush1.msra.mxu0 0.0
    %2853 = vmatprep.subr.mxu0 0.0
    %2854 = vmatpush1.msra.mxu0 0.0
    %2855 = vmatprep.subr.mxu0 0.0
    %2856 = vmatpush1.msra.mxu0 0.0
    %2857 = vmatprep.subr.mxu0 0.0
    %2858 = vmatpush1.msra.mxu0 0.0
    %2859 = vmatprep.subr.mxu0 0.0
    %2860 = vmatpush1.msra.mxu0 0.0
    %2861 = vmatprep.subr.mxu0 0.0
    %2862 = vmatpush1.msra.mxu0 0.0
    %2863 = vmatprep.subr.mxu0 0.0
    %2864 = vmatpush1.msra.mxu0 0.0
    %2865 = vmatprep.subr.mxu0 0.0
    %2866 = vmatpush1.msra.mxu0 0.0
    %2867 = vmatprep.subr.mxu0 0.0
    %2868 = vmatpush1.msra.mxu0 0.0
    %2869 = vmatprep.subr.mxu0 0.0
    %2870 = vmatpush1.msra.mxu0 0.0
    %2871 = vmatprep.subr.mxu0 0.0
    %2872 = vmatpush1.msra.mxu0 0.0
    %2873 = vmatprep.subr.mxu0 0.0
    %2874 = vmatpush1.msra.mxu0 0.0
    %2875 = vmatprep.subr.mxu0 0.0
    %2876 = vmatpush1.msra.mxu0 0.0
    %2877 = vmatprep.subr.mxu0 0.0
    %2878 = vmatpush1.msra.mxu0 0.0
    %2879 = vmatprep.subr.mxu0 0.0
    %2880 = vmatpush1.msra.mxu0 0.0
    %2881 = vmatprep.subr.mxu0 0.0
    %2882 = vmatpush1.msra.mxu0 0.0
    %2883 = vmatprep.subr.mxu0 0.0
    %2884 = vmatpush1.msra.mxu0 0.0
    %2885 = vmatprep.subr.mxu0 0.0
    %2886 = vmatpush1.msra.mxu0 0.0
    %2887 = vmatprep.subr.mxu0 0.0
    %2888 = vmatpush1.msra.mxu0 0.0
    %2889 = vmatprep.subr.mxu0 0.0
    %2890 = vmatpush1.msra.mxu0 0.0
    %2891 = vmatprep.subr.mxu0 0.0
    %2892 = vmatpush1.msra.mxu0 0.0
    %2893 = vmatprep.subr.mxu0 0.0
    %2894 = vmatpush1.msra.mxu0 0.0
    %2895 = vmatprep.subr.mxu0 0.0
    %2896 = vmatpush1.msra.mxu0 0.0
    %2897 = vmatprep.subr.mxu0 0.0
    %2898 = vmatpush1.msra.mxu0 0.0
    %2899 = vmatprep.subr.mxu0 0.0
    %2900 = vmatpush1.msra.mxu0 0.0
    %2901 = vmatprep.subr.mxu0 0.0
    %2902 = vmatpush1.msra.mxu0 0.0
    %2903 = vmatprep.subr.mxu0 0.0
    %2904 = vmatpush1.msra.mxu0 0.0
    %2905 = vmatprep.subr.mxu0 0.0
    %2906 = vmatpush1.msra.mxu0 0.0
    %2907 = vmatprep.mubr.f32.mxu0 0.0
    %2908 = vmatmul.mubr.f32.gmra.mrb[0].mxu0 %v2841
    %v2909 = vpop.f32.mrb[0].mxu0
    %v2910 = vadd.f32 0.0, %v2909
    %v2911 = vpop.f32.mrb[0].mxu0
    %2912 = vdwg.mxu0
    %2913 = vrot.lane.b32.xlu0 %v150, 48
    %v2914 = vpop.permute.xlu0 %2913
    %v2917 = vsel %vm1704, %v1918, 0
    %2919 = vmatprep.subr.mxu0 0.0
    %2920 = vmatpush1.msra.mxu0 %v2914
    %2921 = vmatprep.subr.mxu0 0.0
    %2922 = vmatpush1.msra.mxu0 0.0
    %2923 = vmatprep.subr.mxu0 0.0
    %2924 = vmatpush1.msra.mxu0 0.0
    %2925 = vmatprep.subr.mxu0 0.0
    %2926 = vmatpush1.msra.mxu0 0.0
    %2927 = vmatprep.subr.mxu0 0.0
    %2928 = vmatpush1.msra.mxu0 0.0
    %2929 = vmatprep.subr.mxu0 0.0
    %2930 = vmatpush1.msra.mxu0 0.0
    %2931 = vmatprep.subr.mxu0 0.0
    %2932 = vmatpush1.msra.mxu0 0.0
    %2933 = vmatprep.subr.mxu0 0.0
    %2934 = vmatpush1.msra.mxu0 0.0
    %2935 = vmatprep.subr.mxu0 0.0
    %2936 = vmatpush1.msra.mxu0 0.0
    %2937 = vmatprep.subr.mxu0 0.0
    %2938 = vmatpush1.msra.mxu0 0.0
    %2939 = vmatprep.subr.mxu0 0.0
    %2940 = vmatpush1.msra.mxu0 0.0
    %2941 = vmatprep.subr.mxu0 0.0
    %2942 = vmatpush1.msra.mxu0 0.0
    %2943 = vmatprep.subr.mxu0 0.0
    %2944 = vmatpush1.msra.mxu0 0.0
    %2945 = vmatprep.subr.mxu0 0.0
    %2946 = vmatpush1.msra.mxu0 0.0
    %2947 = vmatprep.subr.mxu0 0.0
    %2948 = vmatpush1.msra.mxu0 0.0
    %2949 = vmatprep.subr.mxu0 0.0
    %2950 = vmatpush1.msra.mxu0 0.0
    %2951 = vmatprep.subr.mxu0 0.0
    %2952 = vmatpush1.msra.mxu0 0.0
    %2953 = vmatprep.subr.mxu0 0.0
    %2954 = vmatpush1.msra.mxu0 0.0
    %2955 = vmatprep.subr.mxu0 0.0
    %2956 = vmatpush1.msra.mxu0 0.0
    %2957 = vmatprep.subr.mxu0 0.0
    %2958 = vmatpush1.msra.mxu0 0.0
    %2959 = vmatprep.subr.mxu0 0.0
    %2960 = vmatpush1.msra.mxu0 0.0
    %2961 = vmatprep.subr.mxu0 0.0
    %2962 = vmatpush1.msra.mxu0 0.0
    %2963 = vmatprep.subr.mxu0 0.0
    %2964 = vmatpush1.msra.mxu0 0.0
    %2965 = vmatprep.subr.mxu0 0.0
    %2966 = vmatpush1.msra.mxu0 0.0
    %2967 = vmatprep.subr.mxu0 0.0
    %2968 = vmatpush1.msra.mxu0 0.0
    %2969 = vmatprep.subr.mxu0 0.0
    %2970 = vmatpush1.msra.mxu0 0.0
    %2971 = vmatprep.subr.mxu0 0.0
    %2972 = vmatpush1.msra.mxu0 0.0
    %2973 = vmatprep.subr.mxu0 0.0
    %2974 = vmatpush1.msra.mxu0 0.0
    %2975 = vmatprep.subr.mxu0 0.0
    %2976 = vmatpush1.msra.mxu0 0.0
    %2977 = vmatprep.subr.mxu0 0.0
    %2978 = vmatpush1.msra.mxu0 0.0
    %2979 = vmatprep.subr.mxu0 0.0
    %2980 = vmatpush1.msra.mxu0 0.0
    %2981 = vmatprep.subr.mxu0 0.0
    %2982 = vmatpush1.msra.mxu0 0.0
    %2983 = vmatprep.mubr.f32.mxu0 0.0
    %2984 = vmatmul.mubr.f32.gmra.mrb[0].mxu0 %v2917
    %v2985 = vpop.f32.mrb[0].mxu0
    %v2986 = vadd.f32 0.0, %v2985
    %v2987 = vpop.f32.mrb[0].mxu0
    %2988 = vdwg.mxu0
    %2989 = vrot.lane.b32.xlu0 %v152, 48
    %v2990 = vpop.permute.xlu0 %2989
    %v2993 = vsel %vm1704, %v1919, 0
    %2995 = vmatprep.subr.mxu0 0.0
    %2996 = vmatpush1.msra.mxu0 %v2990
    %2997 = vmatprep.subr.mxu0 0.0
    %2998 = vmatpush1.msra.mxu0 0.0
    %2999 = vmatprep.subr.mxu0 0.0
    %3000 = vmatpush1.msra.mxu0 0.0
    %3001 = vmatprep.subr.mxu0 0.0
    %3002 = vmatpush1.msra.mxu0 0.0
    %3003 = vmatprep.subr.mxu0 0.0
    %3004 = vmatpush1.msra.mxu0 0.0
    %3005 = vmatprep.subr.mxu0 0.0
    %3006 = vmatpush1.msra.mxu0 0.0
    %3007 = vmatprep.subr.mxu0 0.0
    %3008 = vmatpush1.msra.mxu0 0.0
    %3009 = vmatprep.subr.mxu0 0.0
    %3010 = vmatpush1.msra.mxu0 0.0
    %3011 = vmatprep.subr.mxu0 0.0
    %3012 = vmatpush1.msra.mxu0 0.0
    %3013 = vmatprep.subr.mxu0 0.0
    %3014 = vmatpush1.msra.mxu0 0.0
    %3015 = vmatprep.subr.mxu0 0.0
    %3016 = vmatpush1.msra.mxu0 0.0
    %3017 = vmatprep.subr.mxu0 0.0
    %3018 = vmatpush1.msra.mxu0 0.0
    %3019 = vmatprep.subr.mxu0 0.0
    %3020 = vmatpush1.msra.mxu0 0.0
    %3021 = vmatprep.subr.mxu0 0.0
    %3022 = vmatpush1.msra.mxu0 0.0
    %3023 = vmatprep.subr.mxu0 0.0
    %3024 = vmatpush1.msra.mxu0 0.0
    %3025 = vmatprep.subr.mxu0 0.0
    %3026 = vmatpush1.msra.mxu0 0.0
    %3027 = vmatprep.subr.mxu0 0.0
    %3028 = vmatpush1.msra.mxu0 0.0
    %3029 = vmatprep.subr.mxu0 0.0
    %3030 = vmatpush1.msra.mxu0 0.0
    %3031 = vmatprep.subr.mxu0 0.0
    %3032 = vmatpush1.msra.mxu0 0.0
    %3033 = vmatprep.subr.mxu0 0.0
    %3034 = vmatpush1.msra.mxu0 0.0
    %3035 = vmatprep.subr.mxu0 0.0
    %3036 = vmatpush1.msra.mxu0 0.0
    %3037 = vmatprep.subr.mxu0 0.0
    %3038 = vmatpush1.msra.mxu0 0.0
    %3039 = vmatprep.subr.mxu0 0.0
    %3040 = vmatpush1.msra.mxu0 0.0
    %3041 = vmatprep.subr.mxu0 0.0
    %3042 = vmatpush1.msra.mxu0 0.0
    %3043 = vmatprep.subr.mxu0 0.0
    %3044 = vmatpush1.msra.mxu0 0.0
    %3045 = vmatprep.subr.mxu0 0.0
    %3046 = vmatpush1.msra.mxu0 0.0
    %3047 = vmatprep.subr.mxu0 0.0
    %3048 = vmatpush1.msra.mxu0 0.0
    %3049 = vmatprep.subr.mxu0 0.0
    %3050 = vmatpush1.msra.mxu0 0.0
    %3051 = vmatprep.subr.mxu0 0.0
    %3052 = vmatpush1.msra.mxu0 0.0
    %3053 = vmatprep.subr.mxu0 0.0
    %3054 = vmatpush1.msra.mxu0 0.0
    %3055 = vmatprep.subr.mxu0 0.0
    %3056 = vmatpush1.msra.mxu0 0.0
    %3057 = vmatprep.subr.mxu0 0.0
    %3058 = vmatpush1.msra.mxu0 0.0
    %3059 = vmatprep.mubr.f32.mxu0 0.0
    %3060 = vmatmul.mubr.f32.gmra.mrb[0].mxu0 %v2993
    %v3061 = vpop.f32.mrb[0].mxu0
    %v3062 = vadd.f32 0.0, %v3061
    %v3063 = vpop.f32.mrb[0].mxu0
    %3064 = vdwg.mxu0
    %3065 = vrot.lane.b32.xlu0 %v154, 48
    %v3066 = vpop.permute.xlu0 %3065
    %v3069 = vsel %vm1704, %v1920, 0
    %3071 = vmatprep.subr.mxu0 0.0
    %3072 = vmatpush1.msra.mxu0 %v3066
    %3073 = vmatprep.subr.mxu0 0.0
    %3074 = vmatpush1.msra.mxu0 0.0
    %3075 = vmatprep.subr.mxu0 0.0
    %3076 = vmatpush1.msra.mxu0 0.0
    %3077 = vmatprep.subr.mxu0 0.0
    %3078 = vmatpush1.msra.mxu0 0.0
    %3079 = vmatprep.subr.mxu0 0.0
    %3080 = vmatpush1.msra.mxu0 0.0
    %3081 = vmatprep.subr.mxu0 0.0
    %3082 = vmatpush1.msra.mxu0 0.0
    %3083 = vmatprep.subr.mxu0 0.0
    %3084 = vmatpush1.msra.mxu0 0.0
    %3085 = vmatprep.subr.mxu0 0.0
    %3086 = vmatpush1.msra.mxu0 0.0
    %3087 = vmatprep.subr.mxu0 0.0
    %3088 = vmatpush1.msra.mxu0 0.0
    %3089 = vmatprep.subr.mxu0 0.0
    %3090 = vmatpush1.msra.mxu0 0.0
    %3091 = vmatprep.subr.mxu0 0.0
    %3092 = vmatpush1.msra.mxu0 0.0
    %3093 = vmatprep.subr.mxu0 0.0
    %3094 = vmatpush1.msra.mxu0 0.0
    %3095 = vmatprep.subr.mxu0 0.0
    %3096 = vmatpush1.msra.mxu0 0.0
    %3097 = vmatprep.subr.mxu0 0.0
    %3098 = vmatpush1.msra.mxu0 0.0
    %3099 = vmatprep.subr.mxu0 0.0
    %3100 = vmatpush1.msra.mxu0 0.0
    %3101 = vmatprep.subr.mxu0 0.0
    %3102 = vmatpush1.msra.mxu0 0.0
    %3103 = vmatprep.subr.mxu0 0.0
    %3104 = vmatpush1.msra.mxu0 0.0
    %3105 = vmatprep.subr.mxu0 0.0
    %3106 = vmatpush1.msra.mxu0 0.0
    %3107 = vmatprep.subr.mxu0 0.0
    %3108 = vmatpush1.msra.mxu0 0.0
    %3109 = vmatprep.subr.mxu0 0.0
    %3110 = vmatpush1.msra.mxu0 0.0
    %3111 = vmatprep.subr.mxu0 0.0
    %3112 = vmatpush1.msra.mxu0 0.0
    %3113 = vmatprep.subr.mxu0 0.0
    %3114 = vmatpush1.msra.mxu0 0.0
    %3115 = vmatprep.subr.mxu0 0.0
    %3116 = vmatpush1.msra.mxu0 0.0
    %3117 = vmatprep.subr.mxu0 0.0
    %3118 = vmatpush1.msra.mxu0 0.0
    %3119 = vmatprep.subr.mxu0 0.0
    %3120 = vmatpush1.msra.mxu0 0.0
    %3121 = vmatprep.subr.mxu0 0.0
    %3122 = vmatpush1.msra.mxu0 0.0
    %3123 = vmatprep.subr.mxu0 0.0
    %3124 = vmatpush1.msra.mxu0 0.0
    %3125 = vmatprep.subr.mxu0 0.0
    %3126 = vmatpush1.msra.mxu0 0.0
    %3127 = vmatprep.subr.mxu0 0.0
    %3128 = vmatpush1.msra.mxu0 0.0
    %3129 = vmatprep.subr.mxu0 0.0
    %3130 = vmatpush1.msra.mxu0 0.0
    %3131 = vmatprep.subr.mxu0 0.0
    %3132 = vmatpush1.msra.mxu0 0.0
    %3133 = vmatprep.subr.mxu0 0.0
    %3134 = vmatpush1.msra.mxu0 0.0
    %3135 = vmatprep.mubr.f32.mxu0 0.0
    %3136 = vmatmul.mubr.f32.gmra.mrb[0].mxu0 %v3069
    %v3137 = vpop.f32.mrb[0].mxu0
    %v3138 = vadd.f32 0.0, %v3137
    %v3139 = vpop.f32.mrb[0].mxu0
    %3140 = vdwg.mxu0
    %3141 = vrot.lane.b32.xlu0 %v156, 48
    %v3142 = vpop.permute.xlu0 %3141
    %v3145 = vsel %vm1704, %v1921, 0
    %3147 = vmatprep.subr.mxu0 0.0
    %3148 = vmatpush1.msra.mxu0 %v3142
    %3149 = vmatprep.subr.mxu0 0.0
    %3150 = vmatpush1.msra.mxu0 0.0
    %3151 = vmatprep.subr.mxu0 0.0
    %3152 = vmatpush1.msra.mxu0 0.0
    %3153 = vmatprep.subr.mxu0 0.0
    %3154 = vmatpush1.msra.mxu0 0.0
    %3155 = vmatprep.subr.mxu0 0.0
    %3156 = vmatpush1.msra.mxu0 0.0
    %3157 = vmatprep.subr.mxu0 0.0
    %3158 = vmatpush1.msra.mxu0 0.0
    %3159 = vmatprep.subr.mxu0 0.0
    %3160 = vmatpush1.msra.mxu0 0.0
    %3161 = vmatprep.subr.mxu0 0.0
    %3162 = vmatpush1.msra.mxu0 0.0
    %3163 = vmatprep.subr.mxu0 0.0
    %3164 = vmatpush1.msra.mxu0 0.0
    %3165 = vmatprep.subr.mxu0 0.0
    %3166 = vmatpush1.msra.mxu0 0.0
    %3167 = vmatprep.subr.mxu0 0.0
    %3168 = vmatpush1.msra.mxu0 0.0
    %3169 = vmatprep.subr.mxu0 0.0
    %3170 = vmatpush1.msra.mxu0 0.0
    %3171 = vmatprep.subr.mxu0 0.0
    %3172 = vmatpush1.msra.mxu0 0.0
    %3173 = vmatprep.subr.mxu0 0.0
    %3174 = vmatpush1.msra.mxu0 0.0
    %3175 = vmatprep.subr.mxu0 0.0
    %3176 = vmatpush1.msra.mxu0 0.0
    %3177 = vmatprep.subr.mxu0 0.0
    %3178 = vmatpush1.msra.mxu0 0.0
    %3179 = vmatprep.subr.mxu0 0.0
    %3180 = vmatpush1.msra.mxu0 0.0
    %3181 = vmatprep.subr.mxu0 0.0
    %3182 = vmatpush1.msra.mxu0 0.0
    %3183 = vmatprep.subr.mxu0 0.0
    %3184 = vmatpush1.msra.mxu0 0.0
    %3185 = vmatprep.subr.mxu0 0.0
    %3186 = vmatpush1.msra.mxu0 0.0
    %3187 = vmatprep.subr.mxu0 0.0
    %3188 = vmatpush1.msra.mxu0 0.0
    %3189 = vmatprep.subr.mxu0 0.0
    %3190 = vmatpush1.msra.mxu0 0.0
    %3191 = vmatprep.subr.mxu0 0.0
    %3192 = vmatpush1.msra.mxu0 0.0
    %3193 = vmatprep.subr.mxu0 0.0
    %3194 = vmatpush1.msra.mxu0 0.0
    %3195 = vmatprep.subr.mxu0 0.0
    %3196 = vmatpush1.msra.mxu0 0.0
    %3197 = vmatprep.subr.mxu0 0.0
    %3198 = vmatpush1.msra.mxu0 0.0
    %3199 = vmatprep.subr.mxu0 0.0
    %3200 = vmatpush1.msra.mxu0 0.0
    %3201 = vmatprep.subr.mxu0 0.0
    %3202 = vmatpush1.msra.mxu0 0.0
    %3203 = vmatprep.subr.mxu0 0.0
    %3204 = vmatpush1.msra.mxu0 0.0
    %3205 = vmatprep.subr.mxu0 0.0
    %3206 = vmatpush1.msra.mxu0 0.0
    %3207 = vmatprep.subr.mxu0 0.0
    %3208 = vmatpush1.msra.mxu0 0.0
    %3209 = vmatprep.subr.mxu0 0.0
    %3210 = vmatpush1.msra.mxu0 0.0
    %3211 = vmatprep.mubr.f32.mxu0 0.0
    %3212 = vmatmul.mubr.f32.gmra.mrb[0].mxu0 %v3145
    %v3213 = vpop.f32.mrb[0].mxu0
    %v3214 = vadd.f32 0.0, %v3213
    %v3215 = vpop.f32.mrb[0].mxu0
    %3216 = vdwg.mxu0
    %3217 = vrot.lane.b32.xlu0 %v158, 48
    %v3218 = vpop.permute.xlu0 %3217
    %v3221 = vsel %vm1704, %v1922, 0
    %3223 = vmatprep.subr.mxu0 0.0
    %3224 = vmatpush1.msra.mxu0 %v3218
    %3225 = vmatprep.subr.mxu0 0.0
    %3226 = vmatpush1.msra.mxu0 0.0
    %3227 = vmatprep.subr.mxu0 0.0
    %3228 = vmatpush1.msra.mxu0 0.0
    %3229 = vmatprep.subr.mxu0 0.0
    %3230 = vmatpush1.msra.mxu0 0.0
    %3231 = vmatprep.subr.mxu0 0.0
    %3232 = vmatpush1.msra.mxu0 0.0
    %3233 = vmatprep.subr.mxu0 0.0
    %3234 = vmatpush1.msra.mxu0 0.0
    %3235 = vmatprep.subr.mxu0 0.0
    %3236 = vmatpush1.msra.mxu0 0.0
    %3237 = vmatprep.subr.mxu0 0.0
    %3238 = vmatpush1.msra.mxu0 0.0
    %3239 = vmatprep.subr.mxu0 0.0
    %3240 = vmatpush1.msra.mxu0 0.0
    %3241 = vmatprep.subr.mxu0 0.0
    %3242 = vmatpush1.msra.mxu0 0.0
    %3243 = vmatprep.subr.mxu0 0.0
    %3244 = vmatpush1.msra.mxu0 0.0
    %3245 = vmatprep.subr.mxu0 0.0
    %3246 = vmatpush1.msra.mxu0 0.0
    %3247 = vmatprep.subr.mxu0 0.0
    %3248 = vmatpush1.msra.mxu0 0.0
    %3249 = vmatprep.subr.mxu0 0.0
    %3250 = vmatpush1.msra.mxu0 0.0
    %3251 = vmatprep.subr.mxu0 0.0
    %3252 = vmatpush1.msra.mxu0 0.0
    %3253 = vmatprep.subr.mxu0 0.0
    %3254 = vmatpush1.msra.mxu0 0.0
    %3255 = vmatprep.subr.mxu0 0.0
    %3256 = vmatpush1.msra.mxu0 0.0
    %3257 = vmatprep.subr.mxu0 0.0
    %3258 = vmatpush1.msra.mxu0 0.0
    %3259 = vmatprep.subr.mxu0 0.0
    %3260 = vmatpush1.msra.mxu0 0.0
    %3261 = vmatprep.subr.mxu0 0.0
    %3262 = vmatpush1.msra.mxu0 0.0
    %3263 = vmatprep.subr.mxu0 0.0
    %3264 = vmatpush1.msra.mxu0 0.0
    %3265 = vmatprep.subr.mxu0 0.0
    %3266 = vmatpush1.msra.mxu0 0.0
    %3267 = vmatprep.subr.mxu0 0.0
    %3268 = vmatpush1.msra.mxu0 0.0
    %3269 = vmatprep.subr.mxu0 0.0
    %3270 = vmatpush1.msra.mxu0 0.0
    %3271 = vmatprep.subr.mxu0 0.0
    %3272 = vmatpush1.msra.mxu0 0.0
    %3273 = vmatprep.subr.mxu0 0.0
    %3274 = vmatpush1.msra.mxu0 0.0
    %3275 = vmatprep.subr.mxu0 0.0
    %3276 = vmatpush1.msra.mxu0 0.0
    %3277 = vmatprep.subr.mxu0 0.0
    %3278 = vmatpush1.msra.mxu0 0.0
    %3279 = vmatprep.subr.mxu0 0.0
    %3280 = vmatpush1.msra.mxu0 0.0
    %3281 = vmatprep.subr.mxu0 0.0
    %3282 = vmatpush1.msra.mxu0 0.0
    %3283 = vmatprep.subr.mxu0 0.0
    %3284 = vmatpush1.msra.mxu0 0.0
    %3285 = vmatprep.subr.mxu0 0.0
    %3286 = vmatpush1.msra.mxu0 0.0
    %3287 = vmatprep.mubr.f32.mxu0 0.0
    %3288 = vmatmul.mubr.f32.gmra.mrb[0].mxu0 %v3221
    %v3289 = vpop.f32.mrb[0].mxu0
    %v3290 = vadd.f32 0.0, %v3289
    %v3291 = vpop.f32.mrb[0].mxu0
    %3292 = vdwg.mxu0
    %3293 = vrot.lane.b32.xlu0 %v160, 48
    %v3294 = vpop.permute.xlu0 %3293
    %v3297 = vsel %vm1704, %v1923, 0
    %3299 = vmatprep.subr.mxu0 0.0
    %3300 = vmatpush1.msra.mxu0 %v3294
    %3301 = vmatprep.subr.mxu0 0.0
    %3302 = vmatpush1.msra.mxu0 0.0
    %3303 = vmatprep.subr.mxu0 0.0
    %3304 = vmatpush1.msra.mxu0 0.0
    %3305 = vmatprep.subr.mxu0 0.0
    %3306 = vmatpush1.msra.mxu0 0.0
    %3307 = vmatprep.subr.mxu0 0.0
    %3308 = vmatpush1.msra.mxu0 0.0
    %3309 = vmatprep.subr.mxu0 0.0
    %3310 = vmatpush1.msra.mxu0 0.0
    %3311 = vmatprep.subr.mxu0 0.0
    %3312 = vmatpush1.msra.mxu0 0.0
    %3313 = vmatprep.subr.mxu0 0.0
    %3314 = vmatpush1.msra.mxu0 0.0
    %3315 = vmatprep.subr.mxu0 0.0
    %3316 = vmatpush1.msra.mxu0 0.0
    %3317 = vmatprep.subr.mxu0 0.0
    %3318 = vmatpush1.msra.mxu0 0.0
    %3319 = vmatprep.subr.mxu0 0.0
    %3320 = vmatpush1.msra.mxu0 0.0
    %3321 = vmatprep.subr.mxu0 0.0
    %3322 = vmatpush1.msra.mxu0 0.0
    %3323 = vmatprep.subr.mxu0 0.0
    %3324 = vmatpush1.msra.mxu0 0.0
    %3325 = vmatprep.subr.mxu0 0.0
    %3326 = vmatpush1.msra.mxu0 0.0
    %3327 = vmatprep.subr.mxu0 0.0
    %3328 = vmatpush1.msra.mxu0 0.0
    %3329 = vmatprep.subr.mxu0 0.0
    %3330 = vmatpush1.msra.mxu0 0.0
    %3331 = vmatprep.subr.mxu0 0.0
    %3332 = vmatpush1.msra.mxu0 0.0
    %3333 = vmatprep.subr.mxu0 0.0
    %3334 = vmatpush1.msra.mxu0 0.0
    %3335 = vmatprep.subr.mxu0 0.0
    %3336 = vmatpush1.msra.mxu0 0.0
    %3337 = vmatprep.subr.mxu0 0.0
    %3338 = vmatpush1.msra.mxu0 0.0
    %3339 = vmatprep.subr.mxu0 0.0
    %3340 = vmatpush1.msra.mxu0 0.0
    %3341 = vmatprep.subr.mxu0 0.0
    %3342 = vmatpush1.msra.mxu0 0.0
    %3343 = vmatprep.subr.mxu0 0.0
    %3344 = vmatpush1.msra.mxu0 0.0
    %3345 = vmatprep.subr.mxu0 0.0
    %3346 = vmatpush1.msra.mxu0 0.0
    %3347 = vmatprep.subr.mxu0 0.0
    %3348 = vmatpush1.msra.mxu0 0.0
    %3349 = vmatprep.subr.mxu0 0.0
    %3350 = vmatpush1.msra.mxu0 0.0
    %3351 = vmatprep.subr.mxu0 0.0
    %3352 = vmatpush1.msra.mxu0 0.0
    %3353 = vmatprep.subr.mxu0 0.0
    %3354 = vmatpush1.msra.mxu0 0.0
    %3355 = vmatprep.subr.mxu0 0.0
    %3356 = vmatpush1.msra.mxu0 0.0
    %3357 = vmatprep.subr.mxu0 0.0
    %3358 = vmatpush1.msra.mxu0 0.0
    %3359 = vmatprep.subr.mxu0 0.0
    %3360 = vmatpush1.msra.mxu0 0.0
    %3361 = vmatprep.subr.mxu0 0.0
    %3362 = vmatpush1.msra.mxu0 0.0
    %3363 = vmatprep.mubr.f32.mxu0 0.0
    %3364 = vmatmul.mubr.f32.gmra.mrb[0].mxu0 %v3297
    %v3365 = vpop.f32.mrb[0].mxu0
    %v3366 = vadd.f32 0.0, %v3365
    %v3367 = vpop.f32.mrb[0].mxu0
    %3368 = vdwg.mxu0
    %3369 = vrot.lane.b32.xlu0 %v162, 48
    %v3370 = vpop.permute.xlu0 %3369
    %v3373 = vsel %vm1704, %v1924, 0
    %3375 = vmatprep.subr.mxu0 0.0
    %3376 = vmatpush1.msra.mxu0 %v3370
    %3377 = vmatprep.subr.mxu0 0.0
    %3378 = vmatpush1.msra.mxu0 0.0
    %3379 = vmatprep.subr.mxu0 0.0
    %3380 = vmatpush1.msra.mxu0 0.0
    %3381 = vmatprep.subr.mxu0 0.0
    %3382 = vmatpush1.msra.mxu0 0.0
    %3383 = vmatprep.subr.mxu0 0.0
    %3384 = vmatpush1.msra.mxu0 0.0
    %3385 = vmatprep.subr.mxu0 0.0
    %3386 = vmatpush1.msra.mxu0 0.0
    %3387 = vmatprep.subr.mxu0 0.0
    %3388 = vmatpush1.msra.mxu0 0.0
    %3389 = vmatprep.subr.mxu0 0.0
    %3390 = vmatpush1.msra.mxu0 0.0
    %3391 = vmatprep.subr.mxu0 0.0
    %3392 = vmatpush1.msra.mxu0 0.0
    %3393 = vmatprep.subr.mxu0 0.0
    %3394 = vmatpush1.msra.mxu0 0.0
    %3395 = vmatprep.subr.mxu0 0.0
    %3396 = vmatpush1.msra.mxu0 0.0
    %3397 = vmatprep.subr.mxu0 0.0
    %3398 = vmatpush1.msra.mxu0 0.0
    %3399 = vmatprep.subr.mxu0 0.0
    %3400 = vmatpush1.msra.mxu0 0.0
    %3401 = vmatprep.subr.mxu0 0.0
    %3402 = vmatpush1.msra.mxu0 0.0
    %3403 = vmatprep.subr.mxu0 0.0
    %3404 = vmatpush1.msra.mxu0 0.0
    %3405 = vmatprep.subr.mxu0 0.0
    %3406 = vmatpush1.msra.mxu0 0.0
    %3407 = vmatprep.subr.mxu0 0.0
    %3408 = vmatpush1.msra.mxu0 0.0
    %3409 = vmatprep.subr.mxu0 0.0
    %3410 = vmatpush1.msra.mxu0 0.0
    %3411 = vmatprep.subr.mxu0 0.0
    %3412 = vmatpush1.msra.mxu0 0.0
    %3413 = vmatprep.subr.mxu0 0.0
    %3414 = vmatpush1.msra.mxu0 0.0
    %3415 = vmatprep.subr.mxu0 0.0
    %3416 = vmatpush1.msra.mxu0 0.0
    %3417 = vmatprep.subr.mxu0 0.0
    %3418 = vmatpush1.msra.mxu0 0.0
    %3419 = vmatprep.subr.mxu0 0.0
    %3420 = vmatpush1.msra.mxu0 0.0
    %3421 = vmatprep.subr.mxu0 0.0
    %3422 = vmatpush1.msra.mxu0 0.0
    %3423 = vmatprep.subr.mxu0 0.0
    %3424 = vmatpush1.msra.mxu0 0.0
    %3425 = vmatprep.subr.mxu0 0.0
    %3426 = vmatpush1.msra.mxu0 0.0
    %3427 = vmatprep.subr.mxu0 0.0
    %3428 = vmatpush1.msra.mxu0 0.0
    %3429 = vmatprep.subr.mxu0 0.0
    %3430 = vmatpush1.msra.mxu0 0.0
    %3431 = vmatprep.subr.mxu0 0.0
    %3432 = vmatpush1.msra.mxu0 0.0
    %3433 = vmatprep.subr.mxu0 0.0
    %3434 = vmatpush1.msra.mxu0 0.0
    %3435 = vmatprep.subr.mxu0 0.0
    %3436 = vmatpush1.msra.mxu0 0.0
    %3437 = vmatprep.subr.mxu0 0.0
    %3438 = vmatpush1.msra.mxu0 0.0
    %3439 = vmatprep.mubr.f32.mxu0 0.0
    %3440 = vmatmul.mubr.f32.gmra.mrb[0].mxu0 %v3373
    %v3441 = vpop.f32.mrb[0].mxu0
    %v3442 = vadd.f32 0.0, %v3441
    %v3443 = vpop.f32.mrb[0].mxu0
    %3444 = vdwg.mxu0
    %3447 = vrot.lane.b32.xlu0 %v2150, 4
    %v3448 = vpop.permute.xlu0 %3447
    %3449 = vrot.lane.b32.xlu0 %v2226, 4
    %v3450 = vpop.permute.xlu0 %3449
    %3455 = vrot.lane.b32.xlu0 %v2302, 8
    %v3456 = vpop.permute.xlu0 %3455
    %3457 = vrot.lane.b32.xlu0 %v2378, 8
    %v3458 = vpop.permute.xlu0 %3457
    %3463 = vrot.lane.b32.xlu0 %v2454, 12
    %v3464 = vpop.permute.xlu0 %3463
    %3465 = vrot.lane.b32.xlu0 %v2530, 12
    %v3466 = vpop.permute.xlu0 %3465
    %3471 = vrot.lane.b32.xlu0 %v2606, 16
    %v3472 = vpop.permute.xlu0 %3471
    %3473 = vrot.lane.b32.xlu0 %v2682, 16
    %v3474 = vpop.permute.xlu0 %3473
    %3479 = vrot.lane.b32.xlu0 %v2758, 20
    %v3480 = vpop.permute.xlu0 %3479
    %3481 = vrot.lane.b32.xlu0 %v2834, 20
    %v3482 = vpop.permute.xlu0 %3481
    %3487 = vrot.lane.b32.xlu0 %v2910, 24
    %v3488 = vpop.permute.xlu0 %3487
    %3489 = vrot.lane.b32.xlu0 %v2986, 24
    %v3490 = vpop.permute.xlu0 %3489
    %3495 = vrot.lane.b32.xlu0 %v3062, 28
    %v3496 = vpop.permute.xlu0 %3495
    %3497 = vrot.lane.b32.xlu0 %v3138, 28
    %v3498 = vpop.permute.xlu0 %3497
    %3503 = vrot.lane.b32.xlu0 %v3214, 32
    %v3504 = vpop.permute.xlu0 %3503
    %3505 = vrot.lane.b32.xlu0 %v3290, 32
    %v3506 = vpop.permute.xlu0 %3505
    %3511 = vrot.lane.b32.xlu0 %v3366, 36
    %v3512 = vpop.permute.xlu0 %3511
    %3513 = vrot.lane.b32.xlu0 %v3442, 36
    %v3514 = vpop.permute.xlu0 %3513
    %v3517 = vsel %vm165, %v1998, %v3448
    %v3518 = vsel %vm165, %v2074, %v3450
    %v3519 = vsel %vm1704, %v3517, %v3456
    %v3520 = vsel %vm1704, %v3518, %v3458
    %vm3521 = vcmask 97280
    %v3522 = vsel %vm3521, %v3519, %v3464
    %v3523 = vsel %vm3521, %v3520, %v3466
    %vm3524 = vcmask 130048
    %v3525 = vsel %vm3524, %v3522, %v3472
    %v3526 = vsel %vm3524, %v3523, %v3474
    %vm3527 = vcmask 162816
    %v3528 = vsel %vm3527, %v3525, %v3480
    %v3529 = vsel %vm3527, %v3526, %v3482
    %vm3530 = vcmask 195584
    %v3531 = vsel %vm3530, %v3528, %v3488
    %v3532 = vsel %vm3530, %v3529, %v3490
    %vm3533 = vcmask 228352
    %v3534 = vsel %vm3533, %v3531, %v3496
    %v3535 = vsel %vm3533, %v3532, %v3498
    %vm3536 = vcmask 261120
    %v3537 = vsel %vm3536, %v3534, %v3504
    %v3538 = vsel %vm3536, %v3535, %v3506
    %vm3539 = vcmask 293888
    %v3540 = vsel %vm3539, %v3537, %v3512
    %v3541 = vsel %vm3539, %v3538, %v3514
    %v3542 = vpack.c.bf16 %v3541, %v3540
    %v3543 = vld [vmem:[%s3] sm:$0xf]
    %v3544 = vld [vmem:[%s3 + $0x4] sm:$0xf]
    %v3545 = vld [vmem:[%s3 + $0x8] sm:$0xf]
    %v3546 = vld [vmem:[%s3 + $0xc] sm:$0xf]
    %v3547 = vld [vmem:[%s3 + $0x10] sm:$0xf]
    %v3548 = vld [vmem:[%s4] sm:$0x1]
    %v3550 = vlaneseq
    %v3551 = vshrl.u32 %v3550, 7
    %v3552 = vsub.s32 0, %v3551
    %v3553 = vrot.slane %v3548, %v3552
    %v3560 = vunpack.c.l.b16 %v3543
    %v3561 = vunpack.c.l.b16 %v3544
    %v3562 = vunpack.c.l.b16 %v3545
    %v3563 = vunpack.c.l.b16 %v3546
    %v3564 = vunpack.c.l.b16 %v3547
    %v3565 = vpack.c.b16 %v3561, %v3560
    %v3566 = vpack.c.b16 %v3563, %v3562
    %v3567 = vpack.c.b16 %v3564, %v3564
    %v3571 = vsel %vm76, %v3542, 0
    %v3574 = vsel %vm80, %v3567, 0
    %3576 = vmatprep.subr.bf16.mxu0 0
    %3577 = vmatpush1.bf16.msra.mxu0 %v3565
    %3578 = vmatprep.subr.bf16.mxu0 0
    %3579 = vmatpush1.bf16.msra.mxu0 %v3566
    %3580 = vmatprep.subr.bf16.mxu0 0
    %3581 = vmatpush1.bf16.msra.mxu0 %v3574
    %3582 = vmatprep.subr.bf16.mxu0 0
    %3583 = vmatpush1.bf16.msra.mxu0 0
    %3584 = vmatprep.subr.bf16.mxu0 0
    %3585 = vmatpush1.bf16.msra.mxu0 0
    %3586 = vmatprep.subr.bf16.mxu0 0
    %3587 = vmatpush1.bf16.msra.mxu0 0
    %3588 = vmatprep.subr.bf16.mxu0 0
    %3589 = vmatpush1.bf16.msra.mxu0 0
    %3590 = vmatprep.subr.bf16.mxu0 0
    %3591 = vmatpush1.bf16.msra.mxu0 0
    %3592 = vmatprep.subr.bf16.mxu0 0
    %3593 = vmatpush1.bf16.msra.mxu0 0
    %3594 = vmatprep.subr.bf16.mxu0 0
    %3595 = vmatpush1.bf16.msra.mxu0 0
    %3596 = vmatprep.subr.bf16.mxu0 0
    %3597 = vmatpush1.bf16.msra.mxu0 0
    %3598 = vmatprep.subr.bf16.mxu0 0
    %3599 = vmatpush1.bf16.msra.mxu0 0
    %3600 = vmatprep.subr.bf16.mxu0 0
    %3601 = vmatpush1.bf16.msra.mxu0 0
    %3602 = vmatprep.subr.bf16.mxu0 0
    %3603 = vmatpush1.bf16.msra.mxu0 0
    %3604 = vmatprep.subr.bf16.mxu0 0
    %3605 = vmatpush1.bf16.msra.mxu0 0
    %3606 = vmatprep.subr.bf16.mxu0 0
    %3607 = vmatpush1.bf16.msra.mxu0 0
    %3608 = vmatprep.mubr.bf16.mxu0 0
    %3609 = vmatmul.mubr.bf16.gmra.mrb[0].mxu0 %v3571
    %v3610 = vpop.f32.mrb[0].mxu0
    %v3611 = vadd.f32 %v3553, %v3610
    %v3612 = vpop.f32.mrb[0].mxu0
    %v3613 = vpop.f32.mrb[0].mxu0
    %v3614 = vadd.f32 %v3553, %v3613
    %v3615 = vpop.f32.mrb[0].mxu0
    %3616 = vdwg.mxu0
    %v3617 = vadd.f32 %v46, %v3611
    %v3618 = vadd.f32 %v47, %v3614
    %v3619 = vld [vmem:[%s5] sm:$0x1]
    %v3620 = vld [vmem:[%s6] sm:$0x1]
    %v3621 = vsel %vm76, %v3617, 0.0
    %3622 = vadd.xlane.f32.xlu0 %v3621
    %v3623 = vpop.xlane.xlu0 %3622
    %v3624 = vsel %vm76, %v3618, 0.0
    %3625 = vadd.xlane.f32.xlu0 %v3624
    %v3626 = vpop.xlane.xlu0 %3625
    %v3627 = vrcp.pop 40.0
    %v3628 = vmul.f32 %v3623, %v3627
    %v3629 = vmul.f32 %v3626, %v3627
    %v3630 = vsub.f32 %v3617, %v3628
    %v3631 = vsub.f32 %v3618, %v3629
    %v3632 = vmul.f32 %v3630, %v3630
    %v3633 = vmul.f32 %v3631, %v3631
    %v3634 = vsel %vm76, %v3632, 0.0
    %3635 = vadd.xlane.f32.xlu0 %v3634
    %v3636 = vpop.xlane.xlu0 %3635
    %v3637 = vsel %vm76, %v3633, 0.0
    %3638 = vadd.xlane.f32.xlu0 %v3637
    %v3639 = vpop.xlane.xlu0 %3638
    %v3640 = vmul.f32 %v3636, %v3627
    %v3641 = vmul.f32 %v3639, %v3627
    %v3642 = vadd.f32 %v3640, 1e-05
    %v3643 = vadd.f32 %v3641, 1e-05
    %v3644 = vrsqrt.pop %v3642
    %v3645 = vrsqrt.pop %v3643
    %v3646 = vmul.f32 %v3630, %v3644
    %v3647 = vmul.f32 %v3631, %v3645
    %v3649 = vlaneseq
    %v3650 = vshrl.u32 %v3649, 7
    %v3651 = vsub.s32 0, %v3650
    %v3652 = vrot.slane %v3619, %v3651
    %v3654 = vmul.f32 %v3646, %v3652
    %v3655 = vmul.f32 %v3647, %v3652
    %v3657 = vlaneseq
    %v3658 = vshrl.u32 %v3657, 7
    %v3659 = vsub.s32 0, %v3658
    %v3660 = vrot.slane %v3620, %v3659
    %v3662 = vadd.f32 %v3654, %v3660
    %v3663 = vadd.f32 %v3655, %v3660
    %v3664 = vpack.c.bf16 %v3663, %v3662
    %v3665 = vld [vmem:[%s9] sm:$0xff]
    %v3666 = vld [vmem:[%s9 + $0x8] sm:$0xff]
    %v3667 = vld [vmem:[%s9 + $0x10] sm:$0xff]
    %v3668 = vld [vmem:[%s9 + $0x18] sm:$0xff]
    %v3669 = vld [vmem:[%s9 + $0x20] sm:$0xff]
    %v3670 = vld [vmem:[%s9 + $0x28] sm:$0xff]
    %v3671 = vld [vmem:[%s9 + $0x30] sm:$0xff]
    %v3672 = vld [vmem:[%s9 + $0x38] sm:$0xff]
    %v3673 = vld [vmem:[%s9 + $0x40] sm:$0xff]
    %v3674 = vld [vmem:[%s9 + $0x48] sm:$0xff]
    %v3675 = vld [vmem:[%s9 + $0x50] sm:$0xff]
    %v3676 = vld [vmem:[%s9 + $0x58] sm:$0xff]
    %v3677 = vld [vmem:[%s9 + $0x60] sm:$0xff]
    %v3678 = vld [vmem:[%s9 + $0x68] sm:$0xff]
    %v3679 = vld [vmem:[%s9 + $0x70] sm:$0xff]
    %v3680 = vld [vmem:[%s9 + $0x78] sm:$0xff]
    %v3681 = vld [vmem:[%s9 + $0x80] sm:$0xff]
    %v3682 = vld [vmem:[%s9 + $0x88] sm:$0xff]
    %v3683 = vld [vmem:[%s9 + $0x90] sm:$0xff]
    %v3684 = vld [vmem:[%s9 + $0x98] sm:$0xff]
    %v3685 = vld [vmem:[%s9 + $0xa0] sm:$0xff]
    %v3686 = vld [vmem:[%s9 + $0xa8] sm:$0xff]
    %v3687 = vld [vmem:[%s9 + $0xb0] sm:$0xff]
    %v3688 = vld [vmem:[%s9 + $0xb8] sm:$0xff]
    %v3689 = vld [vmem:[%s9 + $0xc0] sm:$0xff]
    %v3690 = vld [vmem:[%s9 + $0xc8] sm:$0xff]
    %v3691 = vld [vmem:[%s9 + $0xd0] sm:$0xff]
    %v3692 = vld [vmem:[%s9 + $0xd8] sm:$0xff]
    %v3693 = vld [vmem:[%s9 + $0xe0] sm:$0xff]
    %v3694 = vld [vmem:[%s9 + $0xe8] sm:$0xff]
    %v3695 = vld [vmem:[%s9 + $0xf0] sm:$0xff]
    %v3696 = vld [vmem:[%s9 + $0xf8] sm:$0xff]
    %v3697 = vld [vmem:[%s9 + $0x100] sm:$0xff]
    %v3698 = vld [vmem:[%s9 + $0x108] sm:$0xff]
    %v3699 = vld [vmem:[%s9 + $0x110] sm:$0xff]
    %v3700 = vld [vmem:[%s9 + $0x118] sm:$0xff]
    %v3701 = vld [vmem:[%s9 + $0x120] sm:$0xff]
    %v3702 = vld [vmem:[%s9 + $0x128] sm:$0xff]
    %v3703 = vld [vmem:[%s9 + $0x130] sm:$0xff]
    %v3704 = vld [vmem:[%s9 + $0x138] sm:$0xff]
    %v3705 = vld [vmem:[%s10] sm:$0xff]
    %v3706 = vld [vmem:[%s10 + $0x8] sm:$0xff]
    %v3709 = vlaneseq
    %v3710 = vshrl.u32 %v3709, 7
    %v3711 = vsub.s32 0, %v3710
    %v3712 = vrot.slane %v3705, %v3711
    %v3713 = vlaneseq
    %v3714 = vshrl.u32 %v3713, 7
    %v3715 = vsub.s32 1, %v3714
    %v3716 = vrot.slane %v3705, %v3715
    %v3717 = vlaneseq
    %v3718 = vshrl.u32 %v3717, 7
    %v3719 = vsub.s32 2, %v3718
    %v3720 = vrot.slane %v3705, %v3719
    %v3721 = vlaneseq
    %v3722 = vshrl.u32 %v3721, 7
    %v3723 = vsub.s32 3, %v3722
    %v3724 = vrot.slane %v3705, %v3723
    %v3725 = vlaneseq
    %v3726 = vshrl.u32 %v3725, 7
    %v3727 = vsub.s32 4, %v3726
    %v3728 = vrot.slane %v3705, %v3727
    %v3729 = vlaneseq
    %v3730 = vshrl.u32 %v3729, 7
    %v3731 = vsub.s32 5, %v3730
    %v3732 = vrot.slane %v3705, %v3731
    %v3733 = vlaneseq
    %v3734 = vshrl.u32 %v3733, 7
    %v3735 = vsub.s32 6, %v3734
    %v3736 = vrot.slane %v3705, %v3735
    %v3737 = vlaneseq
    %v3738 = vshrl.u32 %v3737, 7
    %v3739 = vsub.s32 7, %v3738
    %v3740 = vrot.slane %v3705, %v3739
    %v3741 = vlaneseq
    %v3742 = vshrl.u32 %v3741, 7
    %v3743 = vsub.s32 0, %v3742
    %v3744 = vrot.slane %v3706, %v3743
    %v3745 = vlaneseq
    %v3746 = vshrl.u32 %v3745, 7
    %v3747 = vsub.s32 1, %v3746
    %v3748 = vrot.slane %v3706, %v3747
    %v3749 = vlaneseq
    %v3750 = vshrl.u32 %v3749, 7
    %v3751 = vsub.s32 2, %v3750
    %v3752 = vrot.slane %v3706, %v3751
    %v3753 = vlaneseq
    %v3754 = vshrl.u32 %v3753, 7
    %v3755 = vsub.s32 3, %v3754
    %v3756 = vrot.slane %v3706, %v3755
    %v3757 = vlaneseq
    %v3758 = vshrl.u32 %v3757, 7
    %v3759 = vsub.s32 4, %v3758
    %v3760 = vrot.slane %v3706, %v3759
    %v3761 = vlaneseq
    %v3762 = vshrl.u32 %v3761, 7
    %v3763 = vsub.s32 5, %v3762
    %v3764 = vrot.slane %v3706, %v3763
    %v3765 = vlaneseq
    %v3766 = vshrl.u32 %v3765, 7
    %v3767 = vsub.s32 6, %v3766
    %v3768 = vrot.slane %v3706, %v3767
    %v3769 = vlaneseq
    %v3770 = vshrl.u32 %v3769, 7
    %v3771 = vsub.s32 7, %v3770
    %v3772 = vrot.slane %v3706, %v3771
    %v3829 = vunpack.c.l.b16 %v3665
    %v3830 = vunpack.c.h.b16 %v3665
    %v3831 = vunpack.c.l.b16 %v3666
    %v3832 = vunpack.c.h.b16 %v3666
    %v3833 = vunpack.c.l.b16 %v3667
    %v3834 = vunpack.c.h.b16 %v3667
    %v3835 = vunpack.c.l.b16 %v3668
    %v3836 = vunpack.c.h.b16 %v3668
    %v3837 = vunpack.c.l.b16 %v3669
    %v3838 = vunpack.c.h.b16 %v3669
    %v3839 = vunpack.c.l.b16 %v3670
    %v3840 = vunpack.c.h.b16 %v3670
    %v3841 = vunpack.c.l.b16 %v3671
    %v3842 = vunpack.c.h.b16 %v3671
    %v3843 = vunpack.c.l.b16 %v3672
    %v3844 = vunpack.c.h.b16 %v3672
    %v3845 = vunpack.c.l.b16 %v3673
    %v3846 = vunpack.c.h.b16 %v3673
    %v3847 = vunpack.c.l.b16 %v3674
    %v3848 = vunpack.c.h.b16 %v3674
    %v3849 = vunpack.c.l.b16 %v3675
    %v3850 = vunpack.c.h.b16 %v3675
    %v3851 = vunpack.c.l.b16 %v3676
    %v3852 = vunpack.c.h.b16 %v3676
    %v3853 = vunpack.c.l.b16 %v3677
    %v3854 = vunpack.c.h.b16 %v3677
    %v3855 = vunpack.c.l.b16 %v3678
    %v3856 = vunpack.c.h.b16 %v3678
    %v3857 = vunpack.c.l.b16 %v3679
    %v3858 = vunpack.c.h.b16 %v3679
    %v3859 = vunpack.c.l.b16 %v3680
    %v3860 = vunpack.c.h.b16 %v3680
    %v3861 = vunpack.c.l.b16 %v3681
    %v3862 = vunpack.c.h.b16 %v3681
    %v3863 = vunpack.c.l.b16 %v3682
    %v3864 = vunpack.c.h.b16 %v3682
    %v3865 = vunpack.c.l.b16 %v3683
    %v3866 = vunpack.c.h.b16 %v3683
    %v3867 = vunpack.c.l.b16 %v3684
    %v3868 = vunpack.c.h.b16 %v3684
    %v3869 = vunpack.c.l.b16 %v3685
    %v3870 = vunpack.c.h.b16 %v3685
    %v3871 = vunpack.c.l.b16 %v3686
    %v3872 = vunpack.c.h.b16 %v3686
    %v3873 = vunpack.c.l.b16 %v3687
    %v3874 = vunpack.c.h.b16 %v3687
    %v3875 = vunpack.c.l.b16 %v3688
    %v3876 = vunpack.c.h.b16 %v3688
    %v3877 = vunpack.c.l.b16 %v3689
    %v3878 = vunpack.c.h.b16 %v3689
    %v3879 = vunpack.c.l.b16 %v3690
    %v3880 = vunpack.c.h.b16 %v3690
    %v3881 = vunpack.c.l.b16 %v3691
    %v3882 = vunpack.c.h.b16 %v3691
    %v3883 = vunpack.c.l.b16 %v3692
    %v3884 = vunpack.c.h.b16 %v3692
    %v3885 = vunpack.c.l.b16 %v3693
    %v3886 = vunpack.c.h.b16 %v3693
    %v3887 = vunpack.c.l.b16 %v3694
    %v3888 = vunpack.c.h.b16 %v3694
    %v3889 = vunpack.c.l.b16 %v3695
    %v3890 = vunpack.c.h.b16 %v3695
    %v3891 = vunpack.c.l.b16 %v3696
    %v3892 = vunpack.c.h.b16 %v3696
    %v3893 = vunpack.c.l.b16 %v3697
    %v3894 = vunpack.c.h.b16 %v3697
    %v3895 = vunpack.c.l.b16 %v3698
    %v3896 = vunpack.c.h.b16 %v3698
    %v3897 = vunpack.c.l.b16 %v3699
    %v3898 = vunpack.c.h.b16 %v3699
    %v3899 = vunpack.c.l.b16 %v3700
    %v3900 = vunpack.c.h.b16 %v3700
    %v3901 = vunpack.c.l.b16 %v3701
    %v3902 = vunpack.c.h.b16 %v3701
    %v3903 = vunpack.c.l.b16 %v3702
    %v3904 = vunpack.c.h.b16 %v3702
    %v3905 = vunpack.c.l.b16 %v3703
    %v3906 = vunpack.c.h.b16 %v3703
    %v3907 = vunpack.c.l.b16 %v3704
    %v3908 = vunpack.c.h.b16 %v3704
    %v3909 = vpack.c.b16 %v3845, %v3829
    %v3910 = vpack.c.b16 %v3846, %v3830
    %v3911 = vpack.c.b16 %v3847, %v3831
    %v3912 = vpack.c.b16 %v3848, %v3832
    %v3913 = vpack.c.b16 %v3849, %v3833
    %v3914 = vpack.c.b16 %v3850, %v3834
    %v3915 = vpack.c.b16 %v3851, %v3835
    %v3916 = vpack.c.b16 %v3852, %v3836
    %v3917 = vpack.c.b16 %v3853, %v3837
    %v3918 = vpack.c.b16 %v3854, %v3838
    %v3919 = vpack.c.b16 %v3855, %v3839
    %v3920 = vpack.c.b16 %v3856, %v3840
    %v3921 = vpack.c.b16 %v3857, %v3841
    %v3922 = vpack.c.b16 %v3858, %v3842
    %v3923 = vpack.c.b16 %v3859, %v3843
    %v3924 = vpack.c.b16 %v3860, %v3844
    %v3925 = vpack.c.b16 %v3877, %v3861
    %v3926 = vpack.c.b16 %v3878, %v3862
    %v3927 = vpack.c.b16 %v3879, %v3863
    %v3928 = vpack.c.b16 %v3880, %v3864
    %v3929 = vpack.c.b16 %v3881, %v3865
    %v3930 = vpack.c.b16 %v3882, %v3866
    %v3931 = vpack.c.b16 %v3883, %v3867
    %v3932 = vpack.c.b16 %v3884, %v3868
    %v3933 = vpack.c.b16 %v3885, %v3869
    %v3934 = vpack.c.b16 %v3886, %v3870
    %v3935 = vpack.c.b16 %v3887, %v3871
    %v3936 = vpack.c.b16 %v3888, %v3872
    %v3937 = vpack.c.b16 %v3889, %v3873
    %v3938 = vpack.c.b16 %v3890, %v3874
    %v3939 = vpack.c.b16 %v3891, %v3875
    %v3940 = vpack.c.b16 %v3892, %v3876
    %v3941 = vpack.c.b16 %v3893, %v3893
    %v3942 = vpack.c.b16 %v3894, %v3894
    %v3943 = vpack.c.b16 %v3895, %v3895
    %v3944 = vpack.c.b16 %v3896, %v3896
    %v3945 = vpack.c.b16 %v3897, %v3897
    %v3946 = vpack.c.b16 %v3898, %v3898
    %v3947 = vpack.c.b16 %v3899, %v3899
    %v3948 = vpack.c.b16 %v3900, %v3900
    %v3949 = vpack.c.b16 %v3901, %v3901
    %v3950 = vpack.c.b16 %v3902, %v3902
    %v3951 = vpack.c.b16 %v3903, %v3903
    %v3952 = vpack.c.b16 %v3904, %v3904
    %v3953 = vpack.c.b16 %v3905, %v3905
    %v3954 = vpack.c.b16 %v3906, %v3906
    %v3955 = vpack.c.b16 %v3907, %v3907
    %v3956 = vpack.c.b16 %v3908, %v3908
    %v3990 = vsel %vm76, %v3664, 0
    %v3993 = vsel %vm80, %v3941, 0
    %v3996 = vsel %vm80, %v3942, 0
    %v3999 = vsel %vm80, %v3943, 0
    %v4002 = vsel %vm80, %v3944, 0
    %v4005 = vsel %vm80, %v3945, 0
    %v4008 = vsel %vm80, %v3946, 0
    %v4011 = vsel %vm80, %v3947, 0
    %v4014 = vsel %vm80, %v3948, 0
    %v4017 = vsel %vm80, %v3949, 0
    %v4020 = vsel %vm80, %v3950, 0
    %v4023 = vsel %vm80, %v3951, 0
    %v4026 = vsel %vm80, %v3952, 0
    %v4029 = vsel %vm80, %v3953, 0
    %v4032 = vsel %vm80, %v3954, 0
    %v4035 = vsel %vm80, %v3955, 0
    %v4038 = vsel %vm80, %v3956, 0
    %4040 = vmatprep.subr.bf16.mxu0 %v3910
    %4041 = vmatpush1.bf16.msra.mxu0 %v3909
    %4042 = vmatprep.subr.bf16.mxu0 %v3926
    %4043 = vmatpush1.bf16.msra.mxu0 %v3925
    %4044 = vmatprep.subr.bf16.mxu0 %v3996
    %4045 = vmatpush1.bf16.msra.mxu0 %v3993
    %4046 = vmatprep.subr.bf16.mxu0 0
    %4047 = vmatpush1.bf16.msra.mxu0 0
    %4048 = vmatprep.subr.bf16.mxu0 0
    %4049 = vmatpush1.bf16.msra.mxu0 0
    %4050 = vmatprep.subr.bf16.mxu0 0
    %4051 = vmatpush1.bf16.msra.mxu0 0
    %4052 = vmatprep.subr.bf16.mxu0 0
    %4053 = vmatpush1.bf16.msra.mxu0 0
    %4054 = vmatprep.subr.bf16.mxu0 0
    %4055 = vmatpush1.bf16.msra.mxu0 0
    %4056 = vmatprep.subr.bf16.mxu0 0
    %4057 = vmatpush1.bf16.msra.mxu0 0
    %4058 = vmatprep.subr.bf16.mxu0 0
    %4059 = vmatpush1.bf16.msra.mxu0 0
    %4060 = vmatprep.subr.bf16.mxu0 0
    %4061 = vmatpush1.bf16.msra.mxu0 0
    %4062 = vmatprep.subr.bf16.mxu0 0
    %4063 = vmatpush1.bf16.msra.mxu0 0
    %4064 = vmatprep.subr.bf16.mxu0 0
    %4065 = vmatpush1.bf16.msra.mxu0 0
    %4066 = vmatprep.subr.bf16.mxu0 0
    %4067 = vmatpush1.bf16.msra.mxu0 0
    %4068 = vmatprep.subr.bf16.mxu0 0
    %4069 = vmatpush1.bf16.msra.mxu0 0
    %4070 = vmatprep.subr.bf16.mxu0 0
    %4071 = vmatpush1.bf16.msra.mxu0 0
    %4072 = vmatprep.mubr.bf16.mxu0 0
    %4073 = vmatmul.mubr.bf16.gmra.mrb[0].mxu0 %v3990
    %v4074 = vpop.f32.mrb[0].mxu0
    %v4075 = vadd.f32 %v3712, %v4074
    %v4076 = vpop.f32.mrb[0].mxu0
    %v4077 = vadd.f32 %v3716, %v4076
    %v4078 = vpop.f32.mrb[0].mxu0
    %v4079 = vadd.f32 %v3712, %v4078
    %v4080 = vpop.f32.mrb[0].mxu0
    %v4081 = vadd.f32 %v3716, %v4080
    %4082 = vdwg.mxu0
    %4083 = vmatprep.subr.bf16.mxu0 %v3912
    %4084 = vmatpush1.bf16.msra.mxu0 %v3911
    %4085 = vmatprep.subr.bf16.mxu0 %v3928
    %4086 = vmatpush1.bf16.msra.mxu0 %v3927
    %4087 = vmatprep.subr.bf16.mxu0 %v4002
    %4088 = vmatpush1.bf16.msra.mxu0 %v3999
    %4089 = vmatprep.subr.bf16.mxu0 0
    %4090 = vmatpush1.bf16.msra.mxu0 0
    %4091 = vmatprep.subr.bf16.mxu0 0
    %4092 = vmatpush1.bf16.msra.mxu0 0
    %4093 = vmatprep.subr.bf16.mxu0 0
    %4094 = vmatpush1.bf16.msra.mxu0 0
    %4095 = vmatprep.subr.bf16.mxu0 0
    %4096 = vmatpush1.bf16.msra.mxu0 0
    %4097 = vmatprep.subr.bf16.mxu0 0
    %4098 = vmatpush1.bf16.msra.mxu0 0
    %4099 = vmatprep.subr.bf16.mxu0 0
    %4100 = vmatpush1.bf16.msra.mxu0 0
    %4101 = vmatprep.subr.bf16.mxu0 0
    %4102 = vmatpush1.bf16.msra.mxu0 0
    %4103 = vmatprep.subr.bf16.mxu0 0
    %4104 = vmatpush1.bf16.msra.mxu0 0
    %4105 = vmatprep.subr.bf16.mxu0 0
    %4106 = vmatpush1.bf16.msra.mxu0 0
    %4107 = vmatprep.subr.bf16.mxu0 0
    %4108 = vmatpush1.bf16.msra.mxu0 0
    %4109 = vmatprep.subr.bf16.mxu0 0
    %4110 = vmatpush1.bf16.msra.mxu0 0
    %4111 = vmatprep.subr.bf16.mxu0 0
    %4112 = vmatpush1.bf16.msra.mxu0 0
    %4113 = vmatprep.subr.bf16.mxu0 0
    %4114 = vmatpush1.bf16.msra.mxu0 0
    %4115 = vmatprep.mubr.bf16.mxu0 0
    %4116 = vmatmul.mubr.bf16.gmra.mrb[0].mxu0 %v3990
    %v4117 = vpop.f32.mrb[0].mxu0
    %v4118 = vadd.f32 %v3720, %v4117
    %v4119 = vpop.f32.mrb[0].mxu0
    %v4120 = vadd.f32 %v3724, %v4119
    %v4121 = vpop.f32.mrb[0].mxu0
    %v4122 = vadd.f32 %v3720, %v4121
    %v4123 = vpop.f32.mrb[0].mxu0
    %v4124 = vadd.f32 %v3724, %v4123
    %4125 = vdwg.mxu0
    %4126 = vmatprep.subr.bf16.mxu0 %v3914
    %4127 = vmatpush1.bf16.msra.mxu0 %v3913
    %4128 = vmatprep.subr.bf16.mxu0 %v3930
    %4129 = vmatpush1.bf16.msra.mxu0 %v3929
    %4130 = vmatprep.subr.bf16.mxu0 %v4008
    %4131 = vmatpush1.bf16.msra.mxu0 %v4005
    %4132 = vmatprep.subr.bf16.mxu0 0
    %4133 = vmatpush1.bf16.msra.mxu0 0
    %4134 = vmatprep.subr.bf16.mxu0 0
    %4135 = vmatpush1.bf16.msra.mxu0 0
    %4136 = vmatprep.subr.bf16.mxu0 0
    %4137 = vmatpush1.bf16.msra.mxu0 0
    %4138 = vmatprep.subr.bf16.mxu0 0
    %4139 = vmatpush1.bf16.msra.mxu0 0
    %4140 = vmatprep.subr.bf16.mxu0 0
    %4141 = vmatpush1.bf16.msra.mxu0 0
    %4142 = vmatprep.subr.bf16.mxu0 0
    %4143 = vmatpush1.bf16.msra.mxu0 0
    %4144 = vmatprep.subr.bf16.mxu0 0
    %4145 = vmatpush1.bf16.msra.mxu0 0
    %4146 = vmatprep.subr.bf16.mxu0 0
    %4147 = vmatpush1.bf16.msra.mxu0 0
    %4148 = vmatprep.subr.bf16.mxu0 0
    %4149 = vmatpush1.bf16.msra.mxu0 0
    %4150 = vmatprep.subr.bf16.mxu0 0
    %4151 = vmatpush1.bf16.msra.mxu0 0
    %4152 = vmatprep.subr.bf16.mxu0 0
    %4153 = vmatpush1.bf16.msra.mxu0 0
    %4154 = vmatprep.subr.bf16.mxu0 0
    %4155 = vmatpush1.bf16.msra.mxu0 0
    %4156 = vmatprep.subr.bf16.mxu0 0
    %4157 = vmatpush1.bf16.msra.mxu0 0
    %4158 = vmatprep.mubr.bf16.mxu0 0
    %4159 = vmatmul.mubr.bf16.gmra.mrb[0].mxu0 %v3990
    %v4160 = vpop.f32.mrb[0].mxu0
    %v4161 = vadd.f32 %v3728, %v4160
    %v4162 = vpop.f32.mrb[0].mxu0
    %v4163 = vadd.f32 %v3732, %v4162
    %v4164 = vpop.f32.mrb[0].mxu0
    %v4165 = vadd.f32 %v3728, %v4164
    %v4166 = vpop.f32.mrb[0].mxu0
    %v4167 = vadd.f32 %v3732, %v4166
    %4168 = vdwg.mxu0
    %4169 = vmatprep.subr.bf16.mxu0 %v3916
    %4170 = vmatpush1.bf16.msra.mxu0 %v3915
    %4171 = vmatprep.subr.bf16.mxu0 %v3932
    %4172 = vmatpush1.bf16.msra.mxu0 %v3931
    %4173 = vmatprep.subr.bf16.mxu0 %v4014
    %4174 = vmatpush1.bf16.msra.mxu0 %v4011
    %4175 = vmatprep.subr.bf16.mxu0 0
    %4176 = vmatpush1.bf16.msra.mxu0 0
    %4177 = vmatprep.subr.bf16.mxu0 0
    %4178 = vmatpush1.bf16.msra.mxu0 0
    %4179 = vmatprep.subr.bf16.mxu0 0
    %4180 = vmatpush1.bf16.msra.mxu0 0
    %4181 = vmatprep.subr.bf16.mxu0 0
    %4182 = vmatpush1.bf16.msra.mxu0 0
    %4183 = vmatprep.subr.bf16.mxu0 0
    %4184 = vmatpush1.bf16.msra.mxu0 0
    %4185 = vmatprep.subr.bf16.mxu0 0
    %4186 = vmatpush1.bf16.msra.mxu0 0
    %4187 = vmatprep.subr.bf16.mxu0 0
    %4188 = vmatpush1.bf16.msra.mxu0 0
    %4189 = vmatprep.subr.bf16.mxu0 0
    %4190 = vmatpush1.bf16.msra.mxu0 0
    %4191 = vmatprep.subr.bf16.mxu0 0
    %4192 = vmatpush1.bf16.msra.mxu0 0
    %4193 = vmatprep.subr.bf16.mxu0 0
    %4194 = vmatpush1.bf16.msra.mxu0 0
    %4195 = vmatprep.subr.bf16.mxu0 0
    %4196 = vmatpush1.bf16.msra.mxu0 0
    %4197 = vmatprep.subr.bf16.mxu0 0
    %4198 = vmatpush1.bf16.msra.mxu0 0
    %4199 = vmatprep.subr.bf16.mxu0 0
    %4200 = vmatpush1.bf16.msra.mxu0 0
    %4201 = vmatprep.mubr.bf16.mxu0 0
    %4202 = vmatmul.mubr.bf16.gmra.mrb[0].mxu0 %v3990
    %v4203 = vpop.f32.mrb[0].mxu0
    %v4204 = vadd.f32 %v3736, %v4203
    %v4205 = vpop.f32.mrb[0].mxu0
    %v4206 = vadd.f32 %v3740, %v4205
    %v4207 = vpop.f32.mrb[0].mxu0
    %v4208 = vadd.f32 %v3736, %v4207
    %v4209 = vpop.f32.mrb[0].mxu0
    %v4210 = vadd.f32 %v3740, %v4209
    %4211 = vdwg.mxu0
    %4212 = vmatprep.subr.bf16.mxu0 %v3918
    %4213 = vmatpush1.bf16.msra.mxu0 %v3917
    %4214 = vmatprep.subr.bf16.mxu0 %v3934
    %4215 = vmatpush1.bf16.msra.mxu0 %v3933
    %4216 = vmatprep.subr.bf16.mxu0 %v4020
    %4217 = vmatpush1.bf16.msra.mxu0 %v4017
    %4218 = vmatprep.subr.bf16.mxu0 0
    %4219 = vmatpush1.bf16.msra.mxu0 0
    %4220 = vmatprep.subr.bf16.mxu0 0
    %4221 = vmatpush1.bf16.msra.mxu0 0
    %4222 = vmatprep.subr.bf16.mxu0 0
    %4223 = vmatpush1.bf16.msra.mxu0 0
    %4224 = vmatprep.subr.bf16.mxu0 0
    %4225 = vmatpush1.bf16.msra.mxu0 0
    %4226 = vmatprep.subr.bf16.mxu0 0
    %4227 = vmatpush1.bf16.msra.mxu0 0
    %4228 = vmatprep.subr.bf16.mxu0 0
    %4229 = vmatpush1.bf16.msra.mxu0 0
    %4230 = vmatprep.subr.bf16.mxu0 0
    %4231 = vmatpush1.bf16.msra.mxu0 0
    %4232 = vmatprep.subr.bf16.mxu0 0
    %4233 = vmatpush1.bf16.msra.mxu0 0
    %4234 = vmatprep.subr.bf16.mxu0 0
    %4235 = vmatpush1.bf16.msra.mxu0 0
    %4236 = vmatprep.subr.bf16.mxu0 0
    %4237 = vmatpush1.bf16.msra.mxu0 0
    %4238 = vmatprep.subr.bf16.mxu0 0
    %4239 = vmatpush1.bf16.msra.mxu0 0
    %4240 = vmatprep.subr.bf16.mxu0 0
    %4241 = vmatpush1.bf16.msra.mxu0 0
    %4242 = vmatprep.subr.bf16.mxu0 0
    %4243 = vmatpush1.bf16.msra.mxu0 0
    %4244 = vmatprep.mubr.bf16.mxu0 0
    %4245 = vmatmul.mubr.bf16.gmra.mrb[0].mxu0 %v3990
    %v4246 = vpop.f32.mrb[0].mxu0
    %v4247 = vadd.f32 %v3744, %v4246
    %v4248 = vpop.f32.mrb[0].mxu0
    %v4249 = vadd.f32 %v3748, %v4248
    %v4250 = vpop.f32.mrb[0].mxu0
    %v4251 = vadd.f32 %v3744, %v4250
    %v4252 = vpop.f32.mrb[0].mxu0
    %v4253 = vadd.f32 %v3748, %v4252
    %4254 = vdwg.mxu0
    %4255 = vmatprep.subr.bf16.mxu0 %v3920
    %4256 = vmatpush1.bf16.msra.mxu0 %v3919
    %4257 = vmatprep.subr.bf16.mxu0 %v3936
    %4258 = vmatpush1.bf16.msra.mxu0 %v3935
    %4259 = vmatprep.subr.bf16.mxu0 %v4026
    %4260 = vmatpush1.bf16.msra.mxu0 %v4023
    %4261 = vmatprep.subr.bf16.mxu0 0
    %4262 = vmatpush1.bf16.msra.mxu0 0
    %4263 = vmatprep.subr.bf16.mxu0 0
    %4264 = vmatpush1.bf16.msra.mxu0 0
    %4265 = vmatprep.subr.bf16.mxu0 0
    %4266 = vmatpush1.bf16.msra.mxu0 0
    %4267 = vmatprep.subr.bf16.mxu0 0
    %4268 = vmatpush1.bf16.msra.mxu0 0
    %4269 = vmatprep.subr.bf16.mxu0 0
    %4270 = vmatpush1.bf16.msra.mxu0 0
    %4271 = vmatprep.subr.bf16.mxu0 0
    %4272 = vmatpush1.bf16.msra.mxu0 0
    %4273 = vmatprep.subr.bf16.mxu0 0
    %4274 = vmatpush1.bf16.msra.mxu0 0
    %4275 = vmatprep.subr.bf16.mxu0 0
    %4276 = vmatpush1.bf16.msra.mxu0 0
    %4277 = vmatprep.subr.bf16.mxu0 0
    %4278 = vmatpush1.bf16.msra.mxu0 0
    %4279 = vmatprep.subr.bf16.mxu0 0
    %4280 = vmatpush1.bf16.msra.mxu0 0
    %4281 = vmatprep.subr.bf16.mxu0 0
    %4282 = vmatpush1.bf16.msra.mxu0 0
    %4283 = vmatprep.subr.bf16.mxu0 0
    %4284 = vmatpush1.bf16.msra.mxu0 0
    %4285 = vmatprep.subr.bf16.mxu0 0
    %4286 = vmatpush1.bf16.msra.mxu0 0
    %4287 = vmatprep.mubr.bf16.mxu0 0
    %4288 = vmatmul.mubr.bf16.gmra.mrb[0].mxu0 %v3990
    %v4289 = vpop.f32.mrb[0].mxu0
    %v4290 = vadd.f32 %v3752, %v4289
    %v4291 = vpop.f32.mrb[0].mxu0
    %v4292 = vadd.f32 %v3756, %v4291
    %v4293 = vpop.f32.mrb[0].mxu0
    %v4294 = vadd.f32 %v3752, %v4293
    %v4295 = vpop.f32.mrb[0].mxu0
    %v4296 = vadd.f32 %v3756, %v4295
    %4297 = vdwg.mxu0
    %4298 = vmatprep.subr.bf16.mxu0 %v3922
    %4299 = vmatpush1.bf16.msra.mxu0 %v3921
    %4300 = vmatprep.subr.bf16.mxu0 %v3938
    %4301 = vmatpush1.bf16.msra.mxu0 %v3937
    %4302 = vmatprep.subr.bf16.mxu0 %v4032
    %4303 = vmatpush1.bf16.msra.mxu0 %v4029
    %4304 = vmatprep.subr.bf16.mxu0 0
    %4305 = vmatpush1.bf16.msra.mxu0 0
    %4306 = vmatprep.subr.bf16.mxu0 0
    %4307 = vmatpush1.bf16.msra.mxu0 0
    %4308 = vmatprep.subr.bf16.mxu0 0
    %4309 = vmatpush1.bf16.msra.mxu0 0
    %4310 = vmatprep.subr.bf16.mxu0 0
    %4311 = vmatpush1.bf16.msra.mxu0 0
    %4312 = vmatprep.subr.bf16.mxu0 0
    %4313 = vmatpush1.bf16.msra.mxu0 0
    %4314 = vmatprep.subr.bf16.mxu0 0
    %4315 = vmatpush1.bf16.msra.mxu0 0
    %4316 = vmatprep.subr.bf16.mxu0 0
    %4317 = vmatpush1.bf16.msra.mxu0 0
    %4318 = vmatprep.subr.bf16.mxu0 0
    %4319 = vmatpush1.bf16.msra.mxu0 0
    %4320 = vmatprep.subr.bf16.mxu0 0
    %4321 = vmatpush1.bf16.msra.mxu0 0
    %4322 = vmatprep.subr.bf16.mxu0 0
    %4323 = vmatpush1.bf16.msra.mxu0 0
    %4324 = vmatprep.subr.bf16.mxu0 0
    %4325 = vmatpush1.bf16.msra.mxu0 0
    %4326 = vmatprep.subr.bf16.mxu0 0
    %4327 = vmatpush1.bf16.msra.mxu0 0
    %4328 = vmatprep.subr.bf16.mxu0 0
    %4329 = vmatpush1.bf16.msra.mxu0 0
    %4330 = vmatprep.mubr.bf16.mxu0 0
    %4331 = vmatmul.mubr.bf16.gmra.mrb[0].mxu0 %v3990
    %v4332 = vpop.f32.mrb[0].mxu0
    %v4333 = vadd.f32 %v3760, %v4332
    %v4334 = vpop.f32.mrb[0].mxu0
    %v4335 = vadd.f32 %v3764, %v4334
    %v4336 = vpop.f32.mrb[0].mxu0
    %v4337 = vadd.f32 %v3760, %v4336
    %v4338 = vpop.f32.mrb[0].mxu0
    %v4339 = vadd.f32 %v3764, %v4338
    %4340 = vdwg.mxu0
    %4341 = vmatprep.subr.bf16.mxu0 %v3924
    %4342 = vmatpush1.bf16.msra.mxu0 %v3923
    %4343 = vmatprep.subr.bf16.mxu0 %v3940
    %4344 = vmatpush1.bf16.msra.mxu0 %v3939
    %4345 = vmatprep.subr.bf16.mxu0 %v4038
    %4346 = vmatpush1.bf16.msra.mxu0 %v4035
    %4347 = vmatprep.subr.bf16.mxu0 0
    %4348 = vmatpush1.bf16.msra.mxu0 0
    %4349 = vmatprep.subr.bf16.mxu0 0
    %4350 = vmatpush1.bf16.msra.mxu0 0
    %4351 = vmatprep.subr.bf16.mxu0 0
    %4352 = vmatpush1.bf16.msra.mxu0 0
    %4353 = vmatprep.subr.bf16.mxu0 0
    %4354 = vmatpush1.bf16.msra.mxu0 0
    %4355 = vmatprep.subr.bf16.mxu0 0
    %4356 = vmatpush1.bf16.msra.mxu0 0
    %4357 = vmatprep.subr.bf16.mxu0 0
    %4358 = vmatpush1.bf16.msra.mxu0 0
    %4359 = vmatprep.subr.bf16.mxu0 0
    %4360 = vmatpush1.bf16.msra.mxu0 0
    %4361 = vmatprep.subr.bf16.mxu0 0
    %4362 = vmatpush1.bf16.msra.mxu0 0
    %4363 = vmatprep.subr.bf16.mxu0 0
    %4364 = vmatpush1.bf16.msra.mxu0 0
    %4365 = vmatprep.subr.bf16.mxu0 0
    %4366 = vmatpush1.bf16.msra.mxu0 0
    %4367 = vmatprep.subr.bf16.mxu0 0
    %4368 = vmatpush1.bf16.msra.mxu0 0
    %4369 = vmatprep.subr.bf16.mxu0 0
    %4370 = vmatpush1.bf16.msra.mxu0 0
    %4371 = vmatprep.subr.bf16.mxu0 0
    %4372 = vmatpush1.bf16.msra.mxu0 0
    %4373 = vmatprep.mubr.bf16.mxu0 0
    %4374 = vmatmul.mubr.bf16.gmra.mrb[0].mxu0 %v3990
    %v4375 = vpop.f32.mrb[0].mxu0
    %v4376 = vadd.f32 %v3768, %v4375
    %v4377 = vpop.f32.mrb[0].mxu0
    %v4378 = vadd.f32 %v3772, %v4377
    %v4379 = vpop.f32.mrb[0].mxu0
    %v4380 = vadd.f32 %v3768, %v4379
    %v4381 = vpop.f32.mrb[0].mxu0
    %v4382 = vadd.f32 %v3772, %v4381
    %4383 = vdwg.mxu0
    %v4384 = vmax.f32 %v4075, 0.0
    %v4385 = vmax.f32 %v4077, 0.0
    %v4386 = vmax.f32 %v4118, 0.0
    %v4387 = vmax.f32 %v4120, 0.0
    %v4388 = vmax.f32 %v4161, 0.0
    %v4389 = vmax.f32 %v4163, 0.0
    %v4390 = vmax.f32 %v4204, 0.0
    %v4391 = vmax.f32 %v4206, 0.0
    %v4392 = vmax.f32 %v4247, 0.0
    %v4393 = vmax.f32 %v4249, 0.0
    %v4394 = vmax.f32 %v4290, 0.0
    %v4395 = vmax.f32 %v4292, 0.0
    %v4396 = vmax.f32 %v4333, 0.0
    %v4397 = vmax.f32 %v4335, 0.0
    %v4398 = vmax.f32 %v4376, 0.0
    %v4399 = vmax.f32 %v4378, 0.0
    %v4400 = vmax.f32 %v4079, 0.0
    %v4401 = vmax.f32 %v4081, 0.0
    %v4402 = vmax.f32 %v4122, 0.0
    %v4403 = vmax.f32 %v4124, 0.0
    %v4404 = vmax.f32 %v4165, 0.0
    %v4405 = vmax.f32 %v4167, 0.0
    %v4406 = vmax.f32 %v4208, 0.0
    %v4407 = vmax.f32 %v4210, 0.0
    %v4408 = vmax.f32 %v4251, 0.0
    %v4409 = vmax.f32 %v4253, 0.0
    %v4410 = vmax.f32 %v4294, 0.0
    %v4411 = vmax.f32 %v4296, 0.0
    %v4412 = vmax.f32 %v4337, 0.0
    %v4413 = vmax.f32 %v4339, 0.0
    %v4414 = vmax.f32 %v4380, 0.0
    %v4415 = vmax.f32 %v4382, 0.0
    %v4416 = vpack.c.bf16 %v4400, %v4384
    %v4417 = vpack.c.bf16 %v4401, %v4385
    %v4418 = vpack.c.bf16 %v4402, %v4386
    %v4419 = vpack.c.bf16 %v4403, %v4387
    %v4420 = vpack.c.bf16 %v4404, %v4388
    %v4421 = vpack.c.bf16 %v4405, %v4389
    %v4422 = vpack.c.bf16 %v4406, %v4390
    %v4423 = vpack.c.bf16 %v4407, %v4391
    %v4424 = vpack.c.bf16 %v4408, %v4392
    %v4425 = vpack.c.bf16 %v4409, %v4393
    %v4426 = vpack.c.bf16 %v4410, %v4394
    %v4427 = vpack.c.bf16 %v4411, %v4395
    %v4428 = vpack.c.bf16 %v4412, %v4396
    %v4429 = vpack.c.bf16 %v4413, %v4397
    %v4430 = vpack.c.bf16 %v4414, %v4398
    %v4431 = vpack.c.bf16 %v4415, %v4399
    %v4432 = vld [vmem:[%s11] sm:$0xf]
    %v4433 = vld [vmem:[%s11 + $0x4] sm:$0xf]
    %v4434 = vld [vmem:[%s11 + $0x8] sm:$0xf]
    %v4435 = vld [vmem:[%s11 + $0xc] sm:$0xf]
    %v4436 = vld [vmem:[%s11 + $0x10] sm:$0xf]
    %v4437 = vld [vmem:[%s11 + $0x14] sm:$0xf]
    %v4438 = vld [vmem:[%s11 + $0x18] sm:$0xf]
    %v4439 = vld [vmem:[%s11 + $0x1c] sm:$0xf]
    %v4440 = vld [vmem:[%s11 + $0x20] sm:$0xf]
    %v4441 = vld [vmem:[%s11 + $0x24] sm:$0xf]
    %v4442 = vld [vmem:[%s11 + $0x28] sm:$0xf]
    %v4443 = vld [vmem:[%s11 + $0x2c] sm:$0xf]
    %v4444 = vld [vmem:[%s11 + $0x30] sm:$0xf]
    %v4445 = vld [vmem:[%s11 + $0x34] sm:$0xf]
    %v4446 = vld [vmem:[%s11 + $0x38] sm:$0xf]
    %v4447 = vld [vmem:[%s11 + $0x3c] sm:$0xf]
    %v4448 = vld [vmem:[%s11 + $0x40] sm:$0xf]
    %v4449 = vld [vmem:[%s11 + $0x44] sm:$0xf]
    %v4450 = vld [vmem:[%s11 + $0x48] sm:$0xf]
    %v4451 = vld [vmem:[%s11 + $0x4c] sm:$0xf]
    %v4452 = vld [vmem:[%s11 + $0x50] sm:$0xf]
    %v4453 = vld [vmem:[%s11 + $0x54] sm:$0xf]
    %v4454 = vld [vmem:[%s11 + $0x58] sm:$0xf]
    %v4455 = vld [vmem:[%s11 + $0x5c] sm:$0xf]
    %v4456 = vld [vmem:[%s11 + $0x60] sm:$0xf]
    %v4457 = vld [vmem:[%s11 + $0x64] sm:$0xf]
    %v4458 = vld [vmem:[%s11 + $0x68] sm:$0xf]
    %v4459 = vld [vmem:[%s11 + $0x6c] sm:$0xf]
    %v4460 = vld [vmem:[%s11 + $0x70] sm:$0xf]
    %v4461 = vld [vmem:[%s11 + $0x74] sm:$0xf]
    %v4462 = vld [vmem:[%s11 + $0x78] sm:$0xf]
    %v4463 = vld [vmem:[%s11 + $0x7c] sm:$0xf]
    %v4464 = vld [vmem:[%s11 + $0x80] sm:$0xf]
    %v4465 = vld [vmem:[%s11 + $0x84] sm:$0xf]
    %v4466 = vld [vmem:[%s11 + $0x88] sm:$0xf]
    %v4467 = vld [vmem:[%s11 + $0x8c] sm:$0xf]
    %v4468 = vld [vmem:[%s11 + $0x90] sm:$0xf]
    %v4469 = vld [vmem:[%s11 + $0x94] sm:$0xf]
    %v4470 = vld [vmem:[%s11 + $0x98] sm:$0xf]
    %v4471 = vld [vmem:[%s11 + $0x9c] sm:$0xf]
    %v4472 = vld [vmem:[%s11 + $0xa0] sm:$0xf]
    %v4473 = vld [vmem:[%s11 + $0xa4] sm:$0xf]
    %v4474 = vld [vmem:[%s11 + $0xa8] sm:$0xf]
    %v4475 = vld [vmem:[%s11 + $0xac] sm:$0xf]
    %v4476 = vld [vmem:[%s11 + $0xb0] sm:$0xf]
    %v4477 = vld [vmem:[%s11 + $0xb4] sm:$0xf]
    %v4478 = vld [vmem:[%s11 + $0xb8] sm:$0xf]
    %v4479 = vld [vmem:[%s11 + $0xbc] sm:$0xf]
    %v4480 = vld [vmem:[%s11 + $0xc0] sm:$0xf]
    %v4481 = vld [vmem:[%s11 + $0xc4] sm:$0xf]
    %v4482 = vld [vmem:[%s11 + $0xc8] sm:$0xf]
    %v4483 = vld [vmem:[%s11 + $0xcc] sm:$0xf]
    %v4484 = vld [vmem:[%s11 + $0xd0] sm:$0xf]
    %v4485 = vld [vmem:[%s11 + $0xd4] sm:$0xf]
    %v4486 = vld [vmem:[%s11 + $0xd8] sm:$0xf]
    %v4487 = vld [vmem:[%s11 + $0xdc] sm:$0xf]
    %v4488 = vld [vmem:[%s11 + $0xe0] sm:$0xf]
    %v4489 = vld [vmem:[%s11 + $0xe4] sm:$0xf]
    %v4490 = vld [vmem:[%s11 + $0xe8] sm:$0xf]
    %v4491 = vld [vmem:[%s11 + $0xec] sm:$0xf]
    %v4492 = vld [vmem:[%s11 + $0xf0] sm:$0xf]
    %v4493 = vld [vmem:[%s11 + $0xf4] sm:$0xf]
    %v4494 = vld [vmem:[%s11 + $0xf8] sm:$0xf]
    %v4495 = vld [vmem:[%s11 + $0xfc] sm:$0xf]
    %v4496 = vld [vmem:[%s11 + $0x100] sm:$0xf]
    %v4497 = vld [vmem:[%s11 + $0x104] sm:$0xf]
    %v4498 = vld [vmem:[%s11 + $0x108] sm:$0xf]
    %v4499 = vld [vmem:[%s11 + $0x10c] sm:$0xf]
    %v4500 = vld [vmem:[%s11 + $0x110] sm:$0xf]
    %v4501 = vld [vmem:[%s11 + $0x114] sm:$0xf]
    %v4502 = vld [vmem:[%s11 + $0x118] sm:$0xf]
    %v4503 = vld [vmem:[%s11 + $0x11c] sm:$0xf]
    %v4504 = vld [vmem:[%s11 + $0x120] sm:$0xf]
    %v4505 = vld [vmem:[%s11 + $0x124] sm:$0xf]
    %v4506 = vld [vmem:[%s11 + $0x128] sm:$0xf]
    %v4507 = vld [vmem:[%s11 + $0x12c] sm:$0xf]
    %v4508 = vld [vmem:[%s11 + $0x130] sm:$0xf]
    %v4509 = vld [vmem:[%s11 + $0x134] sm:$0xf]
    %v4510 = vld [vmem:[%s11 + $0x138] sm:$0xf]
    %v4511 = vld [vmem:[%s11 + $0x13c] sm:$0xf]
    %v4512 = vld [vmem:[%s11 + $0x140] sm:$0xf]
    %v4513 = vld [vmem:[%s11 + $0x144] sm:$0xf]
    %v4514 = vld [vmem:[%s11 + $0x148] sm:$0xf]
    %v4515 = vld [vmem:[%s11 + $0x14c] sm:$0xf]
    %v4516 = vld [vmem:[%s11 + $0x150] sm:$0xf]
    %v4517 = vld [vmem:[%s11 + $0x154] sm:$0xf]
    %v4518 = vld [vmem:[%s11 + $0x158] sm:$0xf]
    %v4519 = vld [vmem:[%s11 + $0x15c] sm:$0xf]
    %v4520 = vld [vmem:[%s11 + $0x160] sm:$0xf]
    %v4521 = vld [vmem:[%s11 + $0x164] sm:$0xf]
    %v4522 = vld [vmem:[%s11 + $0x168] sm:$0xf]
    %v4523 = vld [vmem:[%s11 + $0x16c] sm:$0xf]
    %v4524 = vld [vmem:[%s11 + $0x170] sm:$0xf]
    %v4525 = vld [vmem:[%s11 + $0x174] sm:$0xf]
    %v4526 = vld [vmem:[%s11 + $0x178] sm:$0xf]
    %v4527 = vld [vmem:[%s11 + $0x17c] sm:$0xf]
    %v4528 = vld [vmem:[%s11 + $0x180] sm:$0xf]
    %v4529 = vld [vmem:[%s11 + $0x184] sm:$0xf]
    %v4530 = vld [vmem:[%s11 + $0x188] sm:$0xf]
    %v4531 = vld [vmem:[%s11 + $0x18c] sm:$0xf]
    %v4532 = vld [vmem:[%s11 + $0x190] sm:$0xf]
    %v4533 = vld [vmem:[%s11 + $0x194] sm:$0xf]
    %v4534 = vld [vmem:[%s11 + $0x198] sm:$0xf]
    %v4535 = vld [vmem:[%s11 + $0x19c] sm:$0xf]
    %v4536 = vld [vmem:[%s11 + $0x1a0] sm:$0xf]
    %v4537 = vld [vmem:[%s11 + $0x1a4] sm:$0xf]
    %v4538 = vld [vmem:[%s11 + $0x1a8] sm:$0xf]
    %v4539 = vld [vmem:[%s11 + $0x1ac] sm:$0xf]
    %v4540 = vld [vmem:[%s11 + $0x1b0] sm:$0xf]
    %v4541 = vld [vmem:[%s11 + $0x1b4] sm:$0xf]
    %v4542 = vld [vmem:[%s11 + $0x1b8] sm:$0xf]
    %v4543 = vld [vmem:[%s11 + $0x1bc] sm:$0xf]
    %v4544 = vld [vmem:[%s11 + $0x1c0] sm:$0xf]
    %v4545 = vld [vmem:[%s11 + $0x1c4] sm:$0xf]
    %v4546 = vld [vmem:[%s11 + $0x1c8] sm:$0xf]
    %v4547 = vld [vmem:[%s11 + $0x1cc] sm:$0xf]
    %v4548 = vld [vmem:[%s11 + $0x1d0] sm:$0xf]
    %v4549 = vld [vmem:[%s11 + $0x1d4] sm:$0xf]
    %v4550 = vld [vmem:[%s11 + $0x1d8] sm:$0xf]
    %v4551 = vld [vmem:[%s11 + $0x1dc] sm:$0xf]
    %v4552 = vld [vmem:[%s11 + $0x1e0] sm:$0xf]
    %v4553 = vld [vmem:[%s11 + $0x1e4] sm:$0xf]
    %v4554 = vld [vmem:[%s11 + $0x1e8] sm:$0xf]
    %v4555 = vld [vmem:[%s11 + $0x1ec] sm:$0xf]
    %v4556 = vld [vmem:[%s11 + $0x1f0] sm:$0xf]
    %v4557 = vld [vmem:[%s11 + $0x1f4] sm:$0xf]
    %v4558 = vld [vmem:[%s11 + $0x1f8] sm:$0xf]
    %v4559 = vld [vmem:[%s11 + $0x1fc] sm:$0xf]
    %v4560 = vld [vmem:[%s11 + $0x200] sm:$0xf]
    %v4561 = vld [vmem:[%s11 + $0x204] sm:$0xf]
    %v4562 = vld [vmem:[%s11 + $0x208] sm:$0xf]
    %v4563 = vld [vmem:[%s11 + $0x20c] sm:$0xf]
    %v4564 = vld [vmem:[%s11 + $0x210] sm:$0xf]
    %v4565 = vld [vmem:[%s11 + $0x214] sm:$0xf]
    %v4566 = vld [vmem:[%s11 + $0x218] sm:$0xf]
    %v4567 = vld [vmem:[%s11 + $0x21c] sm:$0xf]
    %v4568 = vld [vmem:[%s11 + $0x220] sm:$0xf]
    %v4569 = vld [vmem:[%s11 + $0x224] sm:$0xf]
    %v4570 = vld [vmem:[%s11 + $0x228] sm:$0xf]
    %v4571 = vld [vmem:[%s11 + $0x22c] sm:$0xf]
    %v4572 = vld [vmem:[%s11 + $0x230] sm:$0xf]
    %v4573 = vld [vmem:[%s11 + $0x234] sm:$0xf]
    %v4574 = vld [vmem:[%s11 + $0x238] sm:$0xf]
    %v4575 = vld [vmem:[%s11 + $0x23c] sm:$0xf]
    %v4576 = vld [vmem:[%s11 + $0x240] sm:$0xf]
    %v4577 = vld [vmem:[%s11 + $0x244] sm:$0xf]
    %v4578 = vld [vmem:[%s11 + $0x248] sm:$0xf]
    %v4579 = vld [vmem:[%s11 + $0x24c] sm:$0xf]
    %v4580 = vld [vmem:[%s11 + $0x250] sm:$0xf]
    %v4581 = vld [vmem:[%s11 + $0x254] sm:$0xf]
    %v4582 = vld [vmem:[%s11 + $0x258] sm:$0xf]
    %v4583 = vld [vmem:[%s11 + $0x25c] sm:$0xf]
    %v4584 = vld [vmem:[%s11 + $0x260] sm:$0xf]
    %v4585 = vld [vmem:[%s11 + $0x264] sm:$0xf]
    %v4586 = vld [vmem:[%s11 + $0x268] sm:$0xf]
    %v4587 = vld [vmem:[%s11 + $0x26c] sm:$0xf]
    %v4588 = vld [vmem:[%s11 + $0x270] sm:$0xf]
    %v4589 = vld [vmem:[%s11 + $0x274] sm:$0xf]
    %v4590 = vld [vmem:[%s11 + $0x278] sm:$0xf]
    %v4591 = vld [vmem:[%s11 + $0x27c] sm:$0xf]
    %v4592 = vld [vmem:[%s11 + $0x280] sm:$0xf]
    %v4593 = vld [vmem:[%s11 + $0x284] sm:$0xf]
    %v4594 = vld [vmem:[%s11 + $0x288] sm:$0xf]
    %v4595 = vld [vmem:[%s11 + $0x28c] sm:$0xf]
    %v4596 = vld [vmem:[%s11 + $0x290] sm:$0xf]
    %v4597 = vld [vmem:[%s11 + $0x294] sm:$0xf]
    %v4598 = vld [vmem:[%s11 + $0x298] sm:$0xf]
    %v4599 = vld [vmem:[%s11 + $0x29c] sm:$0xf]
    %v4600 = vld [vmem:[%s11 + $0x2a0] sm:$0xf]
    %v4601 = vld [vmem:[%s11 + $0x2a4] sm:$0xf]
    %v4602 = vld [vmem:[%s11 + $0x2a8] sm:$0xf]
    %v4603 = vld [vmem:[%s11 + $0x2ac] sm:$0xf]
    %v4604 = vld [vmem:[%s11 + $0x2b0] sm:$0xf]
    %v4605 = vld [vmem:[%s11 + $0x2b4] sm:$0xf]
    %v4606 = vld [vmem:[%s11 + $0x2b8] sm:$0xf]
    %v4607 = vld [vmem:[%s11 + $0x2bc] sm:$0xf]
    %v4608 = vld [vmem:[%s11 + $0x2c0] sm:$0xf]
    %v4609 = vld [vmem:[%s11 + $0x2c4] sm:$0xf]
    %v4610 = vld [vmem:[%s11 + $0x2c8] sm:$0xf]
    %v4611 = vld [vmem:[%s11 + $0x2cc] sm:$0xf]
    %v4612 = vld [vmem:[%s11 + $0x2d0] sm:$0xf]
    %v4613 = vld [vmem:[%s11 + $0x2d4] sm:$0xf]
    %v4614 = vld [vmem:[%s11 + $0x2d8] sm:$0xf]
    %v4615 = vld [vmem:[%s11 + $0x2dc] sm:$0xf]
    %v4616 = vld [vmem:[%s11 + $0x2e0] sm:$0xf]
    %v4617 = vld [vmem:[%s11 + $0x2e4] sm:$0xf]
    %v4618 = vld [vmem:[%s11 + $0x2e8] sm:$0xf]
    %v4619 = vld [vmem:[%s11 + $0x2ec] sm:$0xf]
    %v4620 = vld [vmem:[%s11 + $0x2f0] sm:$0xf]
    %v4621 = vld [vmem:[%s11 + $0x2f4] sm:$0xf]
    %v4622 = vld [vmem:[%s11 + $0x2f8] sm:$0xf]
    %v4623 = vld [vmem:[%s11 + $0x2fc] sm:$0xf]
    %v4624 = vld [vmem:[%s11 + $0x300] sm:$0xf]
    %v4625 = vld [vmem:[%s11 + $0x304] sm:$0xf]
    %v4626 = vld [vmem:[%s11 + $0x308] sm:$0xf]
    %v4627 = vld [vmem:[%s11 + $0x30c] sm:$0xf]
    %v4628 = vld [vmem:[%s11 + $0x310] sm:$0xf]
    %v4629 = vld [vmem:[%s11 + $0x314] sm:$0xf]
    %v4630 = vld [vmem:[%s11 + $0x318] sm:$0xf]
    %v4631 = vld [vmem:[%s11 + $0x31c] sm:$0xf]
    %v4632 = vld [vmem:[%s11 + $0x320] sm:$0xf]
    %v4633 = vld [vmem:[%s11 + $0x324] sm:$0xf]
    %v4634 = vld [vmem:[%s11 + $0x328] sm:$0xf]
    %v4635 = vld [vmem:[%s11 + $0x32c] sm:$0xf]
    %v4636 = vld [vmem:[%s11 + $0x330] sm:$0xf]
    %v4637 = vld [vmem:[%s11 + $0x334] sm:$0xf]
    %v4638 = vld [vmem:[%s11 + $0x338] sm:$0xf]
    %v4639 = vld [vmem:[%s11 + $0x33c] sm:$0xf]
    %v4640 = vld [vmem:[%s11 + $0x340] sm:$0xf]
    %v4641 = vld [vmem:[%s11 + $0x344] sm:$0xf]
    %v4642 = vld [vmem:[%s11 + $0x348] sm:$0xf]
    %v4643 = vld [vmem:[%s11 + $0x34c] sm:$0xf]
    %v4644 = vld [vmem:[%s11 + $0x350] sm:$0xf]
    %v4645 = vld [vmem:[%s11 + $0x354] sm:$0xf]
    %v4646 = vld [vmem:[%s11 + $0x358] sm:$0xf]
    %v4647 = vld [vmem:[%s11 + $0x35c] sm:$0xf]
    %v4648 = vld [vmem:[%s11 + $0x360] sm:$0xf]
    %v4649 = vld [vmem:[%s11 + $0x364] sm:$0xf]
    %v4650 = vld [vmem:[%s11 + $0x368] sm:$0xf]
    %v4651 = vld [vmem:[%s11 + $0x36c] sm:$0xf]
    %v4652 = vld [vmem:[%s11 + $0x370] sm:$0xf]
    %v4653 = vld [vmem:[%s11 + $0x374] sm:$0xf]
    %v4654 = vld [vmem:[%s11 + $0x378] sm:$0xf]
    %v4655 = vld [vmem:[%s11 + $0x37c] sm:$0xf]
    %v4656 = vld [vmem:[%s11 + $0x380] sm:$0xf]
    %v4657 = vld [vmem:[%s11 + $0x384] sm:$0xf]
    %v4658 = vld [vmem:[%s11 + $0x388] sm:$0xf]
    %v4659 = vld [vmem:[%s11 + $0x38c] sm:$0xf]
    %v4660 = vld [vmem:[%s11 + $0x390] sm:$0xf]
    %v4661 = vld [vmem:[%s11 + $0x394] sm:$0xf]
    %v4662 = vld [vmem:[%s11 + $0x398] sm:$0xf]
    %v4663 = vld [vmem:[%s11 + $0x39c] sm:$0xf]
    %v4664 = vld [vmem:[%s11 + $0x3a0] sm:$0xf]
    %v4665 = vld [vmem:[%s11 + $0x3a4] sm:$0xf]
    %v4666 = vld [vmem:[%s11 + $0x3a8] sm:$0xf]
    %v4667 = vld [vmem:[%s11 + $0x3ac] sm:$0xf]
    %v4668 = vld [vmem:[%s11 + $0x3b0] sm:$0xf]
    %v4669 = vld [vmem:[%s11 + $0x3b4] sm:$0xf]
    %v4670 = vld [vmem:[%s11 + $0x3b8] sm:$0xf]
    %v4671 = vld [vmem:[%s11 + $0x3bc] sm:$0xf]
    %v4672 = vld [vmem:[%s11 + $0x3c0] sm:$0xf]
    %v4673 = vld [vmem:[%s11 + $0x3c4] sm:$0xf]
    %v4674 = vld [vmem:[%s11 + $0x3c8] sm:$0xf]
    %v4675 = vld [vmem:[%s11 + $0x3cc] sm:$0xf]
    %v4676 = vld [vmem:[%s11 + $0x3d0] sm:$0xf]
    %v4677 = vld [vmem:[%s11 + $0x3d4] sm:$0xf]
    %v4678 = vld [vmem:[%s11 + $0x3d8] sm:$0xf]
    %v4679 = vld [vmem:[%s11 + $0x3dc] sm:$0xf]
    %v4680 = vld [vmem:[%s11 + $0x3e0] sm:$0xf]
    %v4681 = vld [vmem:[%s11 + $0x3e4] sm:$0xf]
    %v4682 = vld [vmem:[%s11 + $0x3e8] sm:$0xf]
    %v4683 = vld [vmem:[%s11 + $0x3ec] sm:$0xf]
    %v4684 = vld [vmem:[%s11 + $0x3f0] sm:$0xf]
    %v4685 = vld [vmem:[%s11 + $0x3f4] sm:$0xf]
    %v4686 = vld [vmem:[%s11 + $0x3f8] sm:$0xf]
    %v4687 = vld [vmem:[%s11 + $0x3fc] sm:$0xf]
    %v4688 = vld [vmem:[%s12] sm:$0x1]
    %v4690 = vlaneseq
    %v4691 = vshrl.u32 %v4690, 7
    %v4692 = vsub.s32 0, %v4691
    %v4693 = vrot.slane %v4688, %v4692
    %v4951 = vunpack.c.l.b16 %v4432
    %v4952 = vunpack.c.l.b16 %v4433
    %v4953 = vunpack.c.l.b16 %v4434
    %v4954 = vunpack.c.l.b16 %v4435
    %v4955 = vunpack.c.l.b16 %v4436
    %v4956 = vunpack.c.l.b16 %v4437
    %v4957 = vunpack.c.l.b16 %v4438
    %v4958 = vunpack.c.l.b16 %v4439
    %v4959 = vunpack.c.l.b16 %v4440
    %v4960 = vunpack.c.l.b16 %v4441
    %v4961 = vunpack.c.l.b16 %v4442
    %v4962 = vunpack.c.l.b16 %v4443
    %v4963 = vunpack.c.l.b16 %v4444
    %v4964 = vunpack.c.l.b16 %v4445
    %v4965 = vunpack.c.l.b16 %v4446
    %v4966 = vunpack.c.l.b16 %v4447
    %v4967 = vunpack.c.l.b16 %v4448
    %v4968 = vunpack.c.l.b16 %v4449
    %v4969 = vunpack.c.l.b16 %v4450
    %v4970 = vunpack.c.l.b16 %v4451
    %v4971 = vunpack.c.l.b16 %v4452
    %v4972 = vunpack.c.l.b16 %v4453
    %v4973 = vunpack.c.l.b16 %v4454
    %v4974 = vunpack.c.l.b16 %v4455
    %v4975 = vunpack.c.l.b16 %v4456
    %v4976 = vunpack.c.l.b16 %v4457
    %v4977 = vunpack.c.l.b16 %v4458
    %v4978 = vunpack.c.l.b16 %v4459
    %v4979 = vunpack.c.l.b16 %v4460
    %v4980 = vunpack.c.l.b16 %v4461
    %v4981 = vunpack.c.l.b16 %v4462
    %v4982 = vunpack.c.l.b16 %v4463
    %v4983 = vunpack.c.l.b16 %v4464
    %v4984 = vunpack.c.l.b16 %v4465
    %v4985 = vunpack.c.l.b16 %v4466
    %v4986 = vunpack.c.l.b16 %v4467
    %v4987 = vunpack.c.l.b16 %v4468
    %v4988 = vunpack.c.l.b16 %v4469
    %v4989 = vunpack.c.l.b16 %v4470
    %v4990 = vunpack.c.l.b16 %v4471
    %v4991 = vunpack.c.l.b16 %v4472
    %v4992 = vunpack.c.l.b16 %v4473
    %v4993 = vunpack.c.l.b16 %v4474
    %v4994 = vunpack.c.l.b16 %v4475
    %v4995 = vunpack.c.l.b16 %v4476
    %v4996 = vunpack.c.l.b16 %v4477
    %v4997 = vunpack.c.l.b16 %v4478
    %v4998 = vunpack.c.l.b16 %v4479
    %v4999 = vunpack.c.l.b16 %v4480
    %v5000 = vunpack.c.l.b16 %v4481
    %v5001 = vunpack.c.l.b16 %v4482
    %v5002 = vunpack.c.l.b16 %v4483
    %v5003 = vunpack.c.l.b16 %v4484
    %v5004 = vunpack.c.l.b16 %v4485
    %v5005 = vunpack.c.l.b16 %v4486
    %v5006 = vunpack.c.l.b16 %v4487
    %v5007 = vunpack.c.l.b16 %v4488
    %v5008 = vunpack.c.l.b16 %v4489
    %v5009 = vunpack.c.l.b16 %v4490
    %v5010 = vunpack.c.l.b16 %v4491
    %v5011 = vunpack.c.l.b16 %v4492
    %v5012 = vunpack.c.l.b16 %v4493
    %v5013 = vunpack.c.l.b16 %v4494
    %v5014 = vunpack.c.l.b16 %v4495
    %v5015 = vunpack.c.l.b16 %v4496
    %v5016 = vunpack.c.l.b16 %v4497
    %v5017 = vunpack.c.l.b16 %v4498
    %v5018 = vunpack.c.l.b16 %v4499
    %v5019 = vunpack.c.l.b16 %v4500
    %v5020 = vunpack.c.l.b16 %v4501
    %v5021 = vunpack.c.l.b16 %v4502
    %v5022 = vunpack.c.l.b16 %v4503
    %v5023 = vunpack.c.l.b16 %v4504
    %v5024 = vunpack.c.l.b16 %v4505
    %v5025 = vunpack.c.l.b16 %v4506
    %v5026 = vunpack.c.l.b16 %v4507
    %v5027 = vunpack.c.l.b16 %v4508
    %v5028 = vunpack.c.l.b16 %v4509
    %v5029 = vunpack.c.l.b16 %v4510
    %v5030 = vunpack.c.l.b16 %v4511
    %v5031 = vunpack.c.l.b16 %v4512
    %v5032 = vunpack.c.l.b16 %v4513
    %v5033 = vunpack.c.l.b16 %v4514
    %v5034 = vunpack.c.l.b16 %v4515
    %v5035 = vunpack.c.l.b16 %v4516
    %v5036 = vunpack.c.l.b16 %v4517
    %v5037 = vunpack.c.l.b16 %v4518
    %v5038 = vunpack.c.l.b16 %v4519
    %v5039 = vunpack.c.l.b16 %v4520
    %v5040 = vunpack.c.l.b16 %v4521
    %v5041 = vunpack.c.l.b16 %v4522
    %v5042 = vunpack.c.l.b16 %v4523
    %v5043 = vunpack.c.l.b16 %v4524
    %v5044 = vunpack.c.l.b16 %v4525
    %v5045 = vunpack.c.l.b16 %v4526
    %v5046 = vunpack.c.l.b16 %v4527
    %v5047 = vunpack.c.l.b16 %v4528
    %v5048 = vunpack.c.l.b16 %v4529
    %v5049 = vunpack.c.l.b16 %v4530
    %v5050 = vunpack.c.l.b16 %v4531
    %v5051 = vunpack.c.l.b16 %v4532
    %v5052 = vunpack.c.l.b16 %v4533
    %v5053 = vunpack.c.l.b16 %v4534
    %v5054 = vunpack.c.l.b16 %v4535
    %v5055 = vunpack.c.l.b16 %v4536
    %v5056 = vunpack.c.l.b16 %v4537
    %v5057 = vunpack.c.l.b16 %v4538
    %v5058 = vunpack.c.l.b16 %v4539
    %v5059 = vunpack.c.l.b16 %v4540
    %v5060 = vunpack.c.l.b16 %v4541
    %v5061 = vunpack.c.l.b16 %v4542
    %v5062 = vunpack.c.l.b16 %v4543
    %v5063 = vunpack.c.l.b16 %v4544
    %v5064 = vunpack.c.l.b16 %v4545
    %v5065 = vunpack.c.l.b16 %v4546
    %v5066 = vunpack.c.l.b16 %v4547
    %v5067 = vunpack.c.l.b16 %v4548
    %v5068 = vunpack.c.l.b16 %v4549
    %v5069 = vunpack.c.l.b16 %v4550
    %v5070 = vunpack.c.l.b16 %v4551
    %v5071 = vunpack.c.l.b16 %v4552
    %v5072 = vunpack.c.l.b16 %v4553
    %v5073 = vunpack.c.l.b16 %v4554
    %v5074 = vunpack.c.l.b16 %v4555
    %v5075 = vunpack.c.l.b16 %v4556
    %v5076 = vunpack.c.l.b16 %v4557
    %v5077 = vunpack.c.l.b16 %v4558
    %v5078 = vunpack.c.l.b16 %v4559
    %v5079 = vunpack.c.l.b16 %v4560
    %v5080 = vunpack.c.l.b16 %v4561
    %v5081 = vunpack.c.l.b16 %v4562
    %v5082 = vunpack.c.l.b16 %v4563
    %v5083 = vunpack.c.l.b16 %v4564
    %v5084 = vunpack.c.l.b16 %v4565
    %v5085 = vunpack.c.l.b16 %v4566
    %v5086 = vunpack.c.l.b16 %v4567
    %v5087 = vunpack.c.l.b16 %v4568
    %v5088 = vunpack.c.l.b16 %v4569
    %v5089 = vunpack.c.l.b16 %v4570
    %v5090 = vunpack.c.l.b16 %v4571
    %v5091 = vunpack.c.l.b16 %v4572
    %v5092 = vunpack.c.l.b16 %v4573
    %v5093 = vunpack.c.l.b16 %v4574
    %v5094 = vunpack.c.l.b16 %v4575
    %v5095 = vunpack.c.l.b16 %v4576
    %v5096 = vunpack.c.l.b16 %v4577
    %v5097 = vunpack.c.l.b16 %v4578
    %v5098 = vunpack.c.l.b16 %v4579
    %v5099 = vunpack.c.l.b16 %v4580
    %v5100 = vunpack.c.l.b16 %v4581
    %v5101 = vunpack.c.l.b16 %v4582
    %v5102 = vunpack.c.l.b16 %v4583
    %v5103 = vunpack.c.l.b16 %v4584
    %v5104 = vunpack.c.l.b16 %v4585
    %v5105 = vunpack.c.l.b16 %v4586
    %v5106 = vunpack.c.l.b16 %v4587
    %v5107 = vunpack.c.l.b16 %v4588
    %v5108 = vunpack.c.l.b16 %v4589
    %v5109 = vunpack.c.l.b16 %v4590
    %v5110 = vunpack.c.l.b16 %v4591
    %v5111 = vunpack.c.l.b16 %v4592
    %v5112 = vunpack.c.l.b16 %v4593
    %v5113 = vunpack.c.l.b16 %v4594
    %v5114 = vunpack.c.l.b16 %v4595
    %v5115 = vunpack.c.l.b16 %v4596
    %v5116 = vunpack.c.l.b16 %v4597
    %v5117 = vunpack.c.l.b16 %v4598
    %v5118 = vunpack.c.l.b16 %v4599
    %v5119 = vunpack.c.l.b16 %v4600
    %v5120 = vunpack.c.l.b16 %v4601
    %v5121 = vunpack.c.l.b16 %v4602
    %v5122 = vunpack.c.l.b16 %v4603
    %v5123 = vunpack.c.l.b16 %v4604
    %v5124 = vunpack.c.l.b16 %v4605
    %v5125 = vunpack.c.l.b16 %v4606
    %v5126 = vunpack.c.l.b16 %v4607
    %v5127 = vunpack.c.l.b16 %v4608
    %v5128 = vunpack.c.l.b16 %v4609
    %v5129 = vunpack.c.l.b16 %v4610
    %v5130 = vunpack.c.l.b16 %v4611
    %v5131 = vunpack.c.l.b16 %v4612
    %v5132 = vunpack.c.l.b16 %v4613
    %v5133 = vunpack.c.l.b16 %v4614
    %v5134 = vunpack.c.l.b16 %v4615
    %v5135 = vunpack.c.l.b16 %v4616
    %v5136 = vunpack.c.l.b16 %v4617
    %v5137 = vunpack.c.l.b16 %v4618
    %v5138 = vunpack.c.l.b16 %v4619
    %v5139 = vunpack.c.l.b16 %v4620
    %v5140 = vunpack.c.l.b16 %v4621
    %v5141 = vunpack.c.l.b16 %v4622
    %v5142 = vunpack.c.l.b16 %v4623
    %v5143 = vunpack.c.l.b16 %v4624
    %v5144 = vunpack.c.l.b16 %v4625
    %v5145 = vunpack.c.l.b16 %v4626
    %v5146 = vunpack.c.l.b16 %v4627
    %v5147 = vunpack.c.l.b16 %v4628
    %v5148 = vunpack.c.l.b16 %v4629
    %v5149 = vunpack.c.l.b16 %v4630
    %v5150 = vunpack.c.l.b16 %v4631
    %v5151 = vunpack.c.l.b16 %v4632
    %v5152 = vunpack.c.l.b16 %v4633
    %v5153 = vunpack.c.l.b16 %v4634
    %v5154 = vunpack.c.l.b16 %v4635
    %v5155 = vunpack.c.l.b16 %v4636
    %v5156 = vunpack.c.l.b16 %v4637
    %v5157 = vunpack.c.l.b16 %v4638
    %v5158 = vunpack.c.l.b16 %v4639
    %v5159 = vunpack.c.l.b16 %v4640
    %v5160 = vunpack.c.l.b16 %v4641
    %v5161 = vunpack.c.l.b16 %v4642
    %v5162 = vunpack.c.l.b16 %v4643
    %v5163 = vunpack.c.l.b16 %v4644
    %v5164 = vunpack.c.l.b16 %v4645
    %v5165 = vunpack.c.l.b16 %v4646
    %v5166 = vunpack.c.l.b16 %v4647
    %v5167 = vunpack.c.l.b16 %v4648
    %v5168 = vunpack.c.l.b16 %v4649
    %v5169 = vunpack.c.l.b16 %v4650
    %v5170 = vunpack.c.l.b16 %v4651
    %v5171 = vunpack.c.l.b16 %v4652
    %v5172 = vunpack.c.l.b16 %v4653
    %v5173 = vunpack.c.l.b16 %v4654
    %v5174 = vunpack.c.l.b16 %v4655
    %v5175 = vunpack.c.l.b16 %v4656
    %v5176 = vunpack.c.l.b16 %v4657
    %v5177 = vunpack.c.l.b16 %v4658
    %v5178 = vunpack.c.l.b16 %v4659
    %v5179 = vunpack.c.l.b16 %v4660
    %v5180 = vunpack.c.l.b16 %v4661
    %v5181 = vunpack.c.l.b16 %v4662
    %v5182 = vunpack.c.l.b16 %v4663
    %v5183 = vunpack.c.l.b16 %v4664
    %v5184 = vunpack.c.l.b16 %v4665
    %v5185 = vunpack.c.l.b16 %v4666
    %v5186 = vunpack.c.l.b16 %v4667
    %v5187 = vunpack.c.l.b16 %v4668
    %v5188 = vunpack.c.l.b16 %v4669
    %v5189 = vunpack.c.l.b16 %v4670
    %v5190 = vunpack.c.l.b16 %v4671
    %v5191 = vunpack.c.l.b16 %v4672
    %v5192 = vunpack.c.l.b16 %v4673
    %v5193 = vunpack.c.l.b16 %v4674
    %v5194 = vunpack.c.l.b16 %v4675
    %v5195 = vunpack.c.l.b16 %v4676
    %v5196 = vunpack.c.l.b16 %v4677
    %v5197 = vunpack.c.l.b16 %v4678
    %v5198 = vunpack.c.l.b16 %v4679
    %v5199 = vunpack.c.l.b16 %v4680
    %v5200 = vunpack.c.l.b16 %v4681
    %v5201 = vunpack.c.l.b16 %v4682
    %v5202 = vunpack.c.l.b16 %v4683
    %v5203 = vunpack.c.l.b16 %v4684
    %v5204 = vunpack.c.l.b16 %v4685
    %v5205 = vunpack.c.l.b16 %v4686
    %v5206 = vunpack.c.l.b16 %v4687
    %v5207 = vpack.c.b16 %v4952, %v4951
    %v5208 = vpack.c.b16 %v4954, %v4953
    %v5209 = vpack.c.b16 %v4956, %v4955
    %v5210 = vpack.c.b16 %v4958, %v4957
    %v5211 = vpack.c.b16 %v4960, %v4959
    %v5212 = vpack.c.b16 %v4962, %v4961
    %v5213 = vpack.c.b16 %v4964, %v4963
    %v5214 = vpack.c.b16 %v4966, %v4965
    %v5215 = vpack.c.b16 %v4968, %v4967
    %v5216 = vpack.c.b16 %v4970, %v4969
    %v5217 = vpack.c.b16 %v4972, %v4971
    %v5218 = vpack.c.b16 %v4974, %v4973
    %v5219 = vpack.c.b16 %v4976, %v4975
    %v5220 = vpack.c.b16 %v4978, %v4977
    %v5221 = vpack.c.b16 %v4980, %v4979
    %v5222 = vpack.c.b16 %v4982, %v4981
    %v5223 = vpack.c.b16 %v4984, %v4983
    %v5224 = vpack.c.b16 %v4986, %v4985
    %v5225 = vpack.c.b16 %v4988, %v4987
    %v5226 = vpack.c.b16 %v4990, %v4989
    %v5227 = vpack.c.b16 %v4992, %v4991
    %v5228 = vpack.c.b16 %v4994, %v4993
    %v5229 = vpack.c.b16 %v4996, %v4995
    %v5230 = vpack.c.b16 %v4998, %v4997
    %v5231 = vpack.c.b16 %v5000, %v4999
    %v5232 = vpack.c.b16 %v5002, %v5001
    %v5233 = vpack.c.b16 %v5004, %v5003
    %v5234 = vpack.c.b16 %v5006, %v5005
    %v5235 = vpack.c.b16 %v5008, %v5007
    %v5236 = vpack.c.b16 %v5010, %v5009
    %v5237 = vpack.c.b16 %v5012, %v5011
    %v5238 = vpack.c.b16 %v5014, %v5013
    %v5239 = vpack.c.b16 %v5016, %v5015
    %v5240 = vpack.c.b16 %v5018, %v5017
    %v5241 = vpack.c.b16 %v5020, %v5019
    %v5242 = vpack.c.b16 %v5022, %v5021
    %v5243 = vpack.c.b16 %v5024, %v5023
    %v5244 = vpack.c.b16 %v5026, %v5025
    %v5245 = vpack.c.b16 %v5028, %v5027
    %v5246 = vpack.c.b16 %v5030, %v5029
    %v5247 = vpack.c.b16 %v5032, %v5031
    %v5248 = vpack.c.b16 %v5034, %v5033
    %v5249 = vpack.c.b16 %v5036, %v5035
    %v5250 = vpack.c.b16 %v5038, %v5037
    %v5251 = vpack.c.b16 %v5040, %v5039
    %v5252 = vpack.c.b16 %v5042, %v5041
    %v5253 = vpack.c.b16 %v5044, %v5043
    %v5254 = vpack.c.b16 %v5046, %v5045
    %v5255 = vpack.c.b16 %v5048, %v5047
    %v5256 = vpack.c.b16 %v5050, %v5049
    %v5257 = vpack.c.b16 %v5052, %v5051
    %v5258 = vpack.c.b16 %v5054, %v5053
    %v5259 = vpack.c.b16 %v5056, %v5055
    %v5260 = vpack.c.b16 %v5058, %v5057
    %v5261 = vpack.c.b16 %v5060, %v5059
    %v5262 = vpack.c.b16 %v5062, %v5061
    %v5263 = vpack.c.b16 %v5064, %v5063
    %v5264 = vpack.c.b16 %v5066, %v5065
    %v5265 = vpack.c.b16 %v5068, %v5067
    %v5266 = vpack.c.b16 %v5070, %v5069
    %v5267 = vpack.c.b16 %v5072, %v5071
    %v5268 = vpack.c.b16 %v5074, %v5073
    %v5269 = vpack.c.b16 %v5076, %v5075
    %v5270 = vpack.c.b16 %v5078, %v5077
    %v5271 = vpack.c.b16 %v5080, %v5079
    %v5272 = vpack.c.b16 %v5082, %v5081
    %v5273 = vpack.c.b16 %v5084, %v5083
    %v5274 = vpack.c.b16 %v5086, %v5085
    %v5275 = vpack.c.b16 %v5088, %v5087
    %v5276 = vpack.c.b16 %v5090, %v5089
    %v5277 = vpack.c.b16 %v5092, %v5091
    %v5278 = vpack.c.b16 %v5094, %v5093
    %v5279 = vpack.c.b16 %v5096, %v5095
    %v5280 = vpack.c.b16 %v5098, %v5097
    %v5281 = vpack.c.b16 %v5100, %v5099
    %v5282 = vpack.c.b16 %v5102, %v5101
    %v5283 = vpack.c.b16 %v5104, %v5103
    %v5284 = vpack.c.b16 %v5106, %v5105
    %v5285 = vpack.c.b16 %v5108, %v5107
    %v5286 = vpack.c.b16 %v5110, %v5109
    %v5287 = vpack.c.b16 %v5112, %v5111
    %v5288 = vpack.c.b16 %v5114, %v5113
    %v5289 = vpack.c.b16 %v5116, %v5115
    %v5290 = vpack.c.b16 %v5118, %v5117
    %v5291 = vpack.c.b16 %v5120, %v5119
    %v5292 = vpack.c.b16 %v5122, %v5121
    %v5293 = vpack.c.b16 %v5124, %v5123
    %v5294 = vpack.c.b16 %v5126, %v5125
    %v5295 = vpack.c.b16 %v5128, %v5127
    %v5296 = vpack.c.b16 %v5130, %v5129
    %v5297 = vpack.c.b16 %v5132, %v5131
    %v5298 = vpack.c.b16 %v5134, %v5133
    %v5299 = vpack.c.b16 %v5136, %v5135
    %v5300 = vpack.c.b16 %v5138, %v5137
    %v5301 = vpack.c.b16 %v5140, %v5139
    %v5302 = vpack.c.b16 %v5142, %v5141
    %v5303 = vpack.c.b16 %v5144, %v5143
    %v5304 = vpack.c.b16 %v5146, %v5145
    %v5305 = vpack.c.b16 %v5148, %v5147
    %v5306 = vpack.c.b16 %v5150, %v5149
    %v5307 = vpack.c.b16 %v5152, %v5151
    %v5308 = vpack.c.b16 %v5154, %v5153
    %v5309 = vpack.c.b16 %v5156, %v5155
    %v5310 = vpack.c.b16 %v5158, %v5157
    %v5311 = vpack.c.b16 %v5160, %v5159
    %v5312 = vpack.c.b16 %v5162, %v5161
    %v5313 = vpack.c.b16 %v5164, %v5163
    %v5314 = vpack.c.b16 %v5166, %v5165
    %v5315 = vpack.c.b16 %v5168, %v5167
    %v5316 = vpack.c.b16 %v5170, %v5169
    %v5317 = vpack.c.b16 %v5172, %v5171
    %v5318 = vpack.c.b16 %v5174, %v5173
    %v5319 = vpack.c.b16 %v5176, %v5175
    %v5320 = vpack.c.b16 %v5178, %v5177
    %v5321 = vpack.c.b16 %v5180, %v5179
    %v5322 = vpack.c.b16 %v5182, %v5181
    %v5323 = vpack.c.b16 %v5184, %v5183
    %v5324 = vpack.c.b16 %v5186, %v5185
    %v5325 = vpack.c.b16 %v5188, %v5187
    %v5326 = vpack.c.b16 %v5190, %v5189
    %v5327 = vpack.c.b16 %v5192, %v5191
    %v5328 = vpack.c.b16 %v5194, %v5193
    %v5329 = vpack.c.b16 %v5196, %v5195
    %v5330 = vpack.c.b16 %v5198, %v5197
    %v5331 = vpack.c.b16 %v5200, %v5199
    %v5332 = vpack.c.b16 %v5202, %v5201
    %v5333 = vpack.c.b16 %v5204, %v5203
    %v5334 = vpack.c.b16 %v5206, %v5205
    %5463 = vmatprep.subr.bf16.mxu0 0
    %5464 = vmatpush1.bf16.msra.mxu0 %v5207
    %5465 = vmatprep.subr.bf16.mxu0 0
    %5466 = vmatpush1.bf16.msra.mxu0 %v5208
    %5467 = vmatprep.subr.bf16.mxu0 0
    %5468 = vmatpush1.bf16.msra.mxu0 %v5209
    %5469 = vmatprep.subr.bf16.mxu0 0
    %5470 = vmatpush1.bf16.msra.mxu0 %v5210
    %5471 = vmatprep.subr.bf16.mxu0 0
    %5472 = vmatpush1.bf16.msra.mxu0 %v5211
    %5473 = vmatprep.subr.bf16.mxu0 0
    %5474 = vmatpush1.bf16.msra.mxu0 %v5212
    %5475 = vmatprep.subr.bf16.mxu0 0
    %5476 = vmatpush1.bf16.msra.mxu0 %v5213
    %5477 = vmatprep.subr.bf16.mxu0 0
    %5478 = vmatpush1.bf16.msra.mxu0 %v5214
    %5479 = vmatprep.subr.bf16.mxu0 0
    %5480 = vmatpush1.bf16.msra.mxu0 %v5215
    %5481 = vmatprep.subr.bf16.mxu0 0
    %5482 = vmatpush1.bf16.msra.mxu0 %v5216
    %5483 = vmatprep.subr.bf16.mxu0 0
    %5484 = vmatpush1.bf16.msra.mxu0 %v5217
    %5485 = vmatprep.subr.bf16.mxu0 0
    %5486 = vmatpush1.bf16.msra.mxu0 %v5218
    %5487 = vmatprep.subr.bf16.mxu0 0
    %5488 = vmatpush1.bf16.msra.mxu0 %v5219
    %5489 = vmatprep.subr.bf16.mxu0 0
    %5490 = vmatpush1.bf16.msra.mxu0 %v5220
    %5491 = vmatprep.subr.bf16.mxu0 0
    %5492 = vmatpush1.bf16.msra.mxu0 %v5221
    %5493 = vmatprep.subr.bf16.mxu0 0
    %5494 = vmatpush1.bf16.msra.mxu0 %v5222
    %5495 = vmatprep.mubr.bf16.mxu0 %v4417
    %5496 = vmatmul.mubr.bf16.gmra.mrb[0].mxu0 %v4416
    %v5497 = vpop.f32.mrb[0].mxu0
    %v5498 = vadd.f32 %v4693, %v5497
    %v5499 = vpop.f32.mrb[0].mxu0
    %v5500 = vpop.f32.mrb[0].mxu0
    %v5501 = vadd.f32 %v4693, %v5500
    %v5502 = vpop.f32.mrb[0].mxu0
    %5503 = vdwg.mxu0
    %5504 = vmatprep.subr.bf16.mxu0 0
    %5505 = vmatpush1.bf16.msra.mxu0 %v5223
    %5506 = vmatprep.subr.bf16.mxu0 0
    %5507 = vmatpush1.bf16.msra.mxu0 %v5224
    %5508 = vmatprep.subr.bf16.mxu0 0
    %5509 = vmatpush1.bf16.msra.mxu0 %v5225
    %5510 = vmatprep.subr.bf16.mxu0 0
    %5511 = vmatpush1.bf16.msra.mxu0 %v5226
    %5512 = vmatprep.subr.bf16.mxu0 0
    %5513 = vmatpush1.bf16.msra.mxu0 %v5227
    %5514 = vmatprep.subr.bf16.mxu0 0
    %5515 = vmatpush1.bf16.msra.mxu0 %v5228
    %5516 = vmatprep.subr.bf16.mxu0 0
    %5517 = vmatpush1.bf16.msra.mxu0 %v5229
    %5518 = vmatprep.subr.bf16.mxu0 0
    %5519 = vmatpush1.bf16.msra.mxu0 %v5230
    %5520 = vmatprep.subr.bf16.mxu0 0
    %5521 = vmatpush1.bf16.msra.mxu0 %v5231
    %5522 = vmatprep.subr.bf16.mxu0 0
    %5523 = vmatpush1.bf16.msra.mxu0 %v5232
    %5524 = vmatprep.subr.bf16.mxu0 0
    %5525 = vmatpush1.bf16.msra.mxu0 %v5233
    %5526 = vmatprep.subr.bf16.mxu0 0
    %5527 = vmatpush1.bf16.msra.mxu0 %v5234
    %5528 = vmatprep.subr.bf16.mxu0 0
    %5529 = vmatpush1.bf16.msra.mxu0 %v5235
    %5530 = vmatprep.subr.bf16.mxu0 0
    %5531 = vmatpush1.bf16.msra.mxu0 %v5236
    %5532 = vmatprep.subr.bf16.mxu0 0
    %5533 = vmatpush1.bf16.msra.mxu0 %v5237
    %5534 = vmatprep.subr.bf16.mxu0 0
    %5535 = vmatpush1.bf16.msra.mxu0 %v5238
    %5536 = vmatprep.mubr.bf16.mxu0 %v4419
    %5537 = vmatmul.mubr.bf16.gmra.mrb[0].mxu0 %v4418
    %v5538 = vpop.f32.mrb[0].mxu0
    %v5539 = vadd.f32 %v5498, %v5538
    %v5540 = vpop.f32.mrb[0].mxu0
    %v5541 = vpop.f32.mrb[0].mxu0
    %v5542 = vadd.f32 %v5501, %v5541
    %v5543 = vpop.f32.mrb[0].mxu0
    %5544 = vdwg.mxu0
    %5545 = vmatprep.subr.bf16.mxu0 0
    %5546 = vmatpush1.bf16.msra.mxu0 %v5239
    %5547 = vmatprep.subr.bf16.mxu0 0
    %5548 = vmatpush1.bf16.msra.mxu0 %v5240
    %5549 = vmatprep.subr.bf16.mxu0 0
    %5550 = vmatpush1.bf16.msra.mxu0 %v5241
    %5551 = vmatprep.subr.bf16.mxu0 0
    %5552 = vmatpush1.bf16.msra.mxu0 %v5242
    %5553 = vmatprep.subr.bf16.mxu0 0
    %5554 = vmatpush1.bf16.msra.mxu0 %v5243
    %5555 = vmatprep.subr.bf16.mxu0 0
    %5556 = vmatpush1.bf16.msra.mxu0 %v5244
    %5557 = vmatprep.subr.bf16.mxu0 0
    %5558 = vmatpush1.bf16.msra.mxu0 %v5245
    %5559 = vmatprep.subr.bf16.mxu0 0
    %5560 = vmatpush1.bf16.msra.mxu0 %v5246
    %5561 = vmatprep.subr.bf16.mxu0 0
    %5562 = vmatpush1.bf16.msra.mxu0 %v5247
    %5563 = vmatprep.subr.bf16.mxu0 0
    %5564 = vmatpush1.bf16.msra.mxu0 %v5248
    %5565 = vmatprep.subr.bf16.mxu0 0
    %5566 = vmatpush1.bf16.msra.mxu0 %v5249
    %5567 = vmatprep.subr.bf16.mxu0 0
    %5568 = vmatpush1.bf16.msra.mxu0 %v5250
    %5569 = vmatprep.subr.bf16.mxu0 0
    %5570 = vmatpush1.bf16.msra.mxu0 %v5251
    %5571 = vmatprep.subr.bf16.mxu0 0
    %5572 = vmatpush1.bf16.msra.mxu0 %v5252
    %5573 = vmatprep.subr.bf16.mxu0 0
    %5574 = vmatpush1.bf16.msra.mxu0 %v5253
    %5575 = vmatprep.subr.bf16.mxu0 0
    %5576 = vmatpush1.bf16.msra.mxu0 %v5254
    %5577 = vmatprep.mubr.bf16.mxu0 %v4421
    %5578 = vmatmul.mubr.bf16.gmra.mrb[0].mxu0 %v4420
    %v5579 = vpop.f32.mrb[0].mxu0
    %v5580 = vadd.f32 %v5539, %v5579
    %v5581 = vpop.f32.mrb[0].mxu0
    %v5582 = vpop.f32.mrb[0].mxu0
    %v5583 = vadd.f32 %v5542, %v5582
    %v5584 = vpop.f32.mrb[0].mxu0
    %5585 = vdwg.mxu0
    %5586 = vmatprep.subr.bf16.mxu0 0
    %5587 = vmatpush1.bf16.msra.mxu0 %v5255
    %5588 = vmatprep.subr.bf16.mxu0 0
    %5589 = vmatpush1.bf16.msra.mxu0 %v5256
    %5590 = vmatprep.subr.bf16.mxu0 0
    %5591 = vmatpush1.bf16.msra.mxu0 %v5257
    %5592 = vmatprep.subr.bf16.mxu0 0
    %5593 = vmatpush1.bf16.msra.mxu0 %v5258
    %5594 = vmatprep.subr.bf16.mxu0 0
    %5595 = vmatpush1.bf16.msra.mxu0 %v5259
    %5596 = vmatprep.subr.bf16.mxu0 0
    %5597 = vmatpush1.bf16.msra.mxu0 %v5260
    %5598 = vmatprep.subr.bf16.mxu0 0
    %5599 = vmatpush1.bf16.msra.mxu0 %v5261
    %5600 = vmatprep.subr.bf16.mxu0 0
    %5601 = vmatpush1.bf16.msra.mxu0 %v5262
    %5602 = vmatprep.subr.bf16.mxu0 0
    %5603 = vmatpush1.bf16.msra.mxu0 %v5263
    %5604 = vmatprep.subr.bf16.mxu0 0
    %5605 = vmatpush1.bf16.msra.mxu0 %v5264
    %5606 = vmatprep.subr.bf16.mxu0 0
    %5607 = vmatpush1.bf16.msra.mxu0 %v5265
    %5608 = vmatprep.subr.bf16.mxu0 0
    %5609 = vmatpush1.bf16.msra.mxu0 %v5266
    %5610 = vmatprep.subr.bf16.mxu0 0
    %5611 = vmatpush1.bf16.msra.mxu0 %v5267
    %5612 = vmatprep.subr.bf16.mxu0 0
    %5613 = vmatpush1.bf16.msra.mxu0 %v5268
    %5614 = vmatprep.subr.bf16.mxu0 0
    %5615 = vmatpush1.bf16.msra.mxu0 %v5269
    %5616 = vmatprep.subr.bf16.mxu0 0
    %5617 = vmatpush1.bf16.msra.mxu0 %v5270
    %5618 = vmatprep.mubr.bf16.mxu0 %v4423
    %5619 = vmatmul.mubr.bf16.gmra.mrb[0].mxu0 %v4422
    %v5620 = vpop.f32.mrb[0].mxu0
    %v5621 = vadd.f32 %v5580, %v5620
    %v5622 = vpop.f32.mrb[0].mxu0
    %v5623 = vpop.f32.mrb[0].mxu0
    %v5624 = vadd.f32 %v5583, %v5623
    %v5625 = vpop.f32.mrb[0].mxu0
    %5626 = vdwg.mxu0
    %5627 = vmatprep.subr.bf16.mxu0 0
    %5628 = vmatpush1.bf16.msra.mxu0 %v5271
    %5629 = vmatprep.subr.bf16.mxu0 0
    %5630 = vmatpush1.bf16.msra.mxu0 %v5272
    %5631 = vmatprep.subr.bf16.mxu0 0
    %5632 = vmatpush1.bf16.msra.mxu0 %v5273
    %5633 = vmatprep.subr.bf16.mxu0 0
    %5634 = vmatpush1.bf16.msra.mxu0 %v5274
    %5635 = vmatprep.subr.bf16.mxu0 0
    %5636 = vmatpush1.bf16.msra.mxu0 %v5275
    %5637 = vmatprep.subr.bf16.mxu0 0
    %5638 = vmatpush1.bf16.msra.mxu0 %v5276
    %5639 = vmatprep.subr.bf16.mxu0 0
    %5640 = vmatpush1.bf16.msra.mxu0 %v5277
    %5641 = vmatprep.subr.bf16.mxu0 0
    %5642 = vmatpush1.bf16.msra.mxu0 %v5278
    %5643 = vmatprep.subr.bf16.mxu0 0
    %5644 = vmatpush1.bf16.msra.mxu0 %v5279
    %5645 = vmatprep.subr.bf16.mxu0 0
    %5646 = vmatpush1.bf16.msra.mxu0 %v5280
    %5647 = vmatprep.subr.bf16.mxu0 0
    %5648 = vmatpush1.bf16.msra.mxu0 %v5281
    %5649 = vmatprep.subr.bf16.mxu0 0
    %5650 = vmatpush1.bf16.msra.mxu0 %v5282
    %5651 = vmatprep.subr.bf16.mxu0 0
    %5652 = vmatpush1.bf16.msra.mxu0 %v5283
    %5653 = vmatprep.subr.bf16.mxu0 0
    %5654 = vmatpush1.bf16.msra.mxu0 %v5284
    %5655 = vmatprep.subr.bf16.mxu0 0
    %5656 = vmatpush1.bf16.msra.mxu0 %v5285
    %5657 = vmatprep.subr.bf16.mxu0 0
    %5658 = vmatpush1.bf16.msra.mxu0 %v5286
    %5659 = vmatprep.mubr.bf16.mxu0 %v4425
    %5660 = vmatmul.mubr.bf16.gmra.mrb[0].mxu0 %v4424
    %v5661 = vpop.f32.mrb[0].mxu0
    %v5662 = vadd.f32 %v5621, %v5661
    %v5663 = vpop.f32.mrb[0].mxu0
    %v5664 = vpop.f32.mrb[0].mxu0
    %v5665 = vadd.f32 %v5624, %v5664
    %v5666 = vpop.f32.mrb[0].mxu0
    %5667 = vdwg.mxu0
    %5668 = vmatprep.subr.bf16.mxu0 0
    %5669 = vmatpush1.bf16.msra.mxu0 %v5287
    %5670 = vmatprep.subr.bf16.mxu0 0
    %5671 = vmatpush1.bf16.msra.mxu0 %v5288
    %5672 = vmatprep.subr.bf16.mxu0 0
    %5673 = vmatpush1.bf16.msra.mxu0 %v5289
    %5674 = vmatprep.subr.bf16.mxu0 0
    %5675 = vmatpush1.bf16.msra.mxu0 %v5290
    %5676 = vmatprep.subr.bf16.mxu0 0
    %5677 = vmatpush1.bf16.msra.mxu0 %v5291
    %5678 = vmatprep.subr.bf16.mxu0 0
    %5679 = vmatpush1.bf16.msra.mxu0 %v5292
    %5680 = vmatprep.subr.bf16.mxu0 0
    %5681 = vmatpush1.bf16.msra.mxu0 %v5293
    %5682 = vmatprep.subr.bf16.mxu0 0
    %5683 = vmatpush1.bf16.msra.mxu0 %v5294
    %5684 = vmatprep.subr.bf16.mxu0 0
    %5685 = vmatpush1.bf16.msra.mxu0 %v5295
    %5686 = vmatprep.subr.bf16.mxu0 0
    %5687 = vmatpush1.bf16.msra.mxu0 %v5296
    %5688 = vmatprep.subr.bf16.mxu0 0
    %5689 = vmatpush1.bf16.msra.mxu0 %v5297
    %5690 = vmatprep.subr.bf16.mxu0 0
    %5691 = vmatpush1.bf16.msra.mxu0 %v5298
    %5692 = vmatprep.subr.bf16.mxu0 0
    %5693 = vmatpush1.bf16.msra.mxu0 %v5299
    %5694 = vmatprep.subr.bf16.mxu0 0
    %5695 = vmatpush1.bf16.msra.mxu0 %v5300
    %5696 = vmatprep.subr.bf16.mxu0 0
    %5697 = vmatpush1.bf16.msra.mxu0 %v5301
    %5698 = vmatprep.subr.bf16.mxu0 0
    %5699 = vmatpush1.bf16.msra.mxu0 %v5302
    %5700 = vmatprep.mubr.bf16.mxu0 %v4427
    %5701 = vmatmul.mubr.bf16.gmra.mrb[0].mxu0 %v4426
    %v5702 = vpop.f32.mrb[0].mxu0
    %v5703 = vadd.f32 %v5662, %v5702
    %v5704 = vpop.f32.mrb[0].mxu0
    %v5705 = vpop.f32.mrb[0].mxu0
    %v5706 = vadd.f32 %v5665, %v5705
    %v5707 = vpop.f32.mrb[0].mxu0
    %5708 = vdwg.mxu0
    %5709 = vmatprep.subr.bf16.mxu0 0
    %5710 = vmatpush1.bf16.msra.mxu0 %v5303
    %5711 = vmatprep.subr.bf16.mxu0 0
    %5712 = vmatpush1.bf16.msra.mxu0 %v5304
    %5713 = vmatprep.subr.bf16.mxu0 0
    %5714 = vmatpush1.bf16.msra.mxu0 %v5305
    %5715 = vmatprep.subr.bf16.mxu0 0
    %5716 = vmatpush1.bf16.msra.mxu0 %v5306
    %5717 = vmatprep.subr.bf16.mxu0 0
    %5718 = vmatpush1.bf16.msra.mxu0 %v5307
    %5719 = vmatprep.subr.bf16.mxu0 0
    %5720 = vmatpush1.bf16.msra.mxu0 %v5308
    %5721 = vmatprep.subr.bf16.mxu0 0
    %5722 = vmatpush1.bf16.msra.mxu0 %v5309
    %5723 = vmatprep.subr.bf16.mxu0 0
    %5724 = vmatpush1.bf16.msra.mxu0 %v5310
    %5725 = vmatprep.subr.bf16.mxu0 0
    %5726 = vmatpush1.bf16.msra.mxu0 %v5311
    %5727 = vmatprep.subr.bf16.mxu0 0
    %5728 = vmatpush1.bf16.msra.mxu0 %v5312
    %5729 = vmatprep.subr.bf16.mxu0 0
    %5730 = vmatpush1.bf16.msra.mxu0 %v5313
    %5731 = vmatprep.subr.bf16.mxu0 0
    %5732 = vmatpush1.bf16.msra.mxu0 %v5314
    %5733 = vmatprep.subr.bf16.mxu0 0
    %5734 = vmatpush1.bf16.msra.mxu0 %v5315
    %5735 = vmatprep.subr.bf16.mxu0 0
    %5736 = vmatpush1.bf16.msra.mxu0 %v5316
    %5737 = vmatprep.subr.bf16.mxu0 0
    %5738 = vmatpush1.bf16.msra.mxu0 %v5317
    %5739 = vmatprep.subr.bf16.mxu0 0
    %5740 = vmatpush1.bf16.msra.mxu0 %v5318
    %5741 = vmatprep.mubr.bf16.mxu0 %v4429
    %5742 = vmatmul.mubr.bf16.gmra.mrb[0].mxu0 %v4428
    %v5743 = vpop.f32.mrb[0].mxu0
    %v5744 = vadd.f32 %v5703, %v5743
    %v5745 = vpop.f32.mrb[0].mxu0
    %v5746 = vpop.f32.mrb[0].mxu0
    %v5747 = vadd.f32 %v5706, %v5746
    %v5748 = vpop.f32.mrb[0].mxu0
    %5749 = vdwg.mxu0
    %5750 = vmatprep.subr.bf16.mxu0 0
    %5751 = vmatpush1.bf16.msra.mxu0 %v5319
    %5752 = vmatprep.subr.bf16.mxu0 0
    %5753 = vmatpush1.bf16.msra.mxu0 %v5320
    %5754 = vmatprep.subr.bf16.mxu0 0
    %5755 = vmatpush1.bf16.msra.mxu0 %v5321
    %5756 = vmatprep.subr.bf16.mxu0 0
    %5757 = vmatpush1.bf16.msra.mxu0 %v5322
    %5758 = vmatprep.subr.bf16.mxu0 0
    %5759 = vmatpush1.bf16.msra.mxu0 %v5323
    %5760 = vmatprep.subr.bf16.mxu0 0
    %5761 = vmatpush1.bf16.msra.mxu0 %v5324
    %5762 = vmatprep.subr.bf16.mxu0 0
    %5763 = vmatpush1.bf16.msra.mxu0 %v5325
    %5764 = vmatprep.subr.bf16.mxu0 0
    %5765 = vmatpush1.bf16.msra.mxu0 %v5326
    %5766 = vmatprep.subr.bf16.mxu0 0
    %5767 = vmatpush1.bf16.msra.mxu0 %v5327
    %5768 = vmatprep.subr.bf16.mxu0 0
    %5769 = vmatpush1.bf16.msra.mxu0 %v5328
    %5770 = vmatprep.subr.bf16.mxu0 0
    %5771 = vmatpush1.bf16.msra.mxu0 %v5329
    %5772 = vmatprep.subr.bf16.mxu0 0
    %5773 = vmatpush1.bf16.msra.mxu0 %v5330
    %5774 = vmatprep.subr.bf16.mxu0 0
    %5775 = vmatpush1.bf16.msra.mxu0 %v5331
    %5776 = vmatprep.subr.bf16.mxu0 0
    %5777 = vmatpush1.bf16.msra.mxu0 %v5332
    %5778 = vmatprep.subr.bf16.mxu0 0
    %5779 = vmatpush1.bf16.msra.mxu0 %v5333
    %5780 = vmatprep.subr.bf16.mxu0 0
    %5781 = vmatpush1.bf16.msra.mxu0 %v5334
    %5782 = vmatprep.mubr.bf16.mxu0 %v4431
    %5783 = vmatmul.mubr.bf16.gmra.mrb[0].mxu0 %v4430
    %v5784 = vpop.f32.mrb[0].mxu0
    %v5785 = vadd.f32 %v5744, %v5784
    %v5786 = vpop.f32.mrb[0].mxu0
    %v5787 = vpop.f32.mrb[0].mxu0
    %v5788 = vadd.f32 %v5747, %v5787
    %v5789 = vpop.f32.mrb[0].mxu0
    %5790 = vdwg.mxu0
    %v5791 = vadd.f32 %v3662, %v5785
    %v5792 = vadd.f32 %v3663, %v5788
    %v5793 = vld [vmem:[%s7] sm:$0x1]
    %v5794 = vld [vmem:[%s8] sm:$0x1]
    %v5795 = vsel %vm76, %v5791, 0.0
    %5796 = vadd.xlane.f32.xlu0 %v5795
    %v5797 = vpop.xlane.xlu0 %5796
    %v5798 = vsel %vm76, %v5792, 0.0
    %5799 = vadd.xlane.f32.xlu0 %v5798
    %v5800 = vpop.xlane.xlu0 %5799
    %v5801 = vmul.f32 %v5797, %v3627
    %v5802 = vmul.f32 %v5800, %v3627
    %v5803 = vsub.f32 %v5791, %v5801
    %v5804 = vsub.f32 %v5792, %v5802
    %v5805 = vmul.f32 %v5803, %v5803
    %v5806 = vmul.f32 %v5804, %v5804
    %v5807 = vsel %vm76, %v5805, 0.0
    %5808 = vadd.xlane.f32.xlu0 %v5807
    %v5809 = vpop.xlane.xlu0 %5808
    %v5810 = vsel %vm76, %v5806, 0.0
    %5811 = vadd.xlane.f32.xlu0 %v5810
    %v5812 = vpop.xlane.xlu0 %5811
    %v5813 = vmul.f32 %v5809, %v3627
    %v5814 = vmul.f32 %v5812, %v3627
    %v5815 = vadd.f32 %v5813, 1e-05
    %v5816 = vadd.f32 %v5814, 1e-05
    %v5817 = vrsqrt.pop %v5815
    %v5818 = vrsqrt.pop %v5816
    %v5819 = vmul.f32 %v5803, %v5817
    %v5820 = vmul.f32 %v5804, %v5818
    %v5822 = vlaneseq
    %v5823 = vshrl.u32 %v5822, 7
    %v5824 = vsub.s32 0, %v5823
    %v5825 = vrot.slane %v5793, %v5824
    %v5827 = vmul.f32 %v5819, %v5825
    %v5828 = vmul.f32 %v5820, %v5825
    %v5830 = vlaneseq
    %v5831 = vshrl.u32 %v5830, 7
    %v5832 = vsub.s32 0, %v5831
    %v5833 = vrot.slane %v5794, %v5832
    %v5835 = vadd.f32 %v5827, %v5833
    %v5836 = vadd.f32 %v5828, %v5833
    %5837 = vst.msk [vmem:[#allocation2] sm:$0xff] %vm76, %v5835
    %5838 = vst.msk [vmem:[#allocation2 + $0x8] sm:$0xff] %vm76, %v5836
    // Predicated region
    $region54: #{tpu_custom_call.1} parent=1 // pred_check
      _
    $region55: #{tpu_custom_call.1} parent=1 // pred_check_branch
      %5840 = sbr.rel (0) target = $region57
    $region56: #{tpu_custom_call.1} parent=1 // pred_region
      %s5842 = ssub.s32 256, 256
      %5843 = vsyncadd [#allocation3], %s5842
      %s5844 = sshll.u32 [#allocation2], 4
      %s5845 = int_to_ptr.vmem [resolvable:$true] %s5844
      %5850 = dma.vmem_to_hbm [thread:$0]  %s5845, 256, %s13, [#allocation3], 128, 128, 8
    $region57: #{tpu_custom_call.1} parent=1 // pred_fallthru
      _
    // Predicated region
    $region58: #{tpu_custom_call.1} parent=1 // pred_check
      _
    $region59: #{tpu_custom_call.1} parent=1 // pred_check_branch
      %5852 = sbr.rel (0) target = $region61
    $region60: #{tpu_custom_call.1} parent=1 // pred_region
      %5853 = dma.done [#allocation3], 256
    $region61: #{tpu_custom_call.1} parent=1 // pred_fallthru
      _
    %5854 = vsyncpa [#allocation3], 1

</llo_original>
